<compile_context>
chip_gen: v5e
topology: v5e:2x2
jax: 0.10.0
libtpu: 0.0.40
codegen_flags: <defaults>
</compile_context>

<pallas_src>
import numpy as np
import jax
import jax.numpy as jnp
from jax.experimental import pallas as pl
from jax.experimental.pallas import tpu as pltpu


# ---------------------------------------------------------------------------
# Parameter construction (deterministic, matches torchaudio defaults)
# ---------------------------------------------------------------------------
def _hz_to_mel_htk(f):
    return 2595.0 * np.log10(1.0 + f / 700.0)


def _mel_to_hz_htk(m):
    return 700.0 * (10.0 ** (m / 2595.0) - 1.0)


def make_mel_filterbank(sample_rate, n_fft, n_mels):
    """torchaudio.functional.melscale_fbanks, mel_scale='htk', norm=None.
    Returns (n_freq, n_mels) with n_freq = n_fft//2 + 1."""
    n_freq = n_fft // 2 + 1
    all_freqs = np.linspace(0.0, sample_rate / 2.0, n_freq)
    m_min = _hz_to_mel_htk(0.0)
    m_max = _hz_to_mel_htk(sample_rate / 2.0)
    m_pts = np.linspace(m_min, m_max, n_mels + 2)
    f_pts = _mel_to_hz_htk(m_pts)                         # (n_mels + 2,)
    f_diff = f_pts[1:] - f_pts[:-1]                       # (n_mels + 1,)
    slopes = f_pts[None, :] - all_freqs[:, None]          # (n_freq, n_mels + 2)
    down_slopes = (-1.0 * slopes[:, :-2]) / f_diff[:-1]   # (n_freq, n_mels)
    up_slopes = slopes[:, 2:] / f_diff[1:]                # (n_freq, n_mels)
    fb = np.maximum(0.0, np.minimum(down_slopes, up_slopes))
    return fb.astype(np.float32)


def make_hann_window(n_fft):
    # torch.hann_window(periodic=True)
    n = np.arange(n_fft)
    return (0.5 * (1.0 - np.cos(2.0 * np.pi * n / n_fft))).astype(np.float32)


def make_windowed_dft_T(n_fft, n_freq):
    """Transposed real-DFT matrices with the Hann window folded into each
    column; cos rows stacked over sin rows.  Shape: (2*n_freq, n_fft)."""
    window = make_hann_window(n_fft).astype(np.float64)    # (n_fft,)
    k = np.arange(n_freq)[:, None]
    n = np.arange(n_fft)[None, :]
    ang = 2.0 * np.pi * k * n / n_fft
    cos_m = np.cos(ang) * window[None, :]
    sin_m = np.sin(ang) * window[None, :]
    return np.concatenate([cos_m, sin_m], axis=0).astype(np.float32)


# ---------------------------------------------------------------------------
# Pallas kernel
# ---------------------------------------------------------------------------
def logmel_kernel(frames_ref, dft_ref, mel_ref, out_ref):
    # frames_ref: (1, n_fft, Tt)       bf16   (frames^T for one clip tile)
    # dft_ref:    (2*n_freq, n_fft)    bf16   (window-folded [cos ; sin]^T)
    # mel_ref:    (n_mels, n_freq)     bf16   (mel filterbank^T)
    # out_ref:    (1, n_mels, Tt)      f32    (lane-dense: Tt multiple of 128)
    n_freq = mel_ref.shape[1]
    spec = jnp.dot(dft_ref[...], frames_ref[0],
                   preferred_element_type=jnp.float32)      # (2*n_freq, Tt) f32
    re = spec[:n_freq, :]
    im = spec[n_freq:, :]
    power = re * re + im * im                               # (n_freq, Tt) f32, >= 0
    mel = jnp.dot(mel_ref[...], power.astype(jnp.bfloat16),
                  preferred_element_type=jnp.float32)       # (n_mels, Tt) f32, >= 0
    out_ref[0] = jnp.log(mel + 1e-14)


# ---------------------------------------------------------------------------
# Wrapper
# ---------------------------------------------------------------------------
def log_mel_spec(x, sample_rate=16000, n_mels=128, hop_length=380, n_fft=1024,
                 frame_tile=256):
    """x: (B, time) float32 waveform.  Returns (B, n_mels, n_frames) float32."""
    B, time = x.shape
    n_freq = n_fft // 2        # Nyquist bin dropped: its mel weights are zero
    n_frames = 1 + time // hop_length                       # center=True

    # Frame tile: multiple of 128 (lane-dense output), shrunk for short clips.
    frame_tile = int(min(frame_tile, max(128, -(-n_frames // 128) * 128)))
    t_pad = -(-n_frames // frame_tile) * frame_tile

    # --- glue: reflect pad (center=True) + framing (gather, transposed) ---
    pad = n_fft // 2
    xp = jnp.pad(x.astype(jnp.float32), ((0, 0), (pad, pad)), mode="reflect")
    xp = xp.astype(jnp.bfloat16)
    starts = jnp.arange(n_frames) * hop_length
    idx = jnp.arange(n_fft)[:, None] + starts[None, :]      # (n_fft, T)
    frames = xp[:, idx]                                     # (B, n_fft, T) bf16
    if t_pad != n_frames:
        frames = jnp.pad(frames, ((0, 0), (0, 0), (0, t_pad - n_frames)))

    # --- deterministic parameters (bf16 matmul inputs, f32 accumulation) ---
    dft_t = jnp.asarray(make_windowed_dft_T(n_fft, n_freq), dtype=jnp.bfloat16)
    fb_t = jnp.asarray(
        make_mel_filterbank(sample_rate, n_fft, n_mels)[:n_freq, :].T,
        dtype=jnp.bfloat16)                                 # (n_mels, n_freq)

    out = pl.pallas_call(
        logmel_kernel,
        out_shape=jax.ShapeDtypeStruct((B, n_mels, t_pad), jnp.float32),
        grid_spec=pltpu.PrefetchScalarGridSpec(
            num_scalar_prefetch=0,
            grid=(B, t_pad // frame_tile),
            in_specs=[
                pl.BlockSpec((1, n_fft, frame_tile), lambda b, r: (b, 0, r)),
                pl.BlockSpec((2 * n_freq, n_fft), lambda b, r: (0, 0)),
                pl.BlockSpec((n_mels, n_freq), lambda b, r: (0, 0)),
            ],
            out_specs=pl.BlockSpec((1, n_mels, frame_tile),
                                   lambda b, r: (b, 0, r)),
        ),
        compiler_params=pltpu.CompilerParams(
            dimension_semantics=("parallel", "parallel"),
            vmem_limit_bytes=32 << 20,
        ),
    )(frames, dft_t, fb_t)

    # Already in torchaudio layout (B, n_mels, n_frames); just drop frame pad.
    return out[:, :, :n_frames]


# ---------------------------------------------------------------------------
# Pure-JAX f32 reference (for a light numerical sanity check)
# ---------------------------------------------------------------------------
def _reference_log_mel(x, sample_rate=16000, n_mels=128, hop_length=380,
                       n_fft=1024):
    B, time = x.shape
    n_freq = n_fft // 2 + 1
    n_frames = 1 + time // hop_length
    pad = n_fft // 2
    xp = jnp.pad(x.astype(jnp.float32), ((0, 0), (pad, pad)), mode="reflect")
    starts = jnp.arange(n_frames) * hop_length
    idx = starts[:, None] + jnp.arange(n_fft)[None, :]
    frames = xp[:, idx]                                     # (B, T, n_fft)
    window = jnp.asarray(make_hann_window(n_fft))
    n = np.arange(n_fft)[:, None]
    k = np.arange(n_freq)[None, :]
    ang = 2.0 * np.pi * n * k / n_fft
    cos_m = jnp.asarray(np.cos(ang).astype(np.float32))
    sin_m = jnp.asarray(np.sin(ang).astype(np.float32))
    xw = frames * window
    re = jnp.einsum("btn,nk->btk", xw, cos_m)
    im = jnp.einsum("btn,nk->btk", xw, sin_m)
    power = re * re + im * im                               # (B, T, n_freq)
    fb = jnp.asarray(make_mel_filterbank(sample_rate, n_fft, n_mels))
    mel = jnp.einsum("btk,km->btm", power, fb)              # (B, T, n_mels)
    return jnp.transpose(jnp.log(mel + 1e-14), (0, 2, 1))   # (B, n_mels, T)


if __name__ == "__main__":
    key = jax.random.PRNGKey(0)
    B, time = 2, 1900                     # -> n_frames = 1 + 1900//380 = 6
    x = jax.random.normal(key, (B, time), dtype=jnp.float32)

    y = log_mel_spec(x)
    jax.block_until_ready(y)

    n_frames = 1 + time // 380
    assert y.shape == (B, 128, n_frames), y.shape
    assert bool(jnp.all(jnp.isfinite(y))), "non-finite values in log-mel output"

    # Numerical sanity vs. f32 reference (bf16 matmul inputs -> small log-domain
    # error; the mean absolute difference is a robust, tight check).
    y_ref = _reference_log_mel(x)
    mean_abs_diff = float(jnp.mean(jnp.abs(y - y_ref)))
    assert mean_abs_diff < 0.05, f"mean |diff| too large: {mean_abs_diff}"

    print("KERNEL_OK")
</pallas_src>

<mosaic_0001>
module attributes {stable_mosaic.version = 11 : i64} {
  func.func @logmel_kernel(%arg0: i32, %arg1: i32, %arg2: memref<1x1024x128xbf16, #tpu.memory_space<vmem>>, %arg3: memref<1024x1024xbf16, #tpu.memory_space<vmem>>, %arg4: memref<128x512xbf16, #tpu.memory_space<vmem>>, %arg5: memref<1x128x128xf32, #tpu.memory_space<vmem>>) attributes {dimension_semantics = [#tpu.dimension_semantics<parallel>, #tpu.dimension_semantics<parallel>], iteration_bounds = array<i64: 2, 1>, scalar_prefetch = 0 : i64, scratch_operands = 0 : i64, tpu.core_type = #tpu.core_type<tc>, window_params = [{transform_indices = @transform_0, window_bounds = array<i64: 1, 1024, 128>}, {pipeline_mode = #tpu.pipeline_mode<synchronous>, transform_indices = @transform_1, window_bounds = array<i64: 1024, 1024>}, {pipeline_mode = #tpu.pipeline_mode<synchronous>, transform_indices = @transform_2, window_bounds = array<i64: 128, 512>}, {transform_indices = @transform_3, window_bounds = array<i64: 1, 128, 128>}]} {
    %c0 = arith.constant 0 : index
    %c0_0 = arith.constant 0 : index
    %0 = vector.load %arg3[%c0, %c0_0] : memref<1024x1024xbf16, #tpu.memory_space<vmem>>, vector<1024x1024xbf16>
    %c0_1 = arith.constant 0 : index
    %c0_2 = arith.constant 0 : index
    %c0_3 = arith.constant 0 : index
    %1 = vector.load %arg2[%c0_1, %c0_2, %c0_3] : memref<1x1024x128xbf16, #tpu.memory_space<vmem>>, vector<1x1024x128xbf16>
    %2 = vector.shape_cast %1 : vector<1x1024x128xbf16> to vector<1024x128xbf16>
    %cst = arith.constant dense<0.000000e+00> : vector<1024x128xf32>
    %3 = tpu.matmul %0, %2, %cst {dimension_numbers = #tpu.dot_dimension_numbers<[1], [0], [0], [1], [0, 0, 1, 1], [], []>} : vector<1024x1024xbf16>, vector<1024x128xbf16>, vector<1024x128xf32> -> vector<1024x128xf32>
    %4 = vector.extract_strided_slice %3 {offsets = [0, 0], sizes = [512, 128], strides = [1, 1]} : vector<1024x128xf32> to vector<512x128xf32>
    %5 = vector.extract_strided_slice %3 {offsets = [512, 0], sizes = [512, 128], strides = [1, 1]} : vector<1024x128xf32> to vector<512x128xf32>
    %6 = arith.mulf %4, %4 : vector<512x128xf32>
    %7 = arith.mulf %5, %5 : vector<512x128xf32>
    %8 = arith.addf %6, %7 : vector<512x128xf32>
    %c0_4 = arith.constant 0 : index
    %c0_5 = arith.constant 0 : index
    %9 = vector.load %arg4[%c0_4, %c0_5] : memref<128x512xbf16, #tpu.memory_space<vmem>>, vector<128x512xbf16>
    %10 = arith.truncf %8 : vector<512x128xf32> to vector<512x128xbf16>
    %cst_6 = arith.constant dense<0.000000e+00> : vector<128x128xf32>
    %11 = tpu.matmul %9, %10, %cst_6 {dimension_numbers = #tpu.dot_dimension_numbers<[1], [0], [0], [1], [0, 0, 1, 1], [], []>} : vector<128x512xbf16>, vector<512x128xbf16>, vector<128x128xf32> -> vector<128x128xf32>
    %cst_7 = arith.constant 9.99999982E-15 : f32
    %12 = vector.broadcast %cst_7 : f32 to vector<128x128xf32>
    %13 = arith.addf %11, %12 : vector<128x128xf32>
    %14 = math.log %13 : vector<128x128xf32>
    %c0_8 = arith.constant 0 : index
    %c0_9 = arith.constant 0 : index
    %c0_10 = arith.constant 0 : index
    %15 = vector.load %arg5[%c0_8, %c0_9, %c0_10] : memref<1x128x128xf32, #tpu.memory_space<vmem>>, vector<1x128x128xf32>
    %16 = vector.shape_cast %15 : vector<1x128x128xf32> to vector<128x128xf32>
    %17 = vector.shape_cast %14 : vector<128x128xf32> to vector<1x128x128xf32>
    tpu.vector_store %arg5[%c0_8, %c0_9, %c0_10], %17 {strides = array<i32>} : memref<1x128x128xf32, #tpu.memory_space<vmem>>, vector<1x128x128xf32>,
    return
  }
  func.func @transform_0(%arg0: i32, %arg1: i32) -> (i32, i32, i32) {
    %c0_i32 = arith.constant 0 : i32
    %c0_i32_0 = arith.constant 0 : i32
    return %arg0, %c0_i32, %arg1 : i32, i32, i32
  }
  func.func @transform_1(%arg0: i32, %arg1: i32) -> (i32, i32) {
    %c0_i32 = arith.constant 0 : i32
    %c0_i32_0 = arith.constant 0 : i32
    %c0_i32_1 = arith.constant 0 : i32
    return %c0_i32, %c0_i32_0 : i32, i32
  }
  func.func @transform_2(%arg0: i32, %arg1: i32) -> (i32, i32) {
    %c0_i32 = arith.constant 0 : i32
    %c0_i32_0 = arith.constant 0 : i32
    %c0_i32_1 = arith.constant 0 : i32
    return %c0_i32, %c0_i32_0 : i32, i32
  }
  func.func @transform_3(%arg0: i32, %arg1: i32) -> (i32, i32, i32) {
    %c0_i32 = arith.constant 0 : i32
    %c0_i32_0 = arith.constant 0 : i32
    return %arg0, %c0_i32, %arg1 : i32, i32, i32
  }
}

</mosaic_0001>

<llo_original>
// kernel: tpu_custom_call.1
$region0: #{tpu_custom_call.1}
  #allocation0 [shape = 'u32[]', space=smem, size = 0x4, offset = 0x4, fixed_abs, tag = 'smem constant byte address 0x4 - core index']
  #allocation1 [shape = 'u32[72,128]{1,0:T(1,128)}', space=vmem, size = 0x9000, scoped, tag = 'internal scratch']
  %s0 = inlined_call_operand.hbm [shape: bf16[2,1024,128], index: 0, kind: input, shape index: {}]
  %s1 = inlined_call_operand.hbm [shape: bf16[1024,1024], index: 1, kind: input, shape index: {}]
  %s2 = inlined_call_operand.hbm [shape: bf16[128,512], index: 2, kind: input, shape index: {}]
  %s3 = inlined_call_operand.hbm [shape: f32[2,128,128], index: 3, kind: output, shape index: {}]
  %s4 = sld [smem:[#allocation0]]
  $region57: #{tpu_custom_call.1} parent=0
    _
  %s6 = ssub.s32 1, %s4
  %s7 = scalar_select 0, %s6, %s4
  $region1: #{tpu_custom_call.1} parent=0
    #allocation2 [shape = 'u8[524288]{0}', space=vmem, size = 0x80000, scoped, tag = 'input window, operand 0']
    #allocation3 [shape = 's32[2]{0}', space=sflag, size = 0x8, scoped, tag = 'scoped memory for tpu_custom_call.1']
    #allocation4 [shape = 's32[2]{0}', space=sflag, size = 0x8, scoped, tag = 'scoped memory for tpu_custom_call.1']
    #allocation5 [shape = 'u8[2097152]{0}', space=vmem, size = 0x200000, scoped, tag = 'input window, operand 1, single buffered']
    #allocation6 [shape = 's32[1]{0}', space=sflag, size = 0x4, scoped, tag = 'scoped memory for tpu_custom_call.1']
    #allocation7 [shape = 'u8[131072]{0}', space=vmem, size = 0x20000, scoped, tag = 'input window, operand 2, single buffered']
    #allocation8 [shape = 'u8[131072]{0}', space=vmem, size = 0x20000, scoped, tag = 'output window, operand 0']
    %8 = vsyncpa [#allocation3], 0
    %s9 = scalar_lea.sflag [#allocation3], 1
    %10 = vsyncpa %s9, 0
    %11 = vsyncpa [#allocation6], 0
    %12 = vsyncpa [#allocation4], 0
    %s13 = scalar_lea.sflag [#allocation4], 1
    %14 = vsyncpa %s13, 0
    loop: start=0, step=1, limit=4
    $region2: #{tpu_custom_call.1} parent=1 // loop_pre_header
      _
    $region3: #{tpu_custom_call.1} parent=1 // loop_header
      %s16 = sphi 0, %s20
      %p17 = scmp.ge.s32.totalorder %s16, 4
      %s23 = sphi 0, %s35
      %s24 = sphi 0, %s31
      %s25 = sphi 0, %s23
      %s26 = sphi 0, %s24
      %s27 = sphi 0, %s25
      %s28 = sphi 0, %s26
      %s40 = sphi 0, %s42
      %s43 = sphi 0, %s40
      %s44 = sphi 0, %s43
      %s60 = sphi 0, %s44
      %s64 = sphi 0, %s64
      %s66 = sphi 0, %s64
      %s67 = sphi 0, %s66
      %s81 = sphi 0, %s67
      %s85 = sphi 0, %s85
      %s87 = sphi 0, %s85
      %s88 = sphi 0, %s87
      %s102 = sphi 0, %s88
      %s110 = sphi 0, %s112
      %s113 = sphi 0, %s110
      %s114 = sphi 0, %s113
      %s130 = sphi 0, %s114
    $region4: #{tpu_custom_call.1} parent=1 // loop_header_branch
      %19 = sbr.rel (%p17) target = $region8
    $region5: #{tpu_custom_call.1} parent=1 // loop_body
      %s21 = ssub.s32 %s16, 1
      %s22 = ssub.s32 %s16, 2
      %s29 = sadd.s32 1, %s24
      %p30 = scmp.ge.s32.totalorder %s29, 1
      %s31 = scalar_select %p30, 0, %s29
      %s32 = sadd.s32 1, %s23
      %s33 = scalar_select %p30, %s32, %s23
      %p34 = scmp.ge.s32.totalorder %s33, 2
      %s35 = scalar_select %p34, 0, %s33
      %s36 = ssub.s32 %s23, %s35
      %s37 = ssub.s32 %s24, %s31
      %s38 = sor.u32 %s36, %s37
      %p39 = scmp.eq.s32.totalorder %s38, 0
      %s41 = sadd.s32 %s40, 1
      %s42 = scalar_select %p39, %s40, %s41
      %p45 = pneg %p39
      %p46 = scmp.eq.s32.totalorder %s16, 1
      %p47 = por %p45, %p46
      %p48 = scmp.ne.s32.totalorder %s40, %s43
      %p49 = scmp.eq.s32.totalorder %s16, 0
      %p50 = por %p48, %p49
      %p51 = scmp.ne.s32.totalorder %s40, %s43
      %p52 = scmp.eq.s32.totalorder %s21, 1
      %p53 = por %p51, %p52
      %p54 = scmp.ne.s32.totalorder %s43, %s44
      %p55 = scmp.eq.s32.totalorder %s21, 0
      %p56 = por %p54, %p55
      %p57 = scmp.ne.s32.totalorder %s43, %s44
      %p58 = scmp.eq.s32.totalorder %s22, 1
      %p59 = por %p57, %p58
      %p61 = scmp.ne.s32.totalorder %s44, %s60
      %p62 = scmp.eq.s32.totalorder %s22, 0
      %p63 = por %p61, %p62
      %s65 = sadd.s32 %s64, 1
      %p68 = scmp.eq.s32.totalorder %s16, 1
      %p69 = scmp.ne.s32.totalorder %s64, %s66
      %p70 = scmp.eq.s32.totalorder %s16, 0
      %p71 = por %p69, %p70
      %p72 = scmp.ne.s32.totalorder %s64, %s66
      %p73 = scmp.eq.s32.totalorder %s21, 1
      %p74 = por %p72, %p73
      %p75 = scmp.ne.s32.totalorder %s66, %s67
      %p76 = scmp.eq.s32.totalorder %s21, 0
      %p77 = por %p75, %p76
      %p78 = scmp.ne.s32.totalorder %s66, %s67
      %p79 = scmp.eq.s32.totalorder %s22, 1
      %p80 = por %p78, %p79
      %p82 = scmp.ne.s32.totalorder %s67, %s81
      %p83 = scmp.eq.s32.totalorder %s22, 0
      %p84 = por %p82, %p83
      %s86 = sadd.s32 %s85, 1
      %p89 = scmp.eq.s32.totalorder %s16, 1
      %p90 = scmp.ne.s32.totalorder %s85, %s87
      %p91 = scmp.eq.s32.totalorder %s16, 0
      %p92 = por %p90, %p91
      %p93 = scmp.ne.s32.totalorder %s85, %s87
      %p94 = scmp.eq.s32.totalorder %s21, 1
      %p95 = por %p93, %p94
      %p96 = scmp.ne.s32.totalorder %s87, %s88
      %p97 = scmp.eq.s32.totalorder %s21, 0
      %p98 = por %p96, %p97
      %p99 = scmp.ne.s32.totalorder %s87, %s88
      %p100 = scmp.eq.s32.totalorder %s22, 1
      %p101 = por %p99, %p100
      %p103 = scmp.ne.s32.totalorder %s88, %s102
      %p104 = scmp.eq.s32.totalorder %s22, 0
      %p105 = por %p103, %p104
      %s106 = ssub.s32 %s23, %s35
      %s107 = ssub.s32 %s24, %s31
      %s108 = sor.u32 %s106, %s107
      %p109 = scmp.eq.s32.totalorder %s108, 0
      %s111 = sadd.s32 %s110, 1
      %s112 = scalar_select %p109, %s110, %s111
      %p115 = pneg %p109
      %p116 = scmp.eq.s32.totalorder %s16, 1
      %p117 = por %p115, %p116
      %p118 = scmp.ne.s32.totalorder %s110, %s113
      %p119 = scmp.eq.s32.totalorder %s16, 0
      %p120 = por %p118, %p119
      %p121 = scmp.ne.s32.totalorder %s110, %s113
      %p122 = scmp.eq.s32.totalorder %s21, 1
      %p123 = por %p121, %p122
      %p124 = scmp.ne.s32.totalorder %s113, %s114
      %p125 = scmp.eq.s32.totalorder %s21, 0
      %p126 = por %p124, %p125
      %p127 = scmp.ne.s32.totalorder %s113, %s114
      %p128 = scmp.eq.s32.totalorder %s22, 1
      %p129 = por %p127, %p128
      %p131 = scmp.ne.s32.totalorder %s114, %s130
      %p132 = scmp.eq.s32.totalorder %s22, 0
      %p133 = por %p131, %p132
      %p134 = scmp.le.s32.totalorder 1, %s16
      %p135 = scmp.lt.s32.totalorder %s16, 3
      %p136 = pnand %p134, %p135
      %p137 = pneg %p136
      // Predicated region
      $region9: #{tpu_custom_call.1} parent=5 // pred_check
        _
      $region10: #{tpu_custom_call.1} parent=5 // pred_check_branch
        %139 = sbr.rel (%p136) target = $region12
      $region11: #{tpu_custom_call.1} parent=5 // pred_region
        %s140 = ssub.s32 %s16, 1
        // Predicated region
        $region13: #{tpu_custom_call.1} parent=11 // pred_check
          %p141 = pneg %p77
        $region14: #{tpu_custom_call.1} parent=11 // pred_check_branch
          %143 = sbr.rel (%p141) target = $region16
        $region15: #{tpu_custom_call.1} parent=11 // pred_region
          %145 = vsyncadd [#allocation6], 0
          %s146 = sshll.u32 %s1, 4
          %s147 = int_to_ptr.hbm [resolvable:$true] %s146
          %s148 = sshll.u32 [#allocation5], 4
          %s149 = int_to_ptr.vmem [resolvable:$true] %s148
          %154 = dma.hbm_to_vmem [thread:$0]  %s147, 65536, %s149, [#allocation6], 512, 512, 32
        $region16: #{tpu_custom_call.1} parent=11 // pred_fallthru
          _
        // Predicated region
        $region17: #{tpu_custom_call.1} parent=11 // pred_check
          %p155 = pneg %p98
        $region18: #{tpu_custom_call.1} parent=11 // pred_check_branch
          %157 = sbr.rel (%p155) target = $region20
        $region19: #{tpu_custom_call.1} parent=11 // pred_region
          %159 = vsyncadd [#allocation6], 0
          %s160 = sshll.u32 %s2, 4
          %s161 = int_to_ptr.hbm [resolvable:$true] %s160
          %s162 = sshll.u32 [#allocation7], 4
          %s163 = int_to_ptr.vmem [resolvable:$true] %s162
          %168 = dma.hbm_to_vmem [thread:$0]  %s161, 4096, %s163, [#allocation6], 256, 256, 16
        $region20: #{tpu_custom_call.1} parent=11 // pred_fallthru
          _
      $region12: #{tpu_custom_call.1} parent=5 // pred_fallthru
        _
      %p169 = scmp.lt.s32.totalorder %s16, 2
      // Predicated region
      $region21: #{tpu_custom_call.1} parent=5 // pred_check
        %p170 = pneg %p169
      $region22: #{tpu_custom_call.1} parent=5 // pred_check_branch
        %172 = sbr.rel (%p170) target = $region24
      $region23: #{tpu_custom_call.1} parent=5 // pred_region
        // Predicated region
        $region25: #{tpu_custom_call.1} parent=23 // pred_check
          %p173 = pneg %p50
        $region26: #{tpu_custom_call.1} parent=23 // pred_check_branch
          %175 = sbr.rel (%p173) target = $region28
        $region27: #{tpu_custom_call.1} parent=23 // pred_region
          %s176 = sand.u32 %s40, 1
          %s177 = scalar_lea.sflag [#allocation3], %s176
          %s178 = sand.u32 %s40, 1
          %s179 = smul.addr %s178, 512
          %s180 = scalar_lea.vmem [#allocation2], %s179
          %182 = vsyncadd %s177, 0
          %s183 = smul.addr %s23, 128
          %s184 = sadd.s32 %s24, %s183
          %s185 = smul.addr %s184, 4
          %s186 = scalar_lea.hbm %s0, %s185
          %s187 = sshll.u32 %s186, 4
          %s188 = int_to_ptr.hbm [resolvable:$true] %s187
          %s189 = sshll.u32 %s180, 4
          %s190 = int_to_ptr.vmem [resolvable:$true] %s189
          %195 = dma.hbm_to_vmem [thread:$0]  %s188, 8192, %s190, %s177, 64, 64, 4
        $region28: #{tpu_custom_call.1} parent=23 // pred_fallthru
          _
      $region24: #{tpu_custom_call.1} parent=5 // pred_fallthru
        _
      %p196 = scmp.le.s32.totalorder 1, %s16
      %p197 = scmp.lt.s32.totalorder %s16, 3
      %p198 = pnand %p196, %p197
      %p199 = pneg %p198
      // Predicated region
      $region29: #{tpu_custom_call.1} parent=5 // pred_check
        _
      $region30: #{tpu_custom_call.1} parent=5 // pred_check_branch
        %201 = sbr.rel (%p198) target = $region32
      $region31: #{tpu_custom_call.1} parent=5 // pred_region
        %s202 = ssub.s32 %s16, 1
        %s203 = sand.u32 %s43, 1
        %s204 = scalar_lea.sflag [#allocation3], %s203
        %s205 = sand.u32 %s43, 1
        %s206 = smul.addr %s205, 512
        %s207 = scalar_lea.vmem [#allocation2], %s206
        // Predicated region
        $region33: #{tpu_custom_call.1} parent=31 // pred_check
          %p208 = pneg %p56
        $region34: #{tpu_custom_call.1} parent=31 // pred_check_branch
          %210 = sbr.rel (%p208) target = $region36
        $region35: #{tpu_custom_call.1} parent=31 // pred_region
          %212 = dma.done %s204, 8192
        $region36: #{tpu_custom_call.1} parent=31 // pred_fallthru
          _
        // Predicated region
        $region37: #{tpu_custom_call.1} parent=31 // pred_check
          %p213 = pneg %p77
        $region38: #{tpu_custom_call.1} parent=31 // pred_check_branch
          %215 = sbr.rel (%p213) target = $region40
        $region39: #{tpu_custom_call.1} parent=31 // pred_region
          %217 = dma.done [#allocation6], 65536
        $region40: #{tpu_custom_call.1} parent=31 // pred_fallthru
          _
        // Predicated region
        $region41: #{tpu_custom_call.1} parent=31 // pred_check
          %p218 = pneg %p98
        $region42: #{tpu_custom_call.1} parent=31 // pred_check_branch
          %220 = sbr.rel (%p218) target = $region44
        $region43: #{tpu_custom_call.1} parent=31 // pred_region
          %222 = dma.done [#allocation6], 4096
        $region44: #{tpu_custom_call.1} parent=31 // pred_fallthru
          _
        %s223 = sand.u32 %s43, 1
        %s224 = scalar_lea.sflag [#allocation3], %s223
        %s225 = sand.u32 %s43, 1
        %s226 = smul.addr %s225, 512
        %s227 = scalar_lea.vmem [#allocation2], %s226
        %p228 = pneg %p56
        %p229 = pneg %p53
        %p230 = pneg %p77
        %p231 = pneg %p74
        %p232 = pneg %p98
        %p233 = pneg %p95
        %p234 = pneg %p126
        %p235 = pneg %p123
        %s236 = sand.u32 %s113, 1
        %s237 = scalar_lea.sflag [#allocation4], %s236
        %s238 = sand.u32 %s113, 1
        %s239 = smul.addr %s238, 128
        %s240 = scalar_lea.vmem [#allocation8], %s239
        %v241 = vld [vmem:[#allocation5] sm:$0xff]
        %v242 = vld [vmem:[#allocation5 + $0x8] sm:$0xff]
        %v243 = vld [vmem:[#allocation5 + $0x10] sm:$0xff]
        %v244 = vld [vmem:[#allocation5 + $0x18] sm:$0xff]
        %v245 = vld [vmem:[#allocation5 + $0x20] sm:$0xff]
        %v246 = vld [vmem:[#allocation5 + $0x28] sm:$0xff]
        %v247 = vld [vmem:[#allocation5 + $0x30] sm:$0xff]
        %v248 = vld [vmem:[#allocation5 + $0x38] sm:$0xff]
        %v249 = vld [vmem:[#allocation5 + $0x40] sm:$0xff]
        %v250 = vld [vmem:[#allocation5 + $0x48] sm:$0xff]
        %v251 = vld [vmem:[#allocation5 + $0x50] sm:$0xff]
        %v252 = vld [vmem:[#allocation5 + $0x58] sm:$0xff]
        %v253 = vld [vmem:[#allocation5 + $0x60] sm:$0xff]
        %v254 = vld [vmem:[#allocation5 + $0x68] sm:$0xff]
        %v255 = vld [vmem:[#allocation5 + $0x70] sm:$0xff]
        %v256 = vld [vmem:[#allocation5 + $0x78] sm:$0xff]
        %v257 = vld [vmem:[#allocation5 + $0x80] sm:$0xff]
        %v258 = vld [vmem:[#allocation5 + $0x88] sm:$0xff]
        %v259 = vld [vmem:[#allocation5 + $0x90] sm:$0xff]
        %v260 = vld [vmem:[#allocation5 + $0x98] sm:$0xff]
        %v261 = vld [vmem:[#allocation5 + $0xa0] sm:$0xff]
        %v262 = vld [vmem:[#allocation5 + $0xa8] sm:$0xff]
        %v263 = vld [vmem:[#allocation5 + $0xb0] sm:$0xff]
        %v264 = vld [vmem:[#allocation5 + $0xb8] sm:$0xff]
        %v265 = vld [vmem:[#allocation5 + $0xc0] sm:$0xff]
        %v266 = vld [vmem:[#allocation5 + $0xc8] sm:$0xff]
        %v267 = vld [vmem:[#allocation5 + $0xd0] sm:$0xff]
        %v268 = vld [vmem:[#allocation5 + $0xd8] sm:$0xff]
        %v269 = vld [vmem:[#allocation5 + $0xe0] sm:$0xff]
        %v270 = vld [vmem:[#allocation5 + $0xe8] sm:$0xff]
        %v271 = vld [vmem:[#allocation5 + $0xf0] sm:$0xff]
        %v272 = vld [vmem:[#allocation5 + $0xf8] sm:$0xff]
        %v273 = vld [vmem:[#allocation5 + $0x100] sm:$0xff]
        %v274 = vld [vmem:[#allocation5 + $0x108] sm:$0xff]
        %v275 = vld [vmem:[#allocation5 + $0x110] sm:$0xff]
        %v276 = vld [vmem:[#allocation5 + $0x118] sm:$0xff]
        %v277 = vld [vmem:[#allocation5 + $0x120] sm:$0xff]
        %v278 = vld [vmem:[#allocation5 + $0x128] sm:$0xff]
        %v279 = vld [vmem:[#allocation5 + $0x130] sm:$0xff]
        %v280 = vld [vmem:[#allocation5 + $0x138] sm:$0xff]
        %v281 = vld [vmem:[#allocation5 + $0x140] sm:$0xff]
        %v282 = vld [vmem:[#allocation5 + $0x148] sm:$0xff]
        %v283 = vld [vmem:[#allocation5 + $0x150] sm:$0xff]
        %v284 = vld [vmem:[#allocation5 + $0x158] sm:$0xff]
        %v285 = vld [vmem:[#allocation5 + $0x160] sm:$0xff]
        %v286 = vld [vmem:[#allocation5 + $0x168] sm:$0xff]
        %v287 = vld [vmem:[#allocation5 + $0x170] sm:$0xff]
        %v288 = vld [vmem:[#allocation5 + $0x178] sm:$0xff]
        %v289 = vld [vmem:[#allocation5 + $0x180] sm:$0xff]
        %v290 = vld [vmem:[#allocation5 + $0x188] sm:$0xff]
        %v291 = vld [vmem:[#allocation5 + $0x190] sm:$0xff]
        %v292 = vld [vmem:[#allocation5 + $0x198] sm:$0xff]
        %v293 = vld [vmem:[#allocation5 + $0x1a0] sm:$0xff]
        %v294 = vld [vmem:[#allocation5 + $0x1a8] sm:$0xff]
        %v295 = vld [vmem:[#allocation5 + $0x1b0] sm:$0xff]
        %v296 = vld [vmem:[#allocation5 + $0x1b8] sm:$0xff]
        %v297 = vld [vmem:[#allocation5 + $0x1c0] sm:$0xff]
        %v298 = vld [vmem:[#allocation5 + $0x1c8] sm:$0xff]
        %v299 = vld [vmem:[#allocation5 + $0x1d0] sm:$0xff]
        %v300 = vld [vmem:[#allocation5 + $0x1d8] sm:$0xff]
        %v301 = vld [vmem:[#allocation5 + $0x1e0] sm:$0xff]
        %v302 = vld [vmem:[#allocation5 + $0x1e8] sm:$0xff]
        %v303 = vld [vmem:[#allocation5 + $0x1f0] sm:$0xff]
        %v304 = vld [vmem:[#allocation5 + $0x1f8] sm:$0xff]
        %v305 = vld [vmem:[#allocation5 + $0x200] sm:$0xff]
        %v306 = vld [vmem:[#allocation5 + $0x208] sm:$0xff]
        %v307 = vld [vmem:[#allocation5 + $0x210] sm:$0xff]
        %v308 = vld [vmem:[#allocation5 + $0x218] sm:$0xff]
        %v309 = vld [vmem:[#allocation5 + $0x220] sm:$0xff]
        %v310 = vld [vmem:[#allocation5 + $0x228] sm:$0xff]
        %v311 = vld [vmem:[#allocation5 + $0x230] sm:$0xff]
        %v312 = vld [vmem:[#allocation5 + $0x238] sm:$0xff]
        %v313 = vld [vmem:[#allocation5 + $0x240] sm:$0xff]
        %v314 = vld [vmem:[#allocation5 + $0x248] sm:$0xff]
        %v315 = vld [vmem:[#allocation5 + $0x250] sm:$0xff]
        %v316 = vld [vmem:[#allocation5 + $0x258] sm:$0xff]
        %v317 = vld [vmem:[#allocation5 + $0x260] sm:$0xff]
        %v318 = vld [vmem:[#allocation5 + $0x268] sm:$0xff]
        %v319 = vld [vmem:[#allocation5 + $0x270] sm:$0xff]
        %v320 = vld [vmem:[#allocation5 + $0x278] sm:$0xff]
        %v321 = vld [vmem:[#allocation5 + $0x280] sm:$0xff]
        %v322 = vld [vmem:[#allocation5 + $0x288] sm:$0xff]
        %v323 = vld [vmem:[#allocation5 + $0x290] sm:$0xff]
        %v324 = vld [vmem:[#allocation5 + $0x298] sm:$0xff]
        %v325 = vld [vmem:[#allocation5 + $0x2a0] sm:$0xff]
        %v326 = vld [vmem:[#allocation5 + $0x2a8] sm:$0xff]
        %v327 = vld [vmem:[#allocation5 + $0x2b0] sm:$0xff]
        %v328 = vld [vmem:[#allocation5 + $0x2b8] sm:$0xff]
        %v329 = vld [vmem:[#allocation5 + $0x2c0] sm:$0xff]
        %v330 = vld [vmem:[#allocation5 + $0x2c8] sm:$0xff]
        %v331 = vld [vmem:[#allocation5 + $0x2d0] sm:$0xff]
        %v332 = vld [vmem:[#allocation5 + $0x2d8] sm:$0xff]
        %v333 = vld [vmem:[#allocation5 + $0x2e0] sm:$0xff]
        %v334 = vld [vmem:[#allocation5 + $0x2e8] sm:$0xff]
        %v335 = vld [vmem:[#allocation5 + $0x2f0] sm:$0xff]
        %v336 = vld [vmem:[#allocation5 + $0x2f8] sm:$0xff]
        %v337 = vld [vmem:[#allocation5 + $0x300] sm:$0xff]
        %v338 = vld [vmem:[#allocation5 + $0x308] sm:$0xff]
        %v339 = vld [vmem:[#allocation5 + $0x310] sm:$0xff]
        %v340 = vld [vmem:[#allocation5 + $0x318] sm:$0xff]
        %v341 = vld [vmem:[#allocation5 + $0x320] sm:$0xff]
        %v342 = vld [vmem:[#allocation5 + $0x328] sm:$0xff]
        %v343 = vld [vmem:[#allocation5 + $0x330] sm:$0xff]
        %v344 = vld [vmem:[#allocation5 + $0x338] sm:$0xff]
        %v345 = vld [vmem:[#allocation5 + $0x340] sm:$0xff]
        %v346 = vld [vmem:[#allocation5 + $0x348] sm:$0xff]
        %v347 = vld [vmem:[#allocation5 + $0x350] sm:$0xff]
        %v348 = vld [vmem:[#allocation5 + $0x358] sm:$0xff]
        %v349 = vld [vmem:[#allocation5 + $0x360] sm:$0xff]
        %v350 = vld [vmem:[#allocation5 + $0x368] sm:$0xff]
        %v351 = vld [vmem:[#allocation5 + $0x370] sm:$0xff]
        %v352 = vld [vmem:[#allocation5 + $0x378] sm:$0xff]
        %v353 = vld [vmem:[#allocation5 + $0x380] sm:$0xff]
        %v354 = vld [vmem:[#allocation5 + $0x388] sm:$0xff]
        %v355 = vld [vmem:[#allocation5 + $0x390] sm:$0xff]
        %v356 = vld [vmem:[#allocation5 + $0x398] sm:$0xff]
        %v357 = vld [vmem:[#allocation5 + $0x3a0] sm:$0xff]
        %v358 = vld [vmem:[#allocation5 + $0x3a8] sm:$0xff]
        %v359 = vld [vmem:[#allocation5 + $0x3b0] sm:$0xff]
        %v360 = vld [vmem:[#allocation5 + $0x3b8] sm:$0xff]
        %v361 = vld [vmem:[#allocation5 + $0x3c0] sm:$0xff]
        %v362 = vld [vmem:[#allocation5 + $0x3c8] sm:$0xff]
        %v363 = vld [vmem:[#allocation5 + $0x3d0] sm:$0xff]
        %v364 = vld [vmem:[#allocation5 + $0x3d8] sm:$0xff]
        %v365 = vld [vmem:[#allocation5 + $0x3e0] sm:$0xff]
        %v366 = vld [vmem:[#allocation5 + $0x3e8] sm:$0xff]
        %v367 = vld [vmem:[#allocation5 + $0x3f0] sm:$0xff]
        %v368 = vld [vmem:[#allocation5 + $0x3f8] sm:$0xff]
        %v369 = vld [vmem:[#allocation5 + $0x400] sm:$0xff]
        %v370 = vld [vmem:[#allocation5 + $0x408] sm:$0xff]
        %v371 = vld [vmem:[#allocation5 + $0x410] sm:$0xff]
        %v372 = vld [vmem:[#allocation5 + $0x418] sm:$0xff]
        %v373 = vld [vmem:[#allocation5 + $0x420] sm:$0xff]
        %v374 = vld [vmem:[#allocation5 + $0x428] sm:$0xff]
        %v375 = vld [vmem:[#allocation5 + $0x430] sm:$0xff]
        %v376 = vld [vmem:[#allocation5 + $0x438] sm:$0xff]
        %v377 = vld [vmem:[#allocation5 + $0x440] sm:$0xff]
        %v378 = vld [vmem:[#allocation5 + $0x448] sm:$0xff]
        %v379 = vld [vmem:[#allocation5 + $0x450] sm:$0xff]
        %v380 = vld [vmem:[#allocation5 + $0x458] sm:$0xff]
        %v381 = vld [vmem:[#allocation5 + $0x460] sm:$0xff]
        %v382 = vld [vmem:[#allocation5 + $0x468] sm:$0xff]
        %v383 = vld [vmem:[#allocation5 + $0x470] sm:$0xff]
        %v384 = vld [vmem:[#allocation5 + $0x478] sm:$0xff]
        %v385 = vld [vmem:[#allocation5 + $0x480] sm:$0xff]
        %v386 = vld [vmem:[#allocation5 + $0x488] sm:$0xff]
        %v387 = vld [vmem:[#allocation5 + $0x490] sm:$0xff]
        %v388 = vld [vmem:[#allocation5 + $0x498] sm:$0xff]
        %v389 = vld [vmem:[#allocation5 + $0x4a0] sm:$0xff]
        %v390 = vld [vmem:[#allocation5 + $0x4a8] sm:$0xff]
        %v391 = vld [vmem:[#allocation5 + $0x4b0] sm:$0xff]
        %v392 = vld [vmem:[#allocation5 + $0x4b8] sm:$0xff]
        %v393 = vld [vmem:[#allocation5 + $0x4c0] sm:$0xff]
        %v394 = vld [vmem:[#allocation5 + $0x4c8] sm:$0xff]
        %v395 = vld [vmem:[#allocation5 + $0x4d0] sm:$0xff]
        %v396 = vld [vmem:[#allocation5 + $0x4d8] sm:$0xff]
        %v397 = vld [vmem:[#allocation5 + $0x4e0] sm:$0xff]
        %v398 = vld [vmem:[#allocation5 + $0x4e8] sm:$0xff]
        %v399 = vld [vmem:[#allocation5 + $0x4f0] sm:$0xff]
        %v400 = vld [vmem:[#allocation5 + $0x4f8] sm:$0xff]
        %v401 = vld [vmem:[#allocation5 + $0x500] sm:$0xff]
        %v402 = vld [vmem:[#allocation5 + $0x508] sm:$0xff]
        %v403 = vld [vmem:[#allocation5 + $0x510] sm:$0xff]
        %v404 = vld [vmem:[#allocation5 + $0x518] sm:$0xff]
        %v405 = vld [vmem:[#allocation5 + $0x520] sm:$0xff]
        %v406 = vld [vmem:[#allocation5 + $0x528] sm:$0xff]
        %v407 = vld [vmem:[#allocation5 + $0x530] sm:$0xff]
        %v408 = vld [vmem:[#allocation5 + $0x538] sm:$0xff]
        %v409 = vld [vmem:[#allocation5 + $0x540] sm:$0xff]
        %v410 = vld [vmem:[#allocation5 + $0x548] sm:$0xff]
        %v411 = vld [vmem:[#allocation5 + $0x550] sm:$0xff]
        %v412 = vld [vmem:[#allocation5 + $0x558] sm:$0xff]
        %v413 = vld [vmem:[#allocation5 + $0x560] sm:$0xff]
        %v414 = vld [vmem:[#allocation5 + $0x568] sm:$0xff]
        %v415 = vld [vmem:[#allocation5 + $0x570] sm:$0xff]
        %v416 = vld [vmem:[#allocation5 + $0x578] sm:$0xff]
        %v417 = vld [vmem:[#allocation5 + $0x580] sm:$0xff]
        %v418 = vld [vmem:[#allocation5 + $0x588] sm:$0xff]
        %v419 = vld [vmem:[#allocation5 + $0x590] sm:$0xff]
        %v420 = vld [vmem:[#allocation5 + $0x598] sm:$0xff]
        %v421 = vld [vmem:[#allocation5 + $0x5a0] sm:$0xff]
        %v422 = vld [vmem:[#allocation5 + $0x5a8] sm:$0xff]
        %v423 = vld [vmem:[#allocation5 + $0x5b0] sm:$0xff]
        %v424 = vld [vmem:[#allocation5 + $0x5b8] sm:$0xff]
        %v425 = vld [vmem:[#allocation5 + $0x5c0] sm:$0xff]
        %v426 = vld [vmem:[#allocation5 + $0x5c8] sm:$0xff]
        %v427 = vld [vmem:[#allocation5 + $0x5d0] sm:$0xff]
        %v428 = vld [vmem:[#allocation5 + $0x5d8] sm:$0xff]
        %v429 = vld [vmem:[#allocation5 + $0x5e0] sm:$0xff]
        %v430 = vld [vmem:[#allocation5 + $0x5e8] sm:$0xff]
        %v431 = vld [vmem:[#allocation5 + $0x5f0] sm:$0xff]
        %v432 = vld [vmem:[#allocation5 + $0x5f8] sm:$0xff]
        %v433 = vld [vmem:[#allocation5 + $0x600] sm:$0xff]
        %v434 = vld [vmem:[#allocation5 + $0x608] sm:$0xff]
        %v435 = vld [vmem:[#allocation5 + $0x610] sm:$0xff]
        %v436 = vld [vmem:[#allocation5 + $0x618] sm:$0xff]
        %v437 = vld [vmem:[#allocation5 + $0x620] sm:$0xff]
        %v438 = vld [vmem:[#allocation5 + $0x628] sm:$0xff]
        %v439 = vld [vmem:[#allocation5 + $0x630] sm:$0xff]
        %v440 = vld [vmem:[#allocation5 + $0x638] sm:$0xff]
        %v441 = vld [vmem:[#allocation5 + $0x640] sm:$0xff]
        %v442 = vld [vmem:[#allocation5 + $0x648] sm:$0xff]
        %v443 = vld [vmem:[#allocation5 + $0x650] sm:$0xff]
        %v444 = vld [vmem:[#allocation5 + $0x658] sm:$0xff]
        %v445 = vld [vmem:[#allocation5 + $0x660] sm:$0xff]
        %v446 = vld [vmem:[#allocation5 + $0x668] sm:$0xff]
        %v447 = vld [vmem:[#allocation5 + $0x670] sm:$0xff]
        %v448 = vld [vmem:[#allocation5 + $0x678] sm:$0xff]
        %v449 = vld [vmem:[#allocation5 + $0x680] sm:$0xff]
        %v450 = vld [vmem:[#allocation5 + $0x688] sm:$0xff]
        %v451 = vld [vmem:[#allocation5 + $0x690] sm:$0xff]
        %v452 = vld [vmem:[#allocation5 + $0x698] sm:$0xff]
        %v453 = vld [vmem:[#allocation5 + $0x6a0] sm:$0xff]
        %v454 = vld [vmem:[#allocation5 + $0x6a8] sm:$0xff]
        %v455 = vld [vmem:[#allocation5 + $0x6b0] sm:$0xff]
        %v456 = vld [vmem:[#allocation5 + $0x6b8] sm:$0xff]
        %v457 = vld [vmem:[#allocation5 + $0x6c0] sm:$0xff]
        %v458 = vld [vmem:[#allocation5 + $0x6c8] sm:$0xff]
        %v459 = vld [vmem:[#allocation5 + $0x6d0] sm:$0xff]
        %v460 = vld [vmem:[#allocation5 + $0x6d8] sm:$0xff]
        %v461 = vld [vmem:[#allocation5 + $0x6e0] sm:$0xff]
        %v462 = vld [vmem:[#allocation5 + $0x6e8] sm:$0xff]
        %v463 = vld [vmem:[#allocation5 + $0x6f0] sm:$0xff]
        %v464 = vld [vmem:[#allocation5 + $0x6f8] sm:$0xff]
        %v465 = vld [vmem:[#allocation5 + $0x700] sm:$0xff]
        %v466 = vld [vmem:[#allocation5 + $0x708] sm:$0xff]
        %v467 = vld [vmem:[#allocation5 + $0x710] sm:$0xff]
        %v468 = vld [vmem:[#allocation5 + $0x718] sm:$0xff]
        %v469 = vld [vmem:[#allocation5 + $0x720] sm:$0xff]
        %v470 = vld [vmem:[#allocation5 + $0x728] sm:$0xff]
        %v471 = vld [vmem:[#allocation5 + $0x730] sm:$0xff]
        %v472 = vld [vmem:[#allocation5 + $0x738] sm:$0xff]
        %v473 = vld [vmem:[#allocation5 + $0x740] sm:$0xff]
        %v474 = vld [vmem:[#allocation5 + $0x748] sm:$0xff]
        %v475 = vld [vmem:[#allocation5 + $0x750] sm:$0xff]
        %v476 = vld [vmem:[#allocation5 + $0x758] sm:$0xff]
        %v477 = vld [vmem:[#allocation5 + $0x760] sm:$0xff]
        %v478 = vld [vmem:[#allocation5 + $0x768] sm:$0xff]
        %v479 = vld [vmem:[#allocation5 + $0x770] sm:$0xff]
        %v480 = vld [vmem:[#allocation5 + $0x778] sm:$0xff]
        %v481 = vld [vmem:[#allocation5 + $0x780] sm:$0xff]
        %v482 = vld [vmem:[#allocation5 + $0x788] sm:$0xff]
        %v483 = vld [vmem:[#allocation5 + $0x790] sm:$0xff]
        %v484 = vld [vmem:[#allocation5 + $0x798] sm:$0xff]
        %v485 = vld [vmem:[#allocation5 + $0x7a0] sm:$0xff]
        %v486 = vld [vmem:[#allocation5 + $0x7a8] sm:$0xff]
        %v487 = vld [vmem:[#allocation5 + $0x7b0] sm:$0xff]
        %v488 = vld [vmem:[#allocation5 + $0x7b8] sm:$0xff]
        %v489 = vld [vmem:[#allocation5 + $0x7c0] sm:$0xff]
        %v490 = vld [vmem:[#allocation5 + $0x7c8] sm:$0xff]
        %v491 = vld [vmem:[#allocation5 + $0x7d0] sm:$0xff]
        %v492 = vld [vmem:[#allocation5 + $0x7d8] sm:$0xff]
        %v493 = vld [vmem:[#allocation5 + $0x7e0] sm:$0xff]
        %v494 = vld [vmem:[#allocation5 + $0x7e8] sm:$0xff]
        %v495 = vld [vmem:[#allocation5 + $0x7f0] sm:$0xff]
        %v496 = vld [vmem:[#allocation5 + $0x7f8] sm:$0xff]
        %v497 = vld [vmem:[#allocation5 + $0x800] sm:$0xff]
        %v498 = vld [vmem:[#allocation5 + $0x808] sm:$0xff]
        %v499 = vld [vmem:[#allocation5 + $0x810] sm:$0xff]
        %v500 = vld [vmem:[#allocation5 + $0x818] sm:$0xff]
        %v501 = vld [vmem:[#allocation5 + $0x820] sm:$0xff]
        %v502 = vld [vmem:[#allocation5 + $0x828] sm:$0xff]
        %v503 = vld [vmem:[#allocation5 + $0x830] sm:$0xff]
        %v504 = vld [vmem:[#allocation5 + $0x838] sm:$0xff]
        %v505 = vld [vmem:[#allocation5 + $0x840] sm:$0xff]
        %v506 = vld [vmem:[#allocation5 + $0x848] sm:$0xff]
        %v507 = vld [vmem:[#allocation5 + $0x850] sm:$0xff]
        %v508 = vld [vmem:[#allocation5 + $0x858] sm:$0xff]
        %v509 = vld [vmem:[#allocation5 + $0x860] sm:$0xff]
        %v510 = vld [vmem:[#allocation5 + $0x868] sm:$0xff]
        %v511 = vld [vmem:[#allocation5 + $0x870] sm:$0xff]
        %v512 = vld [vmem:[#allocation5 + $0x878] sm:$0xff]
        %v513 = vld [vmem:[#allocation5 + $0x880] sm:$0xff]
        %v514 = vld [vmem:[#allocation5 + $0x888] sm:$0xff]
        %v515 = vld [vmem:[#allocation5 + $0x890] sm:$0xff]
        %v516 = vld [vmem:[#allocation5 + $0x898] sm:$0xff]
        %v517 = vld [vmem:[#allocation5 + $0x8a0] sm:$0xff]
        %v518 = vld [vmem:[#allocation5 + $0x8a8] sm:$0xff]
        %v519 = vld [vmem:[#allocation5 + $0x8b0] sm:$0xff]
        %v520 = vld [vmem:[#allocation5 + $0x8b8] sm:$0xff]
        %v521 = vld [vmem:[#allocation5 + $0x8c0] sm:$0xff]
        %v522 = vld [vmem:[#allocation5 + $0x8c8] sm:$0xff]
        %v523 = vld [vmem:[#allocation5 + $0x8d0] sm:$0xff]
        %v524 = vld [vmem:[#allocation5 + $0x8d8] sm:$0xff]
        %v525 = vld [vmem:[#allocation5 + $0x8e0] sm:$0xff]
        %v526 = vld [vmem:[#allocation5 + $0x8e8] sm:$0xff]
        %v527 = vld [vmem:[#allocation5 + $0x8f0] sm:$0xff]
        %v528 = vld [vmem:[#allocation5 + $0x8f8] sm:$0xff]
        %v529 = vld [vmem:[#allocation5 + $0x900] sm:$0xff]
        %v530 = vld [vmem:[#allocation5 + $0x908] sm:$0xff]
        %v531 = vld [vmem:[#allocation5 + $0x910] sm:$0xff]
        %v532 = vld [vmem:[#allocation5 + $0x918] sm:$0xff]
        %v533 = vld [vmem:[#allocation5 + $0x920] sm:$0xff]
        %v534 = vld [vmem:[#allocation5 + $0x928] sm:$0xff]
        %v535 = vld [vmem:[#allocation5 + $0x930] sm:$0xff]
        %v536 = vld [vmem:[#allocation5 + $0x938] sm:$0xff]
        %v537 = vld [vmem:[#allocation5 + $0x940] sm:$0xff]
        %v538 = vld [vmem:[#allocation5 + $0x948] sm:$0xff]
        %v539 = vld [vmem:[#allocation5 + $0x950] sm:$0xff]
        %v540 = vld [vmem:[#allocation5 + $0x958] sm:$0xff]
        %v541 = vld [vmem:[#allocation5 + $0x960] sm:$0xff]
        %v542 = vld [vmem:[#allocation5 + $0x968] sm:$0xff]
        %v543 = vld [vmem:[#allocation5 + $0x970] sm:$0xff]
        %v544 = vld [vmem:[#allocation5 + $0x978] sm:$0xff]
        %v545 = vld [vmem:[#allocation5 + $0x980] sm:$0xff]
        %v546 = vld [vmem:[#allocation5 + $0x988] sm:$0xff]
        %v547 = vld [vmem:[#allocation5 + $0x990] sm:$0xff]
        %v548 = vld [vmem:[#allocation5 + $0x998] sm:$0xff]
        %v549 = vld [vmem:[#allocation5 + $0x9a0] sm:$0xff]
        %v550 = vld [vmem:[#allocation5 + $0x9a8] sm:$0xff]
        %v551 = vld [vmem:[#allocation5 + $0x9b0] sm:$0xff]
        %v552 = vld [vmem:[#allocation5 + $0x9b8] sm:$0xff]
        %v553 = vld [vmem:[#allocation5 + $0x9c0] sm:$0xff]
        %v554 = vld [vmem:[#allocation5 + $0x9c8] sm:$0xff]
        %v555 = vld [vmem:[#allocation5 + $0x9d0] sm:$0xff]
        %v556 = vld [vmem:[#allocation5 + $0x9d8] sm:$0xff]
        %v557 = vld [vmem:[#allocation5 + $0x9e0] sm:$0xff]
        %v558 = vld [vmem:[#allocation5 + $0x9e8] sm:$0xff]
        %v559 = vld [vmem:[#allocation5 + $0x9f0] sm:$0xff]
        %v560 = vld [vmem:[#allocation5 + $0x9f8] sm:$0xff]
        %v561 = vld [vmem:[#allocation5 + $0xa00] sm:$0xff]
        %v562 = vld [vmem:[#allocation5 + $0xa08] sm:$0xff]
        %v563 = vld [vmem:[#allocation5 + $0xa10] sm:$0xff]
        %v564 = vld [vmem:[#allocation5 + $0xa18] sm:$0xff]
        %v565 = vld [vmem:[#allocation5 + $0xa20] sm:$0xff]
        %v566 = vld [vmem:[#allocation5 + $0xa28] sm:$0xff]
        %v567 = vld [vmem:[#allocation5 + $0xa30] sm:$0xff]
        %v568 = vld [vmem:[#allocation5 + $0xa38] sm:$0xff]
        %v569 = vld [vmem:[#allocation5 + $0xa40] sm:$0xff]
        %v570 = vld [vmem:[#allocation5 + $0xa48] sm:$0xff]
        %v571 = vld [vmem:[#allocation5 + $0xa50] sm:$0xff]
        %v572 = vld [vmem:[#allocation5 + $0xa58] sm:$0xff]
        %v573 = vld [vmem:[#allocation5 + $0xa60] sm:$0xff]
        %v574 = vld [vmem:[#allocation5 + $0xa68] sm:$0xff]
        %v575 = vld [vmem:[#allocation5 + $0xa70] sm:$0xff]
        %v576 = vld [vmem:[#allocation5 + $0xa78] sm:$0xff]
        %v577 = vld [vmem:[#allocation5 + $0xa80] sm:$0xff]
        %v578 = vld [vmem:[#allocation5 + $0xa88] sm:$0xff]
        %v579 = vld [vmem:[#allocation5 + $0xa90] sm:$0xff]
        %v580 = vld [vmem:[#allocation5 + $0xa98] sm:$0xff]
        %v581 = vld [vmem:[#allocation5 + $0xaa0] sm:$0xff]
        %v582 = vld [vmem:[#allocation5 + $0xaa8] sm:$0xff]
        %v583 = vld [vmem:[#allocation5 + $0xab0] sm:$0xff]
        %v584 = vld [vmem:[#allocation5 + $0xab8] sm:$0xff]
        %v585 = vld [vmem:[#allocation5 + $0xac0] sm:$0xff]
        %v586 = vld [vmem:[#allocation5 + $0xac8] sm:$0xff]
        %v587 = vld [vmem:[#allocation5 + $0xad0] sm:$0xff]
        %v588 = vld [vmem:[#allocation5 + $0xad8] sm:$0xff]
        %v589 = vld [vmem:[#allocation5 + $0xae0] sm:$0xff]
        %v590 = vld [vmem:[#allocation5 + $0xae8] sm:$0xff]
        %v591 = vld [vmem:[#allocation5 + $0xaf0] sm:$0xff]
        %v592 = vld [vmem:[#allocation5 + $0xaf8] sm:$0xff]
        %v593 = vld [vmem:[#allocation5 + $0xb00] sm:$0xff]
        %v594 = vld [vmem:[#allocation5 + $0xb08] sm:$0xff]
        %v595 = vld [vmem:[#allocation5 + $0xb10] sm:$0xff]
        %v596 = vld [vmem:[#allocation5 + $0xb18] sm:$0xff]
        %v597 = vld [vmem:[#allocation5 + $0xb20] sm:$0xff]
        %v598 = vld [vmem:[#allocation5 + $0xb28] sm:$0xff]
        %v599 = vld [vmem:[#allocation5 + $0xb30] sm:$0xff]
        %v600 = vld [vmem:[#allocation5 + $0xb38] sm:$0xff]
        %v601 = vld [vmem:[#allocation5 + $0xb40] sm:$0xff]
        %v602 = vld [vmem:[#allocation5 + $0xb48] sm:$0xff]
        %v603 = vld [vmem:[#allocation5 + $0xb50] sm:$0xff]
        %v604 = vld [vmem:[#allocation5 + $0xb58] sm:$0xff]
        %v605 = vld [vmem:[#allocation5 + $0xb60] sm:$0xff]
        %v606 = vld [vmem:[#allocation5 + $0xb68] sm:$0xff]
        %v607 = vld [vmem:[#allocation5 + $0xb70] sm:$0xff]
        %v608 = vld [vmem:[#allocation5 + $0xb78] sm:$0xff]
        %v609 = vld [vmem:[#allocation5 + $0xb80] sm:$0xff]
        %v610 = vld [vmem:[#allocation5 + $0xb88] sm:$0xff]
        %v611 = vld [vmem:[#allocation5 + $0xb90] sm:$0xff]
        %v612 = vld [vmem:[#allocation5 + $0xb98] sm:$0xff]
        %v613 = vld [vmem:[#allocation5 + $0xba0] sm:$0xff]
        %v614 = vld [vmem:[#allocation5 + $0xba8] sm:$0xff]
        %v615 = vld [vmem:[#allocation5 + $0xbb0] sm:$0xff]
        %v616 = vld [vmem:[#allocation5 + $0xbb8] sm:$0xff]
        %v617 = vld [vmem:[#allocation5 + $0xbc0] sm:$0xff]
        %v618 = vld [vmem:[#allocation5 + $0xbc8] sm:$0xff]
        %v619 = vld [vmem:[#allocation5 + $0xbd0] sm:$0xff]
        %v620 = vld [vmem:[#allocation5 + $0xbd8] sm:$0xff]
        %v621 = vld [vmem:[#allocation5 + $0xbe0] sm:$0xff]
        %v622 = vld [vmem:[#allocation5 + $0xbe8] sm:$0xff]
        %v623 = vld [vmem:[#allocation5 + $0xbf0] sm:$0xff]
        %v624 = vld [vmem:[#allocation5 + $0xbf8] sm:$0xff]
        %v625 = vld [vmem:[#allocation5 + $0xc00] sm:$0xff]
        %v626 = vld [vmem:[#allocation5 + $0xc08] sm:$0xff]
        %v627 = vld [vmem:[#allocation5 + $0xc10] sm:$0xff]
        %v628 = vld [vmem:[#allocation5 + $0xc18] sm:$0xff]
        %v629 = vld [vmem:[#allocation5 + $0xc20] sm:$0xff]
        %v630 = vld [vmem:[#allocation5 + $0xc28] sm:$0xff]
        %v631 = vld [vmem:[#allocation5 + $0xc30] sm:$0xff]
        %v632 = vld [vmem:[#allocation5 + $0xc38] sm:$0xff]
        %v633 = vld [vmem:[#allocation5 + $0xc40] sm:$0xff]
        %v634 = vld [vmem:[#allocation5 + $0xc48] sm:$0xff]
        %v635 = vld [vmem:[#allocation5 + $0xc50] sm:$0xff]
        %v636 = vld [vmem:[#allocation5 + $0xc58] sm:$0xff]
        %v637 = vld [vmem:[#allocation5 + $0xc60] sm:$0xff]
        %v638 = vld [vmem:[#allocation5 + $0xc68] sm:$0xff]
        %v639 = vld [vmem:[#allocation5 + $0xc70] sm:$0xff]
        %v640 = vld [vmem:[#allocation5 + $0xc78] sm:$0xff]
        %v641 = vld [vmem:[#allocation5 + $0xc80] sm:$0xff]
        %v642 = vld [vmem:[#allocation5 + $0xc88] sm:$0xff]
        %v643 = vld [vmem:[#allocation5 + $0xc90] sm:$0xff]
        %v644 = vld [vmem:[#allocation5 + $0xc98] sm:$0xff]
        %v645 = vld [vmem:[#allocation5 + $0xca0] sm:$0xff]
        %v646 = vld [vmem:[#allocation5 + $0xca8] sm:$0xff]
        %v647 = vld [vmem:[#allocation5 + $0xcb0] sm:$0xff]
        %v648 = vld [vmem:[#allocation5 + $0xcb8] sm:$0xff]
        %v649 = vld [vmem:[#allocation5 + $0xcc0] sm:$0xff]
        %v650 = vld [vmem:[#allocation5 + $0xcc8] sm:$0xff]
        %v651 = vld [vmem:[#allocation5 + $0xcd0] sm:$0xff]
        %v652 = vld [vmem:[#allocation5 + $0xcd8] sm:$0xff]
        %v653 = vld [vmem:[#allocation5 + $0xce0] sm:$0xff]
        %v654 = vld [vmem:[#allocation5 + $0xce8] sm:$0xff]
        %v655 = vld [vmem:[#allocation5 + $0xcf0] sm:$0xff]
        %v656 = vld [vmem:[#allocation5 + $0xcf8] sm:$0xff]
        %v657 = vld [vmem:[#allocation5 + $0xd00] sm:$0xff]
        %v658 = vld [vmem:[#allocation5 + $0xd08] sm:$0xff]
        %v659 = vld [vmem:[#allocation5 + $0xd10] sm:$0xff]
        %v660 = vld [vmem:[#allocation5 + $0xd18] sm:$0xff]
        %v661 = vld [vmem:[#allocation5 + $0xd20] sm:$0xff]
        %v662 = vld [vmem:[#allocation5 + $0xd28] sm:$0xff]
        %v663 = vld [vmem:[#allocation5 + $0xd30] sm:$0xff]
        %v664 = vld [vmem:[#allocation5 + $0xd38] sm:$0xff]
        %v665 = vld [vmem:[#allocation5 + $0xd40] sm:$0xff]
        %v666 = vld [vmem:[#allocation5 + $0xd48] sm:$0xff]
        %v667 = vld [vmem:[#allocation5 + $0xd50] sm:$0xff]
        %v668 = vld [vmem:[#allocation5 + $0xd58] sm:$0xff]
        %v669 = vld [vmem:[#allocation5 + $0xd60] sm:$0xff]
        %v670 = vld [vmem:[#allocation5 + $0xd68] sm:$0xff]
        %v671 = vld [vmem:[#allocation5 + $0xd70] sm:$0xff]
        %v672 = vld [vmem:[#allocation5 + $0xd78] sm:$0xff]
        %v673 = vld [vmem:[#allocation5 + $0xd80] sm:$0xff]
        %v674 = vld [vmem:[#allocation5 + $0xd88] sm:$0xff]
        %v675 = vld [vmem:[#allocation5 + $0xd90] sm:$0xff]
        %v676 = vld [vmem:[#allocation5 + $0xd98] sm:$0xff]
        %v677 = vld [vmem:[#allocation5 + $0xda0] sm:$0xff]
        %v678 = vld [vmem:[#allocation5 + $0xda8] sm:$0xff]
        %v679 = vld [vmem:[#allocation5 + $0xdb0] sm:$0xff]
        %v680 = vld [vmem:[#allocation5 + $0xdb8] sm:$0xff]
        %v681 = vld [vmem:[#allocation5 + $0xdc0] sm:$0xff]
        %v682 = vld [vmem:[#allocation5 + $0xdc8] sm:$0xff]
        %v683 = vld [vmem:[#allocation5 + $0xdd0] sm:$0xff]
        %v684 = vld [vmem:[#allocation5 + $0xdd8] sm:$0xff]
        %v685 = vld [vmem:[#allocation5 + $0xde0] sm:$0xff]
        %v686 = vld [vmem:[#allocation5 + $0xde8] sm:$0xff]
        %v687 = vld [vmem:[#allocation5 + $0xdf0] sm:$0xff]
        %v688 = vld [vmem:[#allocation5 + $0xdf8] sm:$0xff]
        %v689 = vld [vmem:[#allocation5 + $0xe00] sm:$0xff]
        %v690 = vld [vmem:[#allocation5 + $0xe08] sm:$0xff]
        %v691 = vld [vmem:[#allocation5 + $0xe10] sm:$0xff]
        %v692 = vld [vmem:[#allocation5 + $0xe18] sm:$0xff]
        %v693 = vld [vmem:[#allocation5 + $0xe20] sm:$0xff]
        %v694 = vld [vmem:[#allocation5 + $0xe28] sm:$0xff]
        %v695 = vld [vmem:[#allocation5 + $0xe30] sm:$0xff]
        %v696 = vld [vmem:[#allocation5 + $0xe38] sm:$0xff]
        %v697 = vld [vmem:[#allocation5 + $0xe40] sm:$0xff]
        %v698 = vld [vmem:[#allocation5 + $0xe48] sm:$0xff]
        %v699 = vld [vmem:[#allocation5 + $0xe50] sm:$0xff]
        %v700 = vld [vmem:[#allocation5 + $0xe58] sm:$0xff]
        %v701 = vld [vmem:[#allocation5 + $0xe60] sm:$0xff]
        %v702 = vld [vmem:[#allocation5 + $0xe68] sm:$0xff]
        %v703 = vld [vmem:[#allocation5 + $0xe70] sm:$0xff]
        %v704 = vld [vmem:[#allocation5 + $0xe78] sm:$0xff]
        %v705 = vld [vmem:[#allocation5 + $0xe80] sm:$0xff]
        %v706 = vld [vmem:[#allocation5 + $0xe88] sm:$0xff]
        %v707 = vld [vmem:[#allocation5 + $0xe90] sm:$0xff]
        %v708 = vld [vmem:[#allocation5 + $0xe98] sm:$0xff]
        %v709 = vld [vmem:[#allocation5 + $0xea0] sm:$0xff]
        %v710 = vld [vmem:[#allocation5 + $0xea8] sm:$0xff]
        %v711 = vld [vmem:[#allocation5 + $0xeb0] sm:$0xff]
        %v712 = vld [vmem:[#allocation5 + $0xeb8] sm:$0xff]
        %v713 = vld [vmem:[#allocation5 + $0xec0] sm:$0xff]
        %v714 = vld [vmem:[#allocation5 + $0xec8] sm:$0xff]
        %v715 = vld [vmem:[#allocation5 + $0xed0] sm:$0xff]
        %v716 = vld [vmem:[#allocation5 + $0xed8] sm:$0xff]
        %v717 = vld [vmem:[#allocation5 + $0xee0] sm:$0xff]
        %v718 = vld [vmem:[#allocation5 + $0xee8] sm:$0xff]
        %v719 = vld [vmem:[#allocation5 + $0xef0] sm:$0xff]
        %v720 = vld [vmem:[#allocation5 + $0xef8] sm:$0xff]
        %v721 = vld [vmem:[#allocation5 + $0xf00] sm:$0xff]
        %v722 = vld [vmem:[#allocation5 + $0xf08] sm:$0xff]
        %v723 = vld [vmem:[#allocation5 + $0xf10] sm:$0xff]
        %v724 = vld [vmem:[#allocation5 + $0xf18] sm:$0xff]
        %v725 = vld [vmem:[#allocation5 + $0xf20] sm:$0xff]
        %v726 = vld [vmem:[#allocation5 + $0xf28] sm:$0xff]
        %v727 = vld [vmem:[#allocation5 + $0xf30] sm:$0xff]
        %v728 = vld [vmem:[#allocation5 + $0xf38] sm:$0xff]
        %v729 = vld [vmem:[#allocation5 + $0xf40] sm:$0xff]
        %v730 = vld [vmem:[#allocation5 + $0xf48] sm:$0xff]
        %v731 = vld [vmem:[#allocation5 + $0xf50] sm:$0xff]
        %v732 = vld [vmem:[#allocation5 + $0xf58] sm:$0xff]
        %v733 = vld [vmem:[#allocation5 + $0xf60] sm:$0xff]
        %v734 = vld [vmem:[#allocation5 + $0xf68] sm:$0xff]
        %v735 = vld [vmem:[#allocation5 + $0xf70] sm:$0xff]
        %v736 = vld [vmem:[#allocation5 + $0xf78] sm:$0xff]
        %v737 = vld [vmem:[#allocation5 + $0xf80] sm:$0xff]
        %v738 = vld [vmem:[#allocation5 + $0xf88] sm:$0xff]
        %v739 = vld [vmem:[#allocation5 + $0xf90] sm:$0xff]
        %v740 = vld [vmem:[#allocation5 + $0xf98] sm:$0xff]
        %v741 = vld [vmem:[#allocation5 + $0xfa0] sm:$0xff]
        %v742 = vld [vmem:[#allocation5 + $0xfa8] sm:$0xff]
        %v743 = vld [vmem:[#allocation5 + $0xfb0] sm:$0xff]
        %v744 = vld [vmem:[#allocation5 + $0xfb8] sm:$0xff]
        %v745 = vld [vmem:[#allocation5 + $0xfc0] sm:$0xff]
        %v746 = vld [vmem:[#allocation5 + $0xfc8] sm:$0xff]
        %v747 = vld [vmem:[#allocation5 + $0xfd0] sm:$0xff]
        %v748 = vld [vmem:[#allocation5 + $0xfd8] sm:$0xff]
        %v749 = vld [vmem:[#allocation5 + $0xfe0] sm:$0xff]
        %v750 = vld [vmem:[#allocation5 + $0xfe8] sm:$0xff]
        %v751 = vld [vmem:[#allocation5 + $0xff0] sm:$0xff]
        %v752 = vld [vmem:[#allocation5 + $0xff8] sm:$0xff]
        %v753 = vld [vmem:[%s207] sm:$0xf]
        %v754 = vld [vmem:[%s207 + $0x4] sm:$0xf]
        %v755 = vld [vmem:[%s207 + $0x8] sm:$0xf]
        %v756 = vld [vmem:[%s207 + $0xc] sm:$0xf]
        %v757 = vld [vmem:[%s207 + $0x10] sm:$0xf]
        %v758 = vld [vmem:[%s207 + $0x14] sm:$0xf]
        %v759 = vld [vmem:[%s207 + $0x18] sm:$0xf]
        %v760 = vld [vmem:[%s207 + $0x1c] sm:$0xf]
        %v761 = vld [vmem:[%s207 + $0x20] sm:$0xf]
        %v762 = vld [vmem:[%s207 + $0x24] sm:$0xf]
        %v763 = vld [vmem:[%s207 + $0x28] sm:$0xf]
        %v764 = vld [vmem:[%s207 + $0x2c] sm:$0xf]
        %v765 = vld [vmem:[%s207 + $0x30] sm:$0xf]
        %v766 = vld [vmem:[%s207 + $0x34] sm:$0xf]
        %v767 = vld [vmem:[%s207 + $0x38] sm:$0xf]
        %v768 = vld [vmem:[%s207 + $0x3c] sm:$0xf]
        %v769 = vld [vmem:[%s207 + $0x40] sm:$0xf]
        %v770 = vld [vmem:[%s207 + $0x44] sm:$0xf]
        %v771 = vld [vmem:[%s207 + $0x48] sm:$0xf]
        %v772 = vld [vmem:[%s207 + $0x4c] sm:$0xf]
        %v773 = vld [vmem:[%s207 + $0x50] sm:$0xf]
        %v774 = vld [vmem:[%s207 + $0x54] sm:$0xf]
        %v775 = vld [vmem:[%s207 + $0x58] sm:$0xf]
        %v776 = vld [vmem:[%s207 + $0x5c] sm:$0xf]
        %v777 = vld [vmem:[%s207 + $0x60] sm:$0xf]
        %v778 = vld [vmem:[%s207 + $0x64] sm:$0xf]
        %v779 = vld [vmem:[%s207 + $0x68] sm:$0xf]
        %v780 = vld [vmem:[%s207 + $0x6c] sm:$0xf]
        %v781 = vld [vmem:[%s207 + $0x70] sm:$0xf]
        %v782 = vld [vmem:[%s207 + $0x74] sm:$0xf]
        %v783 = vld [vmem:[%s207 + $0x78] sm:$0xf]
        %v784 = vld [vmem:[%s207 + $0x7c] sm:$0xf]
        %v785 = vld [vmem:[%s207 + $0x80] sm:$0xf]
        %v786 = vld [vmem:[%s207 + $0x84] sm:$0xf]
        %v787 = vld [vmem:[%s207 + $0x88] sm:$0xf]
        %v788 = vld [vmem:[%s207 + $0x8c] sm:$0xf]
        %v789 = vld [vmem:[%s207 + $0x90] sm:$0xf]
        %v790 = vld [vmem:[%s207 + $0x94] sm:$0xf]
        %v791 = vld [vmem:[%s207 + $0x98] sm:$0xf]
        %v792 = vld [vmem:[%s207 + $0x9c] sm:$0xf]
        %v793 = vld [vmem:[%s207 + $0xa0] sm:$0xf]
        %v794 = vld [vmem:[%s207 + $0xa4] sm:$0xf]
        %v795 = vld [vmem:[%s207 + $0xa8] sm:$0xf]
        %v796 = vld [vmem:[%s207 + $0xac] sm:$0xf]
        %v797 = vld [vmem:[%s207 + $0xb0] sm:$0xf]
        %v798 = vld [vmem:[%s207 + $0xb4] sm:$0xf]
        %v799 = vld [vmem:[%s207 + $0xb8] sm:$0xf]
        %v800 = vld [vmem:[%s207 + $0xbc] sm:$0xf]
        %v801 = vld [vmem:[%s207 + $0xc0] sm:$0xf]
        %v802 = vld [vmem:[%s207 + $0xc4] sm:$0xf]
        %v803 = vld [vmem:[%s207 + $0xc8] sm:$0xf]
        %v804 = vld [vmem:[%s207 + $0xcc] sm:$0xf]
        %v805 = vld [vmem:[%s207 + $0xd0] sm:$0xf]
        %v806 = vld [vmem:[%s207 + $0xd4] sm:$0xf]
        %v807 = vld [vmem:[%s207 + $0xd8] sm:$0xf]
        %v808 = vld [vmem:[%s207 + $0xdc] sm:$0xf]
        %v809 = vld [vmem:[%s207 + $0xe0] sm:$0xf]
        %v810 = vld [vmem:[%s207 + $0xe4] sm:$0xf]
        %v811 = vld [vmem:[%s207 + $0xe8] sm:$0xf]
        %v812 = vld [vmem:[%s207 + $0xec] sm:$0xf]
        %v813 = vld [vmem:[%s207 + $0xf0] sm:$0xf]
        %v814 = vld [vmem:[%s207 + $0xf4] sm:$0xf]
        %v815 = vld [vmem:[%s207 + $0xf8] sm:$0xf]
        %v816 = vld [vmem:[%s207 + $0xfc] sm:$0xf]
        %v817 = vld [vmem:[%s207 + $0x100] sm:$0xf]
        %v818 = vld [vmem:[%s207 + $0x104] sm:$0xf]
        %v819 = vld [vmem:[%s207 + $0x108] sm:$0xf]
        %v820 = vld [vmem:[%s207 + $0x10c] sm:$0xf]
        %v821 = vld [vmem:[%s207 + $0x110] sm:$0xf]
        %v822 = vld [vmem:[%s207 + $0x114] sm:$0xf]
        %v823 = vld [vmem:[%s207 + $0x118] sm:$0xf]
        %v824 = vld [vmem:[%s207 + $0x11c] sm:$0xf]
        %v825 = vld [vmem:[%s207 + $0x120] sm:$0xf]
        %v826 = vld [vmem:[%s207 + $0x124] sm:$0xf]
        %v827 = vld [vmem:[%s207 + $0x128] sm:$0xf]
        %v828 = vld [vmem:[%s207 + $0x12c] sm:$0xf]
        %v829 = vld [vmem:[%s207 + $0x130] sm:$0xf]
        %v830 = vld [vmem:[%s207 + $0x134] sm:$0xf]
        %v831 = vld [vmem:[%s207 + $0x138] sm:$0xf]
        %v832 = vld [vmem:[%s207 + $0x13c] sm:$0xf]
        %v833 = vld [vmem:[%s207 + $0x140] sm:$0xf]
        %v834 = vld [vmem:[%s207 + $0x144] sm:$0xf]
        %v835 = vld [vmem:[%s207 + $0x148] sm:$0xf]
        %v836 = vld [vmem:[%s207 + $0x14c] sm:$0xf]
        %v837 = vld [vmem:[%s207 + $0x150] sm:$0xf]
        %v838 = vld [vmem:[%s207 + $0x154] sm:$0xf]
        %v839 = vld [vmem:[%s207 + $0x158] sm:$0xf]
        %v840 = vld [vmem:[%s207 + $0x15c] sm:$0xf]
        %v841 = vld [vmem:[%s207 + $0x160] sm:$0xf]
        %v842 = vld [vmem:[%s207 + $0x164] sm:$0xf]
        %v843 = vld [vmem:[%s207 + $0x168] sm:$0xf]
        %v844 = vld [vmem:[%s207 + $0x16c] sm:$0xf]
        %v845 = vld [vmem:[%s207 + $0x170] sm:$0xf]
        %v846 = vld [vmem:[%s207 + $0x174] sm:$0xf]
        %v847 = vld [vmem:[%s207 + $0x178] sm:$0xf]
        %v848 = vld [vmem:[%s207 + $0x17c] sm:$0xf]
        %v849 = vld [vmem:[%s207 + $0x180] sm:$0xf]
        %v850 = vld [vmem:[%s207 + $0x184] sm:$0xf]
        %v851 = vld [vmem:[%s207 + $0x188] sm:$0xf]
        %v852 = vld [vmem:[%s207 + $0x18c] sm:$0xf]
        %v853 = vld [vmem:[%s207 + $0x190] sm:$0xf]
        %v854 = vld [vmem:[%s207 + $0x194] sm:$0xf]
        %v855 = vld [vmem:[%s207 + $0x198] sm:$0xf]
        %v856 = vld [vmem:[%s207 + $0x19c] sm:$0xf]
        %v857 = vld [vmem:[%s207 + $0x1a0] sm:$0xf]
        %v858 = vld [vmem:[%s207 + $0x1a4] sm:$0xf]
        %v859 = vld [vmem:[%s207 + $0x1a8] sm:$0xf]
        %v860 = vld [vmem:[%s207 + $0x1ac] sm:$0xf]
        %v861 = vld [vmem:[%s207 + $0x1b0] sm:$0xf]
        %v862 = vld [vmem:[%s207 + $0x1b4] sm:$0xf]
        %v863 = vld [vmem:[%s207 + $0x1b8] sm:$0xf]
        %v864 = vld [vmem:[%s207 + $0x1bc] sm:$0xf]
        %v865 = vld [vmem:[%s207 + $0x1c0] sm:$0xf]
        %v866 = vld [vmem:[%s207 + $0x1c4] sm:$0xf]
        %v867 = vld [vmem:[%s207 + $0x1c8] sm:$0xf]
        %v868 = vld [vmem:[%s207 + $0x1cc] sm:$0xf]
        %v869 = vld [vmem:[%s207 + $0x1d0] sm:$0xf]
        %v870 = vld [vmem:[%s207 + $0x1d4] sm:$0xf]
        %v871 = vld [vmem:[%s207 + $0x1d8] sm:$0xf]
        %v872 = vld [vmem:[%s207 + $0x1dc] sm:$0xf]
        %v873 = vld [vmem:[%s207 + $0x1e0] sm:$0xf]
        %v874 = vld [vmem:[%s207 + $0x1e4] sm:$0xf]
        %v875 = vld [vmem:[%s207 + $0x1e8] sm:$0xf]
        %v876 = vld [vmem:[%s207 + $0x1ec] sm:$0xf]
        %v877 = vld [vmem:[%s207 + $0x1f0] sm:$0xf]
        %v878 = vld [vmem:[%s207 + $0x1f4] sm:$0xf]
        %v879 = vld [vmem:[%s207 + $0x1f8] sm:$0xf]
        %v880 = vld [vmem:[%s207 + $0x1fc] sm:$0xf]
        %v1393 = vunpack.c.l.b16 %v241
        %v1394 = vunpack.c.h.b16 %v241
        %v1395 = vunpack.c.l.b16 %v242
        %v1396 = vunpack.c.h.b16 %v242
        %v1397 = vunpack.c.l.b16 %v243
        %v1398 = vunpack.c.h.b16 %v243
        %v1399 = vunpack.c.l.b16 %v244
        %v1400 = vunpack.c.h.b16 %v244
        %v1401 = vunpack.c.l.b16 %v245
        %v1402 = vunpack.c.h.b16 %v245
        %v1403 = vunpack.c.l.b16 %v246
        %v1404 = vunpack.c.h.b16 %v246
        %v1405 = vunpack.c.l.b16 %v247
        %v1406 = vunpack.c.h.b16 %v247
        %v1407 = vunpack.c.l.b16 %v248
        %v1408 = vunpack.c.h.b16 %v248
        %v1409 = vunpack.c.l.b16 %v249
        %v1410 = vunpack.c.h.b16 %v249
        %v1411 = vunpack.c.l.b16 %v250
        %v1412 = vunpack.c.h.b16 %v250
        %v1413 = vunpack.c.l.b16 %v251
        %v1414 = vunpack.c.h.b16 %v251
        %v1415 = vunpack.c.l.b16 %v252
        %v1416 = vunpack.c.h.b16 %v252
        %v1417 = vunpack.c.l.b16 %v253
        %v1418 = vunpack.c.h.b16 %v253
        %v1419 = vunpack.c.l.b16 %v254
        %v1420 = vunpack.c.h.b16 %v254
        %v1421 = vunpack.c.l.b16 %v255
        %v1422 = vunpack.c.h.b16 %v255
        %v1423 = vunpack.c.l.b16 %v256
        %v1424 = vunpack.c.h.b16 %v256
        %v1425 = vunpack.c.l.b16 %v257
        %v1426 = vunpack.c.h.b16 %v257
        %v1427 = vunpack.c.l.b16 %v258
        %v1428 = vunpack.c.h.b16 %v258
        %v1429 = vunpack.c.l.b16 %v259
        %v1430 = vunpack.c.h.b16 %v259
        %v1431 = vunpack.c.l.b16 %v260
        %v1432 = vunpack.c.h.b16 %v260
        %v1433 = vunpack.c.l.b16 %v261
        %v1434 = vunpack.c.h.b16 %v261
        %v1435 = vunpack.c.l.b16 %v262
        %v1436 = vunpack.c.h.b16 %v262
        %v1437 = vunpack.c.l.b16 %v263
        %v1438 = vunpack.c.h.b16 %v263
        %v1439 = vunpack.c.l.b16 %v264
        %v1440 = vunpack.c.h.b16 %v264
        %v1441 = vunpack.c.l.b16 %v265
        %v1442 = vunpack.c.h.b16 %v265
        %v1443 = vunpack.c.l.b16 %v266
        %v1444 = vunpack.c.h.b16 %v266
        %v1445 = vunpack.c.l.b16 %v267
        %v1446 = vunpack.c.h.b16 %v267
        %v1447 = vunpack.c.l.b16 %v268
        %v1448 = vunpack.c.h.b16 %v268
        %v1449 = vunpack.c.l.b16 %v269
        %v1450 = vunpack.c.h.b16 %v269
        %v1451 = vunpack.c.l.b16 %v270
        %v1452 = vunpack.c.h.b16 %v270
        %v1453 = vunpack.c.l.b16 %v271
        %v1454 = vunpack.c.h.b16 %v271
        %v1455 = vunpack.c.l.b16 %v272
        %v1456 = vunpack.c.h.b16 %v272
        %v1457 = vunpack.c.l.b16 %v273
        %v1458 = vunpack.c.h.b16 %v273
        %v1459 = vunpack.c.l.b16 %v274
        %v1460 = vunpack.c.h.b16 %v274
        %v1461 = vunpack.c.l.b16 %v275
        %v1462 = vunpack.c.h.b16 %v275
        %v1463 = vunpack.c.l.b16 %v276
        %v1464 = vunpack.c.h.b16 %v276
        %v1465 = vunpack.c.l.b16 %v277
        %v1466 = vunpack.c.h.b16 %v277
        %v1467 = vunpack.c.l.b16 %v278
        %v1468 = vunpack.c.h.b16 %v278
        %v1469 = vunpack.c.l.b16 %v279
        %v1470 = vunpack.c.h.b16 %v279
        %v1471 = vunpack.c.l.b16 %v280
        %v1472 = vunpack.c.h.b16 %v280
        %v1473 = vunpack.c.l.b16 %v281
        %v1474 = vunpack.c.h.b16 %v281
        %v1475 = vunpack.c.l.b16 %v282
        %v1476 = vunpack.c.h.b16 %v282
        %v1477 = vunpack.c.l.b16 %v283
        %v1478 = vunpack.c.h.b16 %v283
        %v1479 = vunpack.c.l.b16 %v284
        %v1480 = vunpack.c.h.b16 %v284
        %v1481 = vunpack.c.l.b16 %v285
        %v1482 = vunpack.c.h.b16 %v285
        %v1483 = vunpack.c.l.b16 %v286
        %v1484 = vunpack.c.h.b16 %v286
        %v1485 = vunpack.c.l.b16 %v287
        %v1486 = vunpack.c.h.b16 %v287
        %v1487 = vunpack.c.l.b16 %v288
        %v1488 = vunpack.c.h.b16 %v288
        %v1489 = vunpack.c.l.b16 %v289
        %v1490 = vunpack.c.h.b16 %v289
        %v1491 = vunpack.c.l.b16 %v290
        %v1492 = vunpack.c.h.b16 %v290
        %v1493 = vunpack.c.l.b16 %v291
        %v1494 = vunpack.c.h.b16 %v291
        %v1495 = vunpack.c.l.b16 %v292
        %v1496 = vunpack.c.h.b16 %v292
        %v1497 = vunpack.c.l.b16 %v293
        %v1498 = vunpack.c.h.b16 %v293
        %v1499 = vunpack.c.l.b16 %v294
        %v1500 = vunpack.c.h.b16 %v294
        %v1501 = vunpack.c.l.b16 %v295
        %v1502 = vunpack.c.h.b16 %v295
        %v1503 = vunpack.c.l.b16 %v296
        %v1504 = vunpack.c.h.b16 %v296
        %v1505 = vunpack.c.l.b16 %v297
        %v1506 = vunpack.c.h.b16 %v297
        %v1507 = vunpack.c.l.b16 %v298
        %v1508 = vunpack.c.h.b16 %v298
        %v1509 = vunpack.c.l.b16 %v299
        %v1510 = vunpack.c.h.b16 %v299
        %v1511 = vunpack.c.l.b16 %v300
        %v1512 = vunpack.c.h.b16 %v300
        %v1513 = vunpack.c.l.b16 %v301
        %v1514 = vunpack.c.h.b16 %v301
        %v1515 = vunpack.c.l.b16 %v302
        %v1516 = vunpack.c.h.b16 %v302
        %v1517 = vunpack.c.l.b16 %v303
        %v1518 = vunpack.c.h.b16 %v303
        %v1519 = vunpack.c.l.b16 %v304
        %v1520 = vunpack.c.h.b16 %v304
        %v1521 = vunpack.c.l.b16 %v305
        %v1522 = vunpack.c.h.b16 %v305
        %v1523 = vunpack.c.l.b16 %v306
        %v1524 = vunpack.c.h.b16 %v306
        %v1525 = vunpack.c.l.b16 %v307
        %v1526 = vunpack.c.h.b16 %v307
        %v1527 = vunpack.c.l.b16 %v308
        %v1528 = vunpack.c.h.b16 %v308
        %v1529 = vunpack.c.l.b16 %v309
        %v1530 = vunpack.c.h.b16 %v309
        %v1531 = vunpack.c.l.b16 %v310
        %v1532 = vunpack.c.h.b16 %v310
        %v1533 = vunpack.c.l.b16 %v311
        %v1534 = vunpack.c.h.b16 %v311
        %v1535 = vunpack.c.l.b16 %v312
        %v1536 = vunpack.c.h.b16 %v312
        %v1537 = vunpack.c.l.b16 %v313
        %v1538 = vunpack.c.h.b16 %v313
        %v1539 = vunpack.c.l.b16 %v314
        %v1540 = vunpack.c.h.b16 %v314
        %v1541 = vunpack.c.l.b16 %v315
        %v1542 = vunpack.c.h.b16 %v315
        %v1543 = vunpack.c.l.b16 %v316
        %v1544 = vunpack.c.h.b16 %v316
        %v1545 = vunpack.c.l.b16 %v317
        %v1546 = vunpack.c.h.b16 %v317
        %v1547 = vunpack.c.l.b16 %v318
        %v1548 = vunpack.c.h.b16 %v318
        %v1549 = vunpack.c.l.b16 %v319
        %v1550 = vunpack.c.h.b16 %v319
        %v1551 = vunpack.c.l.b16 %v320
        %v1552 = vunpack.c.h.b16 %v320
        %v1553 = vunpack.c.l.b16 %v321
        %v1554 = vunpack.c.h.b16 %v321
        %v1555 = vunpack.c.l.b16 %v322
        %v1556 = vunpack.c.h.b16 %v322
        %v1557 = vunpack.c.l.b16 %v323
        %v1558 = vunpack.c.h.b16 %v323
        %v1559 = vunpack.c.l.b16 %v324
        %v1560 = vunpack.c.h.b16 %v324
        %v1561 = vunpack.c.l.b16 %v325
        %v1562 = vunpack.c.h.b16 %v325
        %v1563 = vunpack.c.l.b16 %v326
        %v1564 = vunpack.c.h.b16 %v326
        %v1565 = vunpack.c.l.b16 %v327
        %v1566 = vunpack.c.h.b16 %v327
        %v1567 = vunpack.c.l.b16 %v328
        %v1568 = vunpack.c.h.b16 %v328
        %v1569 = vunpack.c.l.b16 %v329
        %v1570 = vunpack.c.h.b16 %v329
        %v1571 = vunpack.c.l.b16 %v330
        %v1572 = vunpack.c.h.b16 %v330
        %v1573 = vunpack.c.l.b16 %v331
        %v1574 = vunpack.c.h.b16 %v331
        %v1575 = vunpack.c.l.b16 %v332
        %v1576 = vunpack.c.h.b16 %v332
        %v1577 = vunpack.c.l.b16 %v333
        %v1578 = vunpack.c.h.b16 %v333
        %v1579 = vunpack.c.l.b16 %v334
        %v1580 = vunpack.c.h.b16 %v334
        %v1581 = vunpack.c.l.b16 %v335
        %v1582 = vunpack.c.h.b16 %v335
        %v1583 = vunpack.c.l.b16 %v336
        %v1584 = vunpack.c.h.b16 %v336
        %v1585 = vunpack.c.l.b16 %v337
        %v1586 = vunpack.c.h.b16 %v337
        %v1587 = vunpack.c.l.b16 %v338
        %v1588 = vunpack.c.h.b16 %v338
        %v1589 = vunpack.c.l.b16 %v339
        %v1590 = vunpack.c.h.b16 %v339
        %v1591 = vunpack.c.l.b16 %v340
        %v1592 = vunpack.c.h.b16 %v340
        %v1593 = vunpack.c.l.b16 %v341
        %v1594 = vunpack.c.h.b16 %v341
        %v1595 = vunpack.c.l.b16 %v342
        %v1596 = vunpack.c.h.b16 %v342
        %v1597 = vunpack.c.l.b16 %v343
        %v1598 = vunpack.c.h.b16 %v343
        %v1599 = vunpack.c.l.b16 %v344
        %v1600 = vunpack.c.h.b16 %v344
        %v1601 = vunpack.c.l.b16 %v345
        %v1602 = vunpack.c.h.b16 %v345
        %v1603 = vunpack.c.l.b16 %v346
        %v1604 = vunpack.c.h.b16 %v346
        %v1605 = vunpack.c.l.b16 %v347
        %v1606 = vunpack.c.h.b16 %v347
        %v1607 = vunpack.c.l.b16 %v348
        %v1608 = vunpack.c.h.b16 %v348
        %v1609 = vunpack.c.l.b16 %v349
        %v1610 = vunpack.c.h.b16 %v349
        %v1611 = vunpack.c.l.b16 %v350
        %v1612 = vunpack.c.h.b16 %v350
        %v1613 = vunpack.c.l.b16 %v351
        %v1614 = vunpack.c.h.b16 %v351
        %v1615 = vunpack.c.l.b16 %v352
        %v1616 = vunpack.c.h.b16 %v352
        %v1617 = vunpack.c.l.b16 %v353
        %v1618 = vunpack.c.h.b16 %v353
        %v1619 = vunpack.c.l.b16 %v354
        %v1620 = vunpack.c.h.b16 %v354
        %v1621 = vunpack.c.l.b16 %v355
        %v1622 = vunpack.c.h.b16 %v355
        %v1623 = vunpack.c.l.b16 %v356
        %v1624 = vunpack.c.h.b16 %v356
        %v1625 = vunpack.c.l.b16 %v357
        %v1626 = vunpack.c.h.b16 %v357
        %v1627 = vunpack.c.l.b16 %v358
        %v1628 = vunpack.c.h.b16 %v358
        %v1629 = vunpack.c.l.b16 %v359
        %v1630 = vunpack.c.h.b16 %v359
        %v1631 = vunpack.c.l.b16 %v360
        %v1632 = vunpack.c.h.b16 %v360
        %v1633 = vunpack.c.l.b16 %v361
        %v1634 = vunpack.c.h.b16 %v361
        %v1635 = vunpack.c.l.b16 %v362
        %v1636 = vunpack.c.h.b16 %v362
        %v1637 = vunpack.c.l.b16 %v363
        %v1638 = vunpack.c.h.b16 %v363
        %v1639 = vunpack.c.l.b16 %v364
        %v1640 = vunpack.c.h.b16 %v364
        %v1641 = vunpack.c.l.b16 %v365
        %v1642 = vunpack.c.h.b16 %v365
        %v1643 = vunpack.c.l.b16 %v366
        %v1644 = vunpack.c.h.b16 %v366
        %v1645 = vunpack.c.l.b16 %v367
        %v1646 = vunpack.c.h.b16 %v367
        %v1647 = vunpack.c.l.b16 %v368
        %v1648 = vunpack.c.h.b16 %v368
        %v1649 = vunpack.c.l.b16 %v369
        %v1650 = vunpack.c.h.b16 %v369
        %v1651 = vunpack.c.l.b16 %v370
        %v1652 = vunpack.c.h.b16 %v370
        %v1653 = vunpack.c.l.b16 %v371
        %v1654 = vunpack.c.h.b16 %v371
        %v1655 = vunpack.c.l.b16 %v372
        %v1656 = vunpack.c.h.b16 %v372
        %v1657 = vunpack.c.l.b16 %v373
        %v1658 = vunpack.c.h.b16 %v373
        %v1659 = vunpack.c.l.b16 %v374
        %v1660 = vunpack.c.h.b16 %v374
        %v1661 = vunpack.c.l.b16 %v375
        %v1662 = vunpack.c.h.b16 %v375
        %v1663 = vunpack.c.l.b16 %v376
        %v1664 = vunpack.c.h.b16 %v376
        %v1665 = vunpack.c.l.b16 %v377
        %v1666 = vunpack.c.h.b16 %v377
        %v1667 = vunpack.c.l.b16 %v378
        %v1668 = vunpack.c.h.b16 %v378
        %v1669 = vunpack.c.l.b16 %v379
        %v1670 = vunpack.c.h.b16 %v379
        %v1671 = vunpack.c.l.b16 %v380
        %v1672 = vunpack.c.h.b16 %v380
        %v1673 = vunpack.c.l.b16 %v381
        %v1674 = vunpack.c.h.b16 %v381
        %v1675 = vunpack.c.l.b16 %v382
        %v1676 = vunpack.c.h.b16 %v382
        %v1677 = vunpack.c.l.b16 %v383
        %v1678 = vunpack.c.h.b16 %v383
        %v1679 = vunpack.c.l.b16 %v384
        %v1680 = vunpack.c.h.b16 %v384
        %v1681 = vunpack.c.l.b16 %v385
        %v1682 = vunpack.c.h.b16 %v385
        %v1683 = vunpack.c.l.b16 %v386
        %v1684 = vunpack.c.h.b16 %v386
        %v1685 = vunpack.c.l.b16 %v387
        %v1686 = vunpack.c.h.b16 %v387
        %v1687 = vunpack.c.l.b16 %v388
        %v1688 = vunpack.c.h.b16 %v388
        %v1689 = vunpack.c.l.b16 %v389
        %v1690 = vunpack.c.h.b16 %v389
        %v1691 = vunpack.c.l.b16 %v390
        %v1692 = vunpack.c.h.b16 %v390
        %v1693 = vunpack.c.l.b16 %v391
        %v1694 = vunpack.c.h.b16 %v391
        %v1695 = vunpack.c.l.b16 %v392
        %v1696 = vunpack.c.h.b16 %v392
        %v1697 = vunpack.c.l.b16 %v393
        %v1698 = vunpack.c.h.b16 %v393
        %v1699 = vunpack.c.l.b16 %v394
        %v1700 = vunpack.c.h.b16 %v394
        %v1701 = vunpack.c.l.b16 %v395
        %v1702 = vunpack.c.h.b16 %v395
        %v1703 = vunpack.c.l.b16 %v396
        %v1704 = vunpack.c.h.b16 %v396
        %v1705 = vunpack.c.l.b16 %v397
        %v1706 = vunpack.c.h.b16 %v397
        %v1707 = vunpack.c.l.b16 %v398
        %v1708 = vunpack.c.h.b16 %v398
        %v1709 = vunpack.c.l.b16 %v399
        %v1710 = vunpack.c.h.b16 %v399
        %v1711 = vunpack.c.l.b16 %v400
        %v1712 = vunpack.c.h.b16 %v400
        %v1713 = vunpack.c.l.b16 %v401
        %v1714 = vunpack.c.h.b16 %v401
        %v1715 = vunpack.c.l.b16 %v402
        %v1716 = vunpack.c.h.b16 %v402
        %v1717 = vunpack.c.l.b16 %v403
        %v1718 = vunpack.c.h.b16 %v403
        %v1719 = vunpack.c.l.b16 %v404
        %v1720 = vunpack.c.h.b16 %v404
        %v1721 = vunpack.c.l.b16 %v405
        %v1722 = vunpack.c.h.b16 %v405
        %v1723 = vunpack.c.l.b16 %v406
        %v1724 = vunpack.c.h.b16 %v406
        %v1725 = vunpack.c.l.b16 %v407
        %v1726 = vunpack.c.h.b16 %v407
        %v1727 = vunpack.c.l.b16 %v408
        %v1728 = vunpack.c.h.b16 %v408
        %v1729 = vunpack.c.l.b16 %v409
        %v1730 = vunpack.c.h.b16 %v409
        %v1731 = vunpack.c.l.b16 %v410
        %v1732 = vunpack.c.h.b16 %v410
        %v1733 = vunpack.c.l.b16 %v411
        %v1734 = vunpack.c.h.b16 %v411
        %v1735 = vunpack.c.l.b16 %v412
        %v1736 = vunpack.c.h.b16 %v412
        %v1737 = vunpack.c.l.b16 %v413
        %v1738 = vunpack.c.h.b16 %v413
        %v1739 = vunpack.c.l.b16 %v414
        %v1740 = vunpack.c.h.b16 %v414
        %v1741 = vunpack.c.l.b16 %v415
        %v1742 = vunpack.c.h.b16 %v415
        %v1743 = vunpack.c.l.b16 %v416
        %v1744 = vunpack.c.h.b16 %v416
        %v1745 = vunpack.c.l.b16 %v417
        %v1746 = vunpack.c.h.b16 %v417
        %v1747 = vunpack.c.l.b16 %v418
        %v1748 = vunpack.c.h.b16 %v418
        %v1749 = vunpack.c.l.b16 %v419
        %v1750 = vunpack.c.h.b16 %v419
        %v1751 = vunpack.c.l.b16 %v420
        %v1752 = vunpack.c.h.b16 %v420
        %v1753 = vunpack.c.l.b16 %v421
        %v1754 = vunpack.c.h.b16 %v421
        %v1755 = vunpack.c.l.b16 %v422
        %v1756 = vunpack.c.h.b16 %v422
        %v1757 = vunpack.c.l.b16 %v423
        %v1758 = vunpack.c.h.b16 %v423
        %v1759 = vunpack.c.l.b16 %v424
        %v1760 = vunpack.c.h.b16 %v424
        %v1761 = vunpack.c.l.b16 %v425
        %v1762 = vunpack.c.h.b16 %v425
        %v1763 = vunpack.c.l.b16 %v426
        %v1764 = vunpack.c.h.b16 %v426
        %v1765 = vunpack.c.l.b16 %v427
        %v1766 = vunpack.c.h.b16 %v427
        %v1767 = vunpack.c.l.b16 %v428
        %v1768 = vunpack.c.h.b16 %v428
        %v1769 = vunpack.c.l.b16 %v429
        %v1770 = vunpack.c.h.b16 %v429
        %v1771 = vunpack.c.l.b16 %v430
        %v1772 = vunpack.c.h.b16 %v430
        %v1773 = vunpack.c.l.b16 %v431
        %v1774 = vunpack.c.h.b16 %v431
        %v1775 = vunpack.c.l.b16 %v432
        %v1776 = vunpack.c.h.b16 %v432
        %v1777 = vunpack.c.l.b16 %v433
        %v1778 = vunpack.c.h.b16 %v433
        %v1779 = vunpack.c.l.b16 %v434
        %v1780 = vunpack.c.h.b16 %v434
        %v1781 = vunpack.c.l.b16 %v435
        %v1782 = vunpack.c.h.b16 %v435
        %v1783 = vunpack.c.l.b16 %v436
        %v1784 = vunpack.c.h.b16 %v436
        %v1785 = vunpack.c.l.b16 %v437
        %v1786 = vunpack.c.h.b16 %v437
        %v1787 = vunpack.c.l.b16 %v438
        %v1788 = vunpack.c.h.b16 %v438
        %v1789 = vunpack.c.l.b16 %v439
        %v1790 = vunpack.c.h.b16 %v439
        %v1791 = vunpack.c.l.b16 %v440
        %v1792 = vunpack.c.h.b16 %v440
        %v1793 = vunpack.c.l.b16 %v441
        %v1794 = vunpack.c.h.b16 %v441
        %v1795 = vunpack.c.l.b16 %v442
        %v1796 = vunpack.c.h.b16 %v442
        %v1797 = vunpack.c.l.b16 %v443
        %v1798 = vunpack.c.h.b16 %v443
        %v1799 = vunpack.c.l.b16 %v444
        %v1800 = vunpack.c.h.b16 %v444
        %v1801 = vunpack.c.l.b16 %v445
        %v1802 = vunpack.c.h.b16 %v445
        %v1803 = vunpack.c.l.b16 %v446
        %v1804 = vunpack.c.h.b16 %v446
        %v1805 = vunpack.c.l.b16 %v447
        %v1806 = vunpack.c.h.b16 %v447
        %v1807 = vunpack.c.l.b16 %v448
        %v1808 = vunpack.c.h.b16 %v448
        %v1809 = vunpack.c.l.b16 %v449
        %v1810 = vunpack.c.h.b16 %v449
        %v1811 = vunpack.c.l.b16 %v450
        %v1812 = vunpack.c.h.b16 %v450
        %v1813 = vunpack.c.l.b16 %v451
        %v1814 = vunpack.c.h.b16 %v451
        %v1815 = vunpack.c.l.b16 %v452
        %v1816 = vunpack.c.h.b16 %v452
        %v1817 = vunpack.c.l.b16 %v453
        %v1818 = vunpack.c.h.b16 %v453
        %v1819 = vunpack.c.l.b16 %v454
        %v1820 = vunpack.c.h.b16 %v454
        %v1821 = vunpack.c.l.b16 %v455
        %v1822 = vunpack.c.h.b16 %v455
        %v1823 = vunpack.c.l.b16 %v456
        %v1824 = vunpack.c.h.b16 %v456
        %v1825 = vunpack.c.l.b16 %v457
        %v1826 = vunpack.c.h.b16 %v457
        %v1827 = vunpack.c.l.b16 %v458
        %v1828 = vunpack.c.h.b16 %v458
        %v1829 = vunpack.c.l.b16 %v459
        %v1830 = vunpack.c.h.b16 %v459
        %v1831 = vunpack.c.l.b16 %v460
        %v1832 = vunpack.c.h.b16 %v460
        %v1833 = vunpack.c.l.b16 %v461
        %v1834 = vunpack.c.h.b16 %v461
        %v1835 = vunpack.c.l.b16 %v462
        %v1836 = vunpack.c.h.b16 %v462
        %v1837 = vunpack.c.l.b16 %v463
        %v1838 = vunpack.c.h.b16 %v463
        %v1839 = vunpack.c.l.b16 %v464
        %v1840 = vunpack.c.h.b16 %v464
        %v1841 = vunpack.c.l.b16 %v465
        %v1842 = vunpack.c.h.b16 %v465
        %v1843 = vunpack.c.l.b16 %v466
        %v1844 = vunpack.c.h.b16 %v466
        %v1845 = vunpack.c.l.b16 %v467
        %v1846 = vunpack.c.h.b16 %v467
        %v1847 = vunpack.c.l.b16 %v468
        %v1848 = vunpack.c.h.b16 %v468
        %v1849 = vunpack.c.l.b16 %v469
        %v1850 = vunpack.c.h.b16 %v469
        %v1851 = vunpack.c.l.b16 %v470
        %v1852 = vunpack.c.h.b16 %v470
        %v1853 = vunpack.c.l.b16 %v471
        %v1854 = vunpack.c.h.b16 %v471
        %v1855 = vunpack.c.l.b16 %v472
        %v1856 = vunpack.c.h.b16 %v472
        %v1857 = vunpack.c.l.b16 %v473
        %v1858 = vunpack.c.h.b16 %v473
        %v1859 = vunpack.c.l.b16 %v474
        %v1860 = vunpack.c.h.b16 %v474
        %v1861 = vunpack.c.l.b16 %v475
        %v1862 = vunpack.c.h.b16 %v475
        %v1863 = vunpack.c.l.b16 %v476
        %v1864 = vunpack.c.h.b16 %v476
        %v1865 = vunpack.c.l.b16 %v477
        %v1866 = vunpack.c.h.b16 %v477
        %v1867 = vunpack.c.l.b16 %v478
        %v1868 = vunpack.c.h.b16 %v478
        %v1869 = vunpack.c.l.b16 %v479
        %v1870 = vunpack.c.h.b16 %v479
        %v1871 = vunpack.c.l.b16 %v480
        %v1872 = vunpack.c.h.b16 %v480
        %v1873 = vunpack.c.l.b16 %v481
        %v1874 = vunpack.c.h.b16 %v481
        %v1875 = vunpack.c.l.b16 %v482
        %v1876 = vunpack.c.h.b16 %v482
        %v1877 = vunpack.c.l.b16 %v483
        %v1878 = vunpack.c.h.b16 %v483
        %v1879 = vunpack.c.l.b16 %v484
        %v1880 = vunpack.c.h.b16 %v484
        %v1881 = vunpack.c.l.b16 %v485
        %v1882 = vunpack.c.h.b16 %v485
        %v1883 = vunpack.c.l.b16 %v486
        %v1884 = vunpack.c.h.b16 %v486
        %v1885 = vunpack.c.l.b16 %v487
        %v1886 = vunpack.c.h.b16 %v487
        %v1887 = vunpack.c.l.b16 %v488
        %v1888 = vunpack.c.h.b16 %v488
        %v1889 = vunpack.c.l.b16 %v489
        %v1890 = vunpack.c.h.b16 %v489
        %v1891 = vunpack.c.l.b16 %v490
        %v1892 = vunpack.c.h.b16 %v490
        %v1893 = vunpack.c.l.b16 %v491
        %v1894 = vunpack.c.h.b16 %v491
        %v1895 = vunpack.c.l.b16 %v492
        %v1896 = vunpack.c.h.b16 %v492
        %v1897 = vunpack.c.l.b16 %v493
        %v1898 = vunpack.c.h.b16 %v493
        %v1899 = vunpack.c.l.b16 %v494
        %v1900 = vunpack.c.h.b16 %v494
        %v1901 = vunpack.c.l.b16 %v495
        %v1902 = vunpack.c.h.b16 %v495
        %v1903 = vunpack.c.l.b16 %v496
        %v1904 = vunpack.c.h.b16 %v496
        %v1905 = vunpack.c.l.b16 %v497
        %v1906 = vunpack.c.h.b16 %v497
        %v1907 = vunpack.c.l.b16 %v498
        %v1908 = vunpack.c.h.b16 %v498
        %v1909 = vunpack.c.l.b16 %v499
        %v1910 = vunpack.c.h.b16 %v499
        %v1911 = vunpack.c.l.b16 %v500
        %v1912 = vunpack.c.h.b16 %v500
        %v1913 = vunpack.c.l.b16 %v501
        %v1914 = vunpack.c.h.b16 %v501
        %v1915 = vunpack.c.l.b16 %v502
        %v1916 = vunpack.c.h.b16 %v502
        %v1917 = vunpack.c.l.b16 %v503
        %v1918 = vunpack.c.h.b16 %v503
        %v1919 = vunpack.c.l.b16 %v504
        %v1920 = vunpack.c.h.b16 %v504
        %v1921 = vunpack.c.l.b16 %v505
        %v1922 = vunpack.c.h.b16 %v505
        %v1923 = vunpack.c.l.b16 %v506
        %v1924 = vunpack.c.h.b16 %v506
        %v1925 = vunpack.c.l.b16 %v507
        %v1926 = vunpack.c.h.b16 %v507
        %v1927 = vunpack.c.l.b16 %v508
        %v1928 = vunpack.c.h.b16 %v508
        %v1929 = vunpack.c.l.b16 %v509
        %v1930 = vunpack.c.h.b16 %v509
        %v1931 = vunpack.c.l.b16 %v510
        %v1932 = vunpack.c.h.b16 %v510
        %v1933 = vunpack.c.l.b16 %v511
        %v1934 = vunpack.c.h.b16 %v511
        %v1935 = vunpack.c.l.b16 %v512
        %v1936 = vunpack.c.h.b16 %v512
        %v1937 = vunpack.c.l.b16 %v513
        %v1938 = vunpack.c.h.b16 %v513
        %v1939 = vunpack.c.l.b16 %v514
        %v1940 = vunpack.c.h.b16 %v514
        %v1941 = vunpack.c.l.b16 %v515
        %v1942 = vunpack.c.h.b16 %v515
        %v1943 = vunpack.c.l.b16 %v516
        %v1944 = vunpack.c.h.b16 %v516
        %v1945 = vunpack.c.l.b16 %v517
        %v1946 = vunpack.c.h.b16 %v517
        %v1947 = vunpack.c.l.b16 %v518
        %v1948 = vunpack.c.h.b16 %v518
        %v1949 = vunpack.c.l.b16 %v519
        %v1950 = vunpack.c.h.b16 %v519
        %v1951 = vunpack.c.l.b16 %v520
        %v1952 = vunpack.c.h.b16 %v520
        %v1953 = vunpack.c.l.b16 %v521
        %v1954 = vunpack.c.h.b16 %v521
        %v1955 = vunpack.c.l.b16 %v522
        %v1956 = vunpack.c.h.b16 %v522
        %v1957 = vunpack.c.l.b16 %v523
        %v1958 = vunpack.c.h.b16 %v523
        %v1959 = vunpack.c.l.b16 %v524
        %v1960 = vunpack.c.h.b16 %v524
        %v1961 = vunpack.c.l.b16 %v525
        %v1962 = vunpack.c.h.b16 %v525
        %v1963 = vunpack.c.l.b16 %v526
        %v1964 = vunpack.c.h.b16 %v526
        %v1965 = vunpack.c.l.b16 %v527
        %v1966 = vunpack.c.h.b16 %v527
        %v1967 = vunpack.c.l.b16 %v528
        %v1968 = vunpack.c.h.b16 %v528
        %v1969 = vunpack.c.l.b16 %v529
        %v1970 = vunpack.c.h.b16 %v529
        %v1971 = vunpack.c.l.b16 %v530
        %v1972 = vunpack.c.h.b16 %v530
        %v1973 = vunpack.c.l.b16 %v531
        %v1974 = vunpack.c.h.b16 %v531
        %v1975 = vunpack.c.l.b16 %v532
        %v1976 = vunpack.c.h.b16 %v532
        %v1977 = vunpack.c.l.b16 %v533
        %v1978 = vunpack.c.h.b16 %v533
        %v1979 = vunpack.c.l.b16 %v534
        %v1980 = vunpack.c.h.b16 %v534
        %v1981 = vunpack.c.l.b16 %v535
        %v1982 = vunpack.c.h.b16 %v535
        %v1983 = vunpack.c.l.b16 %v536
        %v1984 = vunpack.c.h.b16 %v536
        %v1985 = vunpack.c.l.b16 %v537
        %v1986 = vunpack.c.h.b16 %v537
        %v1987 = vunpack.c.l.b16 %v538
        %v1988 = vunpack.c.h.b16 %v538
        %v1989 = vunpack.c.l.b16 %v539
        %v1990 = vunpack.c.h.b16 %v539
        %v1991 = vunpack.c.l.b16 %v540
        %v1992 = vunpack.c.h.b16 %v540
        %v1993 = vunpack.c.l.b16 %v541
        %v1994 = vunpack.c.h.b16 %v541
        %v1995 = vunpack.c.l.b16 %v542
        %v1996 = vunpack.c.h.b16 %v542
        %v1997 = vunpack.c.l.b16 %v543
        %v1998 = vunpack.c.h.b16 %v543
        %v1999 = vunpack.c.l.b16 %v544
        %v2000 = vunpack.c.h.b16 %v544
        %v2001 = vunpack.c.l.b16 %v545
        %v2002 = vunpack.c.h.b16 %v545
        %v2003 = vunpack.c.l.b16 %v546
        %v2004 = vunpack.c.h.b16 %v546
        %v2005 = vunpack.c.l.b16 %v547
        %v2006 = vunpack.c.h.b16 %v547
        %v2007 = vunpack.c.l.b16 %v548
        %v2008 = vunpack.c.h.b16 %v548
        %v2009 = vunpack.c.l.b16 %v549
        %v2010 = vunpack.c.h.b16 %v549
        %v2011 = vunpack.c.l.b16 %v550
        %v2012 = vunpack.c.h.b16 %v550
        %v2013 = vunpack.c.l.b16 %v551
        %v2014 = vunpack.c.h.b16 %v551
        %v2015 = vunpack.c.l.b16 %v552
        %v2016 = vunpack.c.h.b16 %v552
        %v2017 = vunpack.c.l.b16 %v553
        %v2018 = vunpack.c.h.b16 %v553
        %v2019 = vunpack.c.l.b16 %v554
        %v2020 = vunpack.c.h.b16 %v554
        %v2021 = vunpack.c.l.b16 %v555
        %v2022 = vunpack.c.h.b16 %v555
        %v2023 = vunpack.c.l.b16 %v556
        %v2024 = vunpack.c.h.b16 %v556
        %v2025 = vunpack.c.l.b16 %v557
        %v2026 = vunpack.c.h.b16 %v557
        %v2027 = vunpack.c.l.b16 %v558
        %v2028 = vunpack.c.h.b16 %v558
        %v2029 = vunpack.c.l.b16 %v559
        %v2030 = vunpack.c.h.b16 %v559
        %v2031 = vunpack.c.l.b16 %v560
        %v2032 = vunpack.c.h.b16 %v560
        %v2033 = vunpack.c.l.b16 %v561
        %v2034 = vunpack.c.h.b16 %v561
        %v2035 = vunpack.c.l.b16 %v562
        %v2036 = vunpack.c.h.b16 %v562
        %v2037 = vunpack.c.l.b16 %v563
        %v2038 = vunpack.c.h.b16 %v563
        %v2039 = vunpack.c.l.b16 %v564
        %v2040 = vunpack.c.h.b16 %v564
        %v2041 = vunpack.c.l.b16 %v565
        %v2042 = vunpack.c.h.b16 %v565
        %v2043 = vunpack.c.l.b16 %v566
        %v2044 = vunpack.c.h.b16 %v566
        %v2045 = vunpack.c.l.b16 %v567
        %v2046 = vunpack.c.h.b16 %v567
        %v2047 = vunpack.c.l.b16 %v568
        %v2048 = vunpack.c.h.b16 %v568
        %v2049 = vunpack.c.l.b16 %v569
        %v2050 = vunpack.c.h.b16 %v569
        %v2051 = vunpack.c.l.b16 %v570
        %v2052 = vunpack.c.h.b16 %v570
        %v2053 = vunpack.c.l.b16 %v571
        %v2054 = vunpack.c.h.b16 %v571
        %v2055 = vunpack.c.l.b16 %v572
        %v2056 = vunpack.c.h.b16 %v572
        %v2057 = vunpack.c.l.b16 %v573
        %v2058 = vunpack.c.h.b16 %v573
        %v2059 = vunpack.c.l.b16 %v574
        %v2060 = vunpack.c.h.b16 %v574
        %v2061 = vunpack.c.l.b16 %v575
        %v2062 = vunpack.c.h.b16 %v575
        %v2063 = vunpack.c.l.b16 %v576
        %v2064 = vunpack.c.h.b16 %v576
        %v2065 = vunpack.c.l.b16 %v577
        %v2066 = vunpack.c.h.b16 %v577
        %v2067 = vunpack.c.l.b16 %v578
        %v2068 = vunpack.c.h.b16 %v578
        %v2069 = vunpack.c.l.b16 %v579
        %v2070 = vunpack.c.h.b16 %v579
        %v2071 = vunpack.c.l.b16 %v580
        %v2072 = vunpack.c.h.b16 %v580
        %v2073 = vunpack.c.l.b16 %v581
        %v2074 = vunpack.c.h.b16 %v581
        %v2075 = vunpack.c.l.b16 %v582
        %v2076 = vunpack.c.h.b16 %v582
        %v2077 = vunpack.c.l.b16 %v583
        %v2078 = vunpack.c.h.b16 %v583
        %v2079 = vunpack.c.l.b16 %v584
        %v2080 = vunpack.c.h.b16 %v584
        %v2081 = vunpack.c.l.b16 %v585
        %v2082 = vunpack.c.h.b16 %v585
        %v2083 = vunpack.c.l.b16 %v586
        %v2084 = vunpack.c.h.b16 %v586
        %v2085 = vunpack.c.l.b16 %v587
        %v2086 = vunpack.c.h.b16 %v587
        %v2087 = vunpack.c.l.b16 %v588
        %v2088 = vunpack.c.h.b16 %v588
        %v2089 = vunpack.c.l.b16 %v589
        %v2090 = vunpack.c.h.b16 %v589
        %v2091 = vunpack.c.l.b16 %v590
        %v2092 = vunpack.c.h.b16 %v590
        %v2093 = vunpack.c.l.b16 %v591
        %v2094 = vunpack.c.h.b16 %v591
        %v2095 = vunpack.c.l.b16 %v592
        %v2096 = vunpack.c.h.b16 %v592
        %v2097 = vunpack.c.l.b16 %v593
        %v2098 = vunpack.c.h.b16 %v593
        %v2099 = vunpack.c.l.b16 %v594
        %v2100 = vunpack.c.h.b16 %v594
        %v2101 = vunpack.c.l.b16 %v595
        %v2102 = vunpack.c.h.b16 %v595
        %v2103 = vunpack.c.l.b16 %v596
        %v2104 = vunpack.c.h.b16 %v596
        %v2105 = vunpack.c.l.b16 %v597
        %v2106 = vunpack.c.h.b16 %v597
        %v2107 = vunpack.c.l.b16 %v598
        %v2108 = vunpack.c.h.b16 %v598
        %v2109 = vunpack.c.l.b16 %v599
        %v2110 = vunpack.c.h.b16 %v599
        %v2111 = vunpack.c.l.b16 %v600
        %v2112 = vunpack.c.h.b16 %v600
        %v2113 = vunpack.c.l.b16 %v601
        %v2114 = vunpack.c.h.b16 %v601
        %v2115 = vunpack.c.l.b16 %v602
        %v2116 = vunpack.c.h.b16 %v602
        %v2117 = vunpack.c.l.b16 %v603
        %v2118 = vunpack.c.h.b16 %v603
        %v2119 = vunpack.c.l.b16 %v604
        %v2120 = vunpack.c.h.b16 %v604
        %v2121 = vunpack.c.l.b16 %v605
        %v2122 = vunpack.c.h.b16 %v605
        %v2123 = vunpack.c.l.b16 %v606
        %v2124 = vunpack.c.h.b16 %v606
        %v2125 = vunpack.c.l.b16 %v607
        %v2126 = vunpack.c.h.b16 %v607
        %v2127 = vunpack.c.l.b16 %v608
        %v2128 = vunpack.c.h.b16 %v608
        %v2129 = vunpack.c.l.b16 %v609
        %v2130 = vunpack.c.h.b16 %v609
        %v2131 = vunpack.c.l.b16 %v610
        %v2132 = vunpack.c.h.b16 %v610
        %v2133 = vunpack.c.l.b16 %v611
        %v2134 = vunpack.c.h.b16 %v611
        %v2135 = vunpack.c.l.b16 %v612
        %v2136 = vunpack.c.h.b16 %v612
        %v2137 = vunpack.c.l.b16 %v613
        %v2138 = vunpack.c.h.b16 %v613
        %v2139 = vunpack.c.l.b16 %v614
        %v2140 = vunpack.c.h.b16 %v614
        %v2141 = vunpack.c.l.b16 %v615
        %v2142 = vunpack.c.h.b16 %v615
        %v2143 = vunpack.c.l.b16 %v616
        %v2144 = vunpack.c.h.b16 %v616
        %v2145 = vunpack.c.l.b16 %v617
        %v2146 = vunpack.c.h.b16 %v617
        %v2147 = vunpack.c.l.b16 %v618
        %v2148 = vunpack.c.h.b16 %v618
        %v2149 = vunpack.c.l.b16 %v619
        %v2150 = vunpack.c.h.b16 %v619
        %v2151 = vunpack.c.l.b16 %v620
        %v2152 = vunpack.c.h.b16 %v620
        %v2153 = vunpack.c.l.b16 %v621
        %v2154 = vunpack.c.h.b16 %v621
        %v2155 = vunpack.c.l.b16 %v622
        %v2156 = vunpack.c.h.b16 %v622
        %v2157 = vunpack.c.l.b16 %v623
        %v2158 = vunpack.c.h.b16 %v623
        %v2159 = vunpack.c.l.b16 %v624
        %v2160 = vunpack.c.h.b16 %v624
        %v2161 = vunpack.c.l.b16 %v625
        %v2162 = vunpack.c.h.b16 %v625
        %v2163 = vunpack.c.l.b16 %v626
        %v2164 = vunpack.c.h.b16 %v626
        %v2165 = vunpack.c.l.b16 %v627
        %v2166 = vunpack.c.h.b16 %v627
        %v2167 = vunpack.c.l.b16 %v628
        %v2168 = vunpack.c.h.b16 %v628
        %v2169 = vunpack.c.l.b16 %v629
        %v2170 = vunpack.c.h.b16 %v629
        %v2171 = vunpack.c.l.b16 %v630
        %v2172 = vunpack.c.h.b16 %v630
        %v2173 = vunpack.c.l.b16 %v631
        %v2174 = vunpack.c.h.b16 %v631
        %v2175 = vunpack.c.l.b16 %v632
        %v2176 = vunpack.c.h.b16 %v632
        %v2177 = vunpack.c.l.b16 %v633
        %v2178 = vunpack.c.h.b16 %v633
        %v2179 = vunpack.c.l.b16 %v634
        %v2180 = vunpack.c.h.b16 %v634
        %v2181 = vunpack.c.l.b16 %v635
        %v2182 = vunpack.c.h.b16 %v635
        %v2183 = vunpack.c.l.b16 %v636
        %v2184 = vunpack.c.h.b16 %v636
        %v2185 = vunpack.c.l.b16 %v637
        %v2186 = vunpack.c.h.b16 %v637
        %v2187 = vunpack.c.l.b16 %v638
        %v2188 = vunpack.c.h.b16 %v638
        %v2189 = vunpack.c.l.b16 %v639
        %v2190 = vunpack.c.h.b16 %v639
        %v2191 = vunpack.c.l.b16 %v640
        %v2192 = vunpack.c.h.b16 %v640
        %v2193 = vunpack.c.l.b16 %v641
        %v2194 = vunpack.c.h.b16 %v641
        %v2195 = vunpack.c.l.b16 %v642
        %v2196 = vunpack.c.h.b16 %v642
        %v2197 = vunpack.c.l.b16 %v643
        %v2198 = vunpack.c.h.b16 %v643
        %v2199 = vunpack.c.l.b16 %v644
        %v2200 = vunpack.c.h.b16 %v644
        %v2201 = vunpack.c.l.b16 %v645
        %v2202 = vunpack.c.h.b16 %v645
        %v2203 = vunpack.c.l.b16 %v646
        %v2204 = vunpack.c.h.b16 %v646
        %v2205 = vunpack.c.l.b16 %v647
        %v2206 = vunpack.c.h.b16 %v647
        %v2207 = vunpack.c.l.b16 %v648
        %v2208 = vunpack.c.h.b16 %v648
        %v2209 = vunpack.c.l.b16 %v649
        %v2210 = vunpack.c.h.b16 %v649
        %v2211 = vunpack.c.l.b16 %v650
        %v2212 = vunpack.c.h.b16 %v650
        %v2213 = vunpack.c.l.b16 %v651
        %v2214 = vunpack.c.h.b16 %v651
        %v2215 = vunpack.c.l.b16 %v652
        %v2216 = vunpack.c.h.b16 %v652
        %v2217 = vunpack.c.l.b16 %v653
        %v2218 = vunpack.c.h.b16 %v653
        %v2219 = vunpack.c.l.b16 %v654
        %v2220 = vunpack.c.h.b16 %v654
        %v2221 = vunpack.c.l.b16 %v655
        %v2222 = vunpack.c.h.b16 %v655
        %v2223 = vunpack.c.l.b16 %v656
        %v2224 = vunpack.c.h.b16 %v656
        %v2225 = vunpack.c.l.b16 %v657
        %v2226 = vunpack.c.h.b16 %v657
        %v2227 = vunpack.c.l.b16 %v658
        %v2228 = vunpack.c.h.b16 %v658
        %v2229 = vunpack.c.l.b16 %v659
        %v2230 = vunpack.c.h.b16 %v659
        %v2231 = vunpack.c.l.b16 %v660
        %v2232 = vunpack.c.h.b16 %v660
        %v2233 = vunpack.c.l.b16 %v661
        %v2234 = vunpack.c.h.b16 %v661
        %v2235 = vunpack.c.l.b16 %v662
        %v2236 = vunpack.c.h.b16 %v662
        %v2237 = vunpack.c.l.b16 %v663
        %v2238 = vunpack.c.h.b16 %v663
        %v2239 = vunpack.c.l.b16 %v664
        %v2240 = vunpack.c.h.b16 %v664
        %v2241 = vunpack.c.l.b16 %v665
        %v2242 = vunpack.c.h.b16 %v665
        %v2243 = vunpack.c.l.b16 %v666
        %v2244 = vunpack.c.h.b16 %v666
        %v2245 = vunpack.c.l.b16 %v667
        %v2246 = vunpack.c.h.b16 %v667
        %v2247 = vunpack.c.l.b16 %v668
        %v2248 = vunpack.c.h.b16 %v668
        %v2249 = vunpack.c.l.b16 %v669
        %v2250 = vunpack.c.h.b16 %v669
        %v2251 = vunpack.c.l.b16 %v670
        %v2252 = vunpack.c.h.b16 %v670
        %v2253 = vunpack.c.l.b16 %v671
        %v2254 = vunpack.c.h.b16 %v671
        %v2255 = vunpack.c.l.b16 %v672
        %v2256 = vunpack.c.h.b16 %v672
        %v2257 = vunpack.c.l.b16 %v673
        %v2258 = vunpack.c.h.b16 %v673
        %v2259 = vunpack.c.l.b16 %v674
        %v2260 = vunpack.c.h.b16 %v674
        %v2261 = vunpack.c.l.b16 %v675
        %v2262 = vunpack.c.h.b16 %v675
        %v2263 = vunpack.c.l.b16 %v676
        %v2264 = vunpack.c.h.b16 %v676
        %v2265 = vunpack.c.l.b16 %v677
        %v2266 = vunpack.c.h.b16 %v677
        %v2267 = vunpack.c.l.b16 %v678
        %v2268 = vunpack.c.h.b16 %v678
        %v2269 = vunpack.c.l.b16 %v679
        %v2270 = vunpack.c.h.b16 %v679
        %v2271 = vunpack.c.l.b16 %v680
        %v2272 = vunpack.c.h.b16 %v680
        %v2273 = vunpack.c.l.b16 %v681
        %v2274 = vunpack.c.h.b16 %v681
        %v2275 = vunpack.c.l.b16 %v682
        %v2276 = vunpack.c.h.b16 %v682
        %v2277 = vunpack.c.l.b16 %v683
        %v2278 = vunpack.c.h.b16 %v683
        %v2279 = vunpack.c.l.b16 %v684
        %v2280 = vunpack.c.h.b16 %v684
        %v2281 = vunpack.c.l.b16 %v685
        %v2282 = vunpack.c.h.b16 %v685
        %v2283 = vunpack.c.l.b16 %v686
        %v2284 = vunpack.c.h.b16 %v686
        %v2285 = vunpack.c.l.b16 %v687
        %v2286 = vunpack.c.h.b16 %v687
        %v2287 = vunpack.c.l.b16 %v688
        %v2288 = vunpack.c.h.b16 %v688
        %v2289 = vunpack.c.l.b16 %v689
        %v2290 = vunpack.c.h.b16 %v689
        %v2291 = vunpack.c.l.b16 %v690
        %v2292 = vunpack.c.h.b16 %v690
        %v2293 = vunpack.c.l.b16 %v691
        %v2294 = vunpack.c.h.b16 %v691
        %v2295 = vunpack.c.l.b16 %v692
        %v2296 = vunpack.c.h.b16 %v692
        %v2297 = vunpack.c.l.b16 %v693
        %v2298 = vunpack.c.h.b16 %v693
        %v2299 = vunpack.c.l.b16 %v694
        %v2300 = vunpack.c.h.b16 %v694
        %v2301 = vunpack.c.l.b16 %v695
        %v2302 = vunpack.c.h.b16 %v695
        %v2303 = vunpack.c.l.b16 %v696
        %v2304 = vunpack.c.h.b16 %v696
        %v2305 = vunpack.c.l.b16 %v697
        %v2306 = vunpack.c.h.b16 %v697
        %v2307 = vunpack.c.l.b16 %v698
        %v2308 = vunpack.c.h.b16 %v698
        %v2309 = vunpack.c.l.b16 %v699
        %v2310 = vunpack.c.h.b16 %v699
        %v2311 = vunpack.c.l.b16 %v700
        %v2312 = vunpack.c.h.b16 %v700
        %v2313 = vunpack.c.l.b16 %v701
        %v2314 = vunpack.c.h.b16 %v701
        %v2315 = vunpack.c.l.b16 %v702
        %v2316 = vunpack.c.h.b16 %v702
        %v2317 = vunpack.c.l.b16 %v703
        %v2318 = vunpack.c.h.b16 %v703
        %v2319 = vunpack.c.l.b16 %v704
        %v2320 = vunpack.c.h.b16 %v704
        %v2321 = vunpack.c.l.b16 %v705
        %v2322 = vunpack.c.h.b16 %v705
        %v2323 = vunpack.c.l.b16 %v706
        %v2324 = vunpack.c.h.b16 %v706
        %v2325 = vunpack.c.l.b16 %v707
        %v2326 = vunpack.c.h.b16 %v707
        %v2327 = vunpack.c.l.b16 %v708
        %v2328 = vunpack.c.h.b16 %v708
        %v2329 = vunpack.c.l.b16 %v709
        %v2330 = vunpack.c.h.b16 %v709
        %v2331 = vunpack.c.l.b16 %v710
        %v2332 = vunpack.c.h.b16 %v710
        %v2333 = vunpack.c.l.b16 %v711
        %v2334 = vunpack.c.h.b16 %v711
        %v2335 = vunpack.c.l.b16 %v712
        %v2336 = vunpack.c.h.b16 %v712
        %v2337 = vunpack.c.l.b16 %v713
        %v2338 = vunpack.c.h.b16 %v713
        %v2339 = vunpack.c.l.b16 %v714
        %v2340 = vunpack.c.h.b16 %v714
        %v2341 = vunpack.c.l.b16 %v715
        %v2342 = vunpack.c.h.b16 %v715
        %v2343 = vunpack.c.l.b16 %v716
        %v2344 = vunpack.c.h.b16 %v716
        %v2345 = vunpack.c.l.b16 %v717
        %v2346 = vunpack.c.h.b16 %v717
        %v2347 = vunpack.c.l.b16 %v718
        %v2348 = vunpack.c.h.b16 %v718
        %v2349 = vunpack.c.l.b16 %v719
        %v2350 = vunpack.c.h.b16 %v719
        %v2351 = vunpack.c.l.b16 %v720
        %v2352 = vunpack.c.h.b16 %v720
        %v2353 = vunpack.c.l.b16 %v721
        %v2354 = vunpack.c.h.b16 %v721
        %v2355 = vunpack.c.l.b16 %v722
        %v2356 = vunpack.c.h.b16 %v722
        %v2357 = vunpack.c.l.b16 %v723
        %v2358 = vunpack.c.h.b16 %v723
        %v2359 = vunpack.c.l.b16 %v724
        %v2360 = vunpack.c.h.b16 %v724
        %v2361 = vunpack.c.l.b16 %v725
        %v2362 = vunpack.c.h.b16 %v725
        %v2363 = vunpack.c.l.b16 %v726
        %v2364 = vunpack.c.h.b16 %v726
        %v2365 = vunpack.c.l.b16 %v727
        %v2366 = vunpack.c.h.b16 %v727
        %v2367 = vunpack.c.l.b16 %v728
        %v2368 = vunpack.c.h.b16 %v728
        %v2369 = vunpack.c.l.b16 %v729
        %v2370 = vunpack.c.h.b16 %v729
        %v2371 = vunpack.c.l.b16 %v730
        %v2372 = vunpack.c.h.b16 %v730
        %v2373 = vunpack.c.l.b16 %v731
        %v2374 = vunpack.c.h.b16 %v731
        %v2375 = vunpack.c.l.b16 %v732
        %v2376 = vunpack.c.h.b16 %v732
        %v2377 = vunpack.c.l.b16 %v733
        %v2378 = vunpack.c.h.b16 %v733
        %v2379 = vunpack.c.l.b16 %v734
        %v2380 = vunpack.c.h.b16 %v734
        %v2381 = vunpack.c.l.b16 %v735
        %v2382 = vunpack.c.h.b16 %v735
        %v2383 = vunpack.c.l.b16 %v736
        %v2384 = vunpack.c.h.b16 %v736
        %v2385 = vunpack.c.l.b16 %v737
        %v2386 = vunpack.c.h.b16 %v737
        %v2387 = vunpack.c.l.b16 %v738
        %v2388 = vunpack.c.h.b16 %v738
        %v2389 = vunpack.c.l.b16 %v739
        %v2390 = vunpack.c.h.b16 %v739
        %v2391 = vunpack.c.l.b16 %v740
        %v2392 = vunpack.c.h.b16 %v740
        %v2393 = vunpack.c.l.b16 %v741
        %v2394 = vunpack.c.h.b16 %v741
        %v2395 = vunpack.c.l.b16 %v742
        %v2396 = vunpack.c.h.b16 %v742
        %v2397 = vunpack.c.l.b16 %v743
        %v2398 = vunpack.c.h.b16 %v743
        %v2399 = vunpack.c.l.b16 %v744
        %v2400 = vunpack.c.h.b16 %v744
        %v2401 = vunpack.c.l.b16 %v745
        %v2402 = vunpack.c.h.b16 %v745
        %v2403 = vunpack.c.l.b16 %v746
        %v2404 = vunpack.c.h.b16 %v746
        %v2405 = vunpack.c.l.b16 %v747
        %v2406 = vunpack.c.h.b16 %v747
        %v2407 = vunpack.c.l.b16 %v748
        %v2408 = vunpack.c.h.b16 %v748
        %v2409 = vunpack.c.l.b16 %v749
        %v2410 = vunpack.c.h.b16 %v749
        %v2411 = vunpack.c.l.b16 %v750
        %v2412 = vunpack.c.h.b16 %v750
        %v2413 = vunpack.c.l.b16 %v751
        %v2414 = vunpack.c.h.b16 %v751
        %v2415 = vunpack.c.l.b16 %v752
        %v2416 = vunpack.c.h.b16 %v752
        %v2417 = vpack.c.b16 %v1401, %v1393
        %v2418 = vpack.c.b16 %v1402, %v1394
        %v2419 = vpack.c.b16 %v1403, %v1395
        %v2420 = vpack.c.b16 %v1404, %v1396
        %v2421 = vpack.c.b16 %v1405, %v1397
        %v2422 = vpack.c.b16 %v1406, %v1398
        %v2423 = vpack.c.b16 %v1407, %v1399
        %v2424 = vpack.c.b16 %v1408, %v1400
        %v2425 = vpack.c.b16 %v1417, %v1409
        %v2426 = vpack.c.b16 %v1418, %v1410
        %v2427 = vpack.c.b16 %v1419, %v1411
        %v2428 = vpack.c.b16 %v1420, %v1412
        %v2429 = vpack.c.b16 %v1421, %v1413
        %v2430 = vpack.c.b16 %v1422, %v1414
        %v2431 = vpack.c.b16 %v1423, %v1415
        %v2432 = vpack.c.b16 %v1424, %v1416
        %v2433 = vpack.c.b16 %v1433, %v1425
        %v2434 = vpack.c.b16 %v1434, %v1426
        %v2435 = vpack.c.b16 %v1435, %v1427
        %v2436 = vpack.c.b16 %v1436, %v1428
        %v2437 = vpack.c.b16 %v1437, %v1429
        %v2438 = vpack.c.b16 %v1438, %v1430
        %v2439 = vpack.c.b16 %v1439, %v1431
        %v2440 = vpack.c.b16 %v1440, %v1432
        %v2441 = vpack.c.b16 %v1449, %v1441
        %v2442 = vpack.c.b16 %v1450, %v1442
        %v2443 = vpack.c.b16 %v1451, %v1443
        %v2444 = vpack.c.b16 %v1452, %v1444
        %v2445 = vpack.c.b16 %v1453, %v1445
        %v2446 = vpack.c.b16 %v1454, %v1446
        %v2447 = vpack.c.b16 %v1455, %v1447
        %v2448 = vpack.c.b16 %v1456, %v1448
        %v2449 = vpack.c.b16 %v1465, %v1457
        %v2450 = vpack.c.b16 %v1466, %v1458
        %v2451 = vpack.c.b16 %v1467, %v1459
        %v2452 = vpack.c.b16 %v1468, %v1460
        %v2453 = vpack.c.b16 %v1469, %v1461
        %v2454 = vpack.c.b16 %v1470, %v1462
        %v2455 = vpack.c.b16 %v1471, %v1463
        %v2456 = vpack.c.b16 %v1472, %v1464
        %v2457 = vpack.c.b16 %v1481, %v1473
        %v2458 = vpack.c.b16 %v1482, %v1474
        %v2459 = vpack.c.b16 %v1483, %v1475
        %v2460 = vpack.c.b16 %v1484, %v1476
        %v2461 = vpack.c.b16 %v1485, %v1477
        %v2462 = vpack.c.b16 %v1486, %v1478
        %v2463 = vpack.c.b16 %v1487, %v1479
        %v2464 = vpack.c.b16 %v1488, %v1480
        %v2465 = vpack.c.b16 %v1497, %v1489
        %v2466 = vpack.c.b16 %v1498, %v1490
        %v2467 = vpack.c.b16 %v1499, %v1491
        %v2468 = vpack.c.b16 %v1500, %v1492
        %v2469 = vpack.c.b16 %v1501, %v1493
        %v2470 = vpack.c.b16 %v1502, %v1494
        %v2471 = vpack.c.b16 %v1503, %v1495
        %v2472 = vpack.c.b16 %v1504, %v1496
        %v2473 = vpack.c.b16 %v1513, %v1505
        %v2474 = vpack.c.b16 %v1514, %v1506
        %v2475 = vpack.c.b16 %v1515, %v1507
        %v2476 = vpack.c.b16 %v1516, %v1508
        %v2477 = vpack.c.b16 %v1517, %v1509
        %v2478 = vpack.c.b16 %v1518, %v1510
        %v2479 = vpack.c.b16 %v1519, %v1511
        %v2480 = vpack.c.b16 %v1520, %v1512
        %v2481 = vpack.c.b16 %v1529, %v1521
        %v2482 = vpack.c.b16 %v1530, %v1522
        %v2483 = vpack.c.b16 %v1531, %v1523
        %v2484 = vpack.c.b16 %v1532, %v1524
        %v2485 = vpack.c.b16 %v1533, %v1525
        %v2486 = vpack.c.b16 %v1534, %v1526
        %v2487 = vpack.c.b16 %v1535, %v1527
        %v2488 = vpack.c.b16 %v1536, %v1528
        %v2489 = vpack.c.b16 %v1545, %v1537
        %v2490 = vpack.c.b16 %v1546, %v1538
        %v2491 = vpack.c.b16 %v1547, %v1539
        %v2492 = vpack.c.b16 %v1548, %v1540
        %v2493 = vpack.c.b16 %v1549, %v1541
        %v2494 = vpack.c.b16 %v1550, %v1542
        %v2495 = vpack.c.b16 %v1551, %v1543
        %v2496 = vpack.c.b16 %v1552, %v1544
        %v2497 = vpack.c.b16 %v1561, %v1553
        %v2498 = vpack.c.b16 %v1562, %v1554
        %v2499 = vpack.c.b16 %v1563, %v1555
        %v2500 = vpack.c.b16 %v1564, %v1556
        %v2501 = vpack.c.b16 %v1565, %v1557
        %v2502 = vpack.c.b16 %v1566, %v1558
        %v2503 = vpack.c.b16 %v1567, %v1559
        %v2504 = vpack.c.b16 %v1568, %v1560
        %v2505 = vpack.c.b16 %v1577, %v1569
        %v2506 = vpack.c.b16 %v1578, %v1570
        %v2507 = vpack.c.b16 %v1579, %v1571
        %v2508 = vpack.c.b16 %v1580, %v1572
        %v2509 = vpack.c.b16 %v1581, %v1573
        %v2510 = vpack.c.b16 %v1582, %v1574
        %v2511 = vpack.c.b16 %v1583, %v1575
        %v2512 = vpack.c.b16 %v1584, %v1576
        %v2513 = vpack.c.b16 %v1593, %v1585
        %v2514 = vpack.c.b16 %v1594, %v1586
        %v2515 = vpack.c.b16 %v1595, %v1587
        %v2516 = vpack.c.b16 %v1596, %v1588
        %v2517 = vpack.c.b16 %v1597, %v1589
        %v2518 = vpack.c.b16 %v1598, %v1590
        %v2519 = vpack.c.b16 %v1599, %v1591
        %v2520 = vpack.c.b16 %v1600, %v1592
        %v2521 = vpack.c.b16 %v1609, %v1601
        %v2522 = vpack.c.b16 %v1610, %v1602
        %v2523 = vpack.c.b16 %v1611, %v1603
        %v2524 = vpack.c.b16 %v1612, %v1604
        %v2525 = vpack.c.b16 %v1613, %v1605
        %v2526 = vpack.c.b16 %v1614, %v1606
        %v2527 = vpack.c.b16 %v1615, %v1607
        %v2528 = vpack.c.b16 %v1616, %v1608
        %v2529 = vpack.c.b16 %v1625, %v1617
        %v2530 = vpack.c.b16 %v1626, %v1618
        %v2531 = vpack.c.b16 %v1627, %v1619
        %v2532 = vpack.c.b16 %v1628, %v1620
        %v2533 = vpack.c.b16 %v1629, %v1621
        %v2534 = vpack.c.b16 %v1630, %v1622
        %v2535 = vpack.c.b16 %v1631, %v1623
        %v2536 = vpack.c.b16 %v1632, %v1624
        %v2537 = vpack.c.b16 %v1641, %v1633
        %v2538 = vpack.c.b16 %v1642, %v1634
        %v2539 = vpack.c.b16 %v1643, %v1635
        %v2540 = vpack.c.b16 %v1644, %v1636
        %v2541 = vpack.c.b16 %v1645, %v1637
        %v2542 = vpack.c.b16 %v1646, %v1638
        %v2543 = vpack.c.b16 %v1647, %v1639
        %v2544 = vpack.c.b16 %v1648, %v1640
        %v2545 = vpack.c.b16 %v1657, %v1649
        %v2546 = vpack.c.b16 %v1658, %v1650
        %v2547 = vpack.c.b16 %v1659, %v1651
        %v2548 = vpack.c.b16 %v1660, %v1652
        %v2549 = vpack.c.b16 %v1661, %v1653
        %v2550 = vpack.c.b16 %v1662, %v1654
        %v2551 = vpack.c.b16 %v1663, %v1655
        %v2552 = vpack.c.b16 %v1664, %v1656
        %v2553 = vpack.c.b16 %v1673, %v1665
        %v2554 = vpack.c.b16 %v1674, %v1666
        %v2555 = vpack.c.b16 %v1675, %v1667
        %v2556 = vpack.c.b16 %v1676, %v1668
        %v2557 = vpack.c.b16 %v1677, %v1669
        %v2558 = vpack.c.b16 %v1678, %v1670
        %v2559 = vpack.c.b16 %v1679, %v1671
        %v2560 = vpack.c.b16 %v1680, %v1672
        %v2561 = vpack.c.b16 %v1689, %v1681
        %v2562 = vpack.c.b16 %v1690, %v1682
        %v2563 = vpack.c.b16 %v1691, %v1683
        %v2564 = vpack.c.b16 %v1692, %v1684
        %v2565 = vpack.c.b16 %v1693, %v1685
        %v2566 = vpack.c.b16 %v1694, %v1686
        %v2567 = vpack.c.b16 %v1695, %v1687
        %v2568 = vpack.c.b16 %v1696, %v1688
        %v2569 = vpack.c.b16 %v1705, %v1697
        %v2570 = vpack.c.b16 %v1706, %v1698
        %v2571 = vpack.c.b16 %v1707, %v1699
        %v2572 = vpack.c.b16 %v1708, %v1700
        %v2573 = vpack.c.b16 %v1709, %v1701
        %v2574 = vpack.c.b16 %v1710, %v1702
        %v2575 = vpack.c.b16 %v1711, %v1703
        %v2576 = vpack.c.b16 %v1712, %v1704
        %v2577 = vpack.c.b16 %v1721, %v1713
        %v2578 = vpack.c.b16 %v1722, %v1714
        %v2579 = vpack.c.b16 %v1723, %v1715
        %v2580 = vpack.c.b16 %v1724, %v1716
        %v2581 = vpack.c.b16 %v1725, %v1717
        %v2582 = vpack.c.b16 %v1726, %v1718
        %v2583 = vpack.c.b16 %v1727, %v1719
        %v2584 = vpack.c.b16 %v1728, %v1720
        %v2585 = vpack.c.b16 %v1737, %v1729
        %v2586 = vpack.c.b16 %v1738, %v1730
        %v2587 = vpack.c.b16 %v1739, %v1731
        %v2588 = vpack.c.b16 %v1740, %v1732
        %v2589 = vpack.c.b16 %v1741, %v1733
        %v2590 = vpack.c.b16 %v1742, %v1734
        %v2591 = vpack.c.b16 %v1743, %v1735
        %v2592 = vpack.c.b16 %v1744, %v1736
        %v2593 = vpack.c.b16 %v1753, %v1745
        %v2594 = vpack.c.b16 %v1754, %v1746
        %v2595 = vpack.c.b16 %v1755, %v1747
        %v2596 = vpack.c.b16 %v1756, %v1748
        %v2597 = vpack.c.b16 %v1757, %v1749
        %v2598 = vpack.c.b16 %v1758, %v1750
        %v2599 = vpack.c.b16 %v1759, %v1751
        %v2600 = vpack.c.b16 %v1760, %v1752
        %v2601 = vpack.c.b16 %v1769, %v1761
        %v2602 = vpack.c.b16 %v1770, %v1762
        %v2603 = vpack.c.b16 %v1771, %v1763
        %v2604 = vpack.c.b16 %v1772, %v1764
        %v2605 = vpack.c.b16 %v1773, %v1765
        %v2606 = vpack.c.b16 %v1774, %v1766
        %v2607 = vpack.c.b16 %v1775, %v1767
        %v2608 = vpack.c.b16 %v1776, %v1768
        %v2609 = vpack.c.b16 %v1785, %v1777
        %v2610 = vpack.c.b16 %v1786, %v1778
        %v2611 = vpack.c.b16 %v1787, %v1779
        %v2612 = vpack.c.b16 %v1788, %v1780
        %v2613 = vpack.c.b16 %v1789, %v1781
        %v2614 = vpack.c.b16 %v1790, %v1782
        %v2615 = vpack.c.b16 %v1791, %v1783
        %v2616 = vpack.c.b16 %v1792, %v1784
        %v2617 = vpack.c.b16 %v1801, %v1793
        %v2618 = vpack.c.b16 %v1802, %v1794
        %v2619 = vpack.c.b16 %v1803, %v1795
        %v2620 = vpack.c.b16 %v1804, %v1796
        %v2621 = vpack.c.b16 %v1805, %v1797
        %v2622 = vpack.c.b16 %v1806, %v1798
        %v2623 = vpack.c.b16 %v1807, %v1799
        %v2624 = vpack.c.b16 %v1808, %v1800
        %v2625 = vpack.c.b16 %v1817, %v1809
        %v2626 = vpack.c.b16 %v1818, %v1810
        %v2627 = vpack.c.b16 %v1819, %v1811
        %v2628 = vpack.c.b16 %v1820, %v1812
        %v2629 = vpack.c.b16 %v1821, %v1813
        %v2630 = vpack.c.b16 %v1822, %v1814
        %v2631 = vpack.c.b16 %v1823, %v1815
        %v2632 = vpack.c.b16 %v1824, %v1816
        %v2633 = vpack.c.b16 %v1833, %v1825
        %v2634 = vpack.c.b16 %v1834, %v1826
        %v2635 = vpack.c.b16 %v1835, %v1827
        %v2636 = vpack.c.b16 %v1836, %v1828
        %v2637 = vpack.c.b16 %v1837, %v1829
        %v2638 = vpack.c.b16 %v1838, %v1830
        %v2639 = vpack.c.b16 %v1839, %v1831
        %v2640 = vpack.c.b16 %v1840, %v1832
        %v2641 = vpack.c.b16 %v1849, %v1841
        %v2642 = vpack.c.b16 %v1850, %v1842
        %v2643 = vpack.c.b16 %v1851, %v1843
        %v2644 = vpack.c.b16 %v1852, %v1844
        %v2645 = vpack.c.b16 %v1853, %v1845
        %v2646 = vpack.c.b16 %v1854, %v1846
        %v2647 = vpack.c.b16 %v1855, %v1847
        %v2648 = vpack.c.b16 %v1856, %v1848
        %v2649 = vpack.c.b16 %v1865, %v1857
        %v2650 = vpack.c.b16 %v1866, %v1858
        %v2651 = vpack.c.b16 %v1867, %v1859
        %v2652 = vpack.c.b16 %v1868, %v1860
        %v2653 = vpack.c.b16 %v1869, %v1861
        %v2654 = vpack.c.b16 %v1870, %v1862
        %v2655 = vpack.c.b16 %v1871, %v1863
        %v2656 = vpack.c.b16 %v1872, %v1864
        %v2657 = vpack.c.b16 %v1881, %v1873
        %v2658 = vpack.c.b16 %v1882, %v1874
        %v2659 = vpack.c.b16 %v1883, %v1875
        %v2660 = vpack.c.b16 %v1884, %v1876
        %v2661 = vpack.c.b16 %v1885, %v1877
        %v2662 = vpack.c.b16 %v1886, %v1878
        %v2663 = vpack.c.b16 %v1887, %v1879
        %v2664 = vpack.c.b16 %v1888, %v1880
        %v2665 = vpack.c.b16 %v1897, %v1889
        %v2666 = vpack.c.b16 %v1898, %v1890
        %v2667 = vpack.c.b16 %v1899, %v1891
        %v2668 = vpack.c.b16 %v1900, %v1892
        %v2669 = vpack.c.b16 %v1901, %v1893
        %v2670 = vpack.c.b16 %v1902, %v1894
        %v2671 = vpack.c.b16 %v1903, %v1895
        %v2672 = vpack.c.b16 %v1904, %v1896
        %v2673 = vpack.c.b16 %v1913, %v1905
        %v2674 = vpack.c.b16 %v1914, %v1906
        %v2675 = vpack.c.b16 %v1915, %v1907
        %v2676 = vpack.c.b16 %v1916, %v1908
        %v2677 = vpack.c.b16 %v1917, %v1909
        %v2678 = vpack.c.b16 %v1918, %v1910
        %v2679 = vpack.c.b16 %v1919, %v1911
        %v2680 = vpack.c.b16 %v1920, %v1912
        %v2681 = vpack.c.b16 %v1929, %v1921
        %v2682 = vpack.c.b16 %v1930, %v1922
        %v2683 = vpack.c.b16 %v1931, %v1923
        %v2684 = vpack.c.b16 %v1932, %v1924
        %v2685 = vpack.c.b16 %v1933, %v1925
        %v2686 = vpack.c.b16 %v1934, %v1926
        %v2687 = vpack.c.b16 %v1935, %v1927
        %v2688 = vpack.c.b16 %v1936, %v1928
        %v2689 = vpack.c.b16 %v1945, %v1937
        %v2690 = vpack.c.b16 %v1946, %v1938
        %v2691 = vpack.c.b16 %v1947, %v1939
        %v2692 = vpack.c.b16 %v1948, %v1940
        %v2693 = vpack.c.b16 %v1949, %v1941
        %v2694 = vpack.c.b16 %v1950, %v1942
        %v2695 = vpack.c.b16 %v1951, %v1943
        %v2696 = vpack.c.b16 %v1952, %v1944
        %v2697 = vpack.c.b16 %v1961, %v1953
        %v2698 = vpack.c.b16 %v1962, %v1954
        %v2699 = vpack.c.b16 %v1963, %v1955
        %v2700 = vpack.c.b16 %v1964, %v1956
        %v2701 = vpack.c.b16 %v1965, %v1957
        %v2702 = vpack.c.b16 %v1966, %v1958
        %v2703 = vpack.c.b16 %v1967, %v1959
        %v2704 = vpack.c.b16 %v1968, %v1960
        %v2705 = vpack.c.b16 %v1977, %v1969
        %v2706 = vpack.c.b16 %v1978, %v1970
        %v2707 = vpack.c.b16 %v1979, %v1971
        %v2708 = vpack.c.b16 %v1980, %v1972
        %v2709 = vpack.c.b16 %v1981, %v1973
        %v2710 = vpack.c.b16 %v1982, %v1974
        %v2711 = vpack.c.b16 %v1983, %v1975
        %v2712 = vpack.c.b16 %v1984, %v1976
        %v2713 = vpack.c.b16 %v1993, %v1985
        %v2714 = vpack.c.b16 %v1994, %v1986
        %v2715 = vpack.c.b16 %v1995, %v1987
        %v2716 = vpack.c.b16 %v1996, %v1988
        %v2717 = vpack.c.b16 %v1997, %v1989
        %v2718 = vpack.c.b16 %v1998, %v1990
        %v2719 = vpack.c.b16 %v1999, %v1991
        %v2720 = vpack.c.b16 %v2000, %v1992
        %v2721 = vpack.c.b16 %v2009, %v2001
        %v2722 = vpack.c.b16 %v2010, %v2002
        %v2723 = vpack.c.b16 %v2011, %v2003
        %v2724 = vpack.c.b16 %v2012, %v2004
        %v2725 = vpack.c.b16 %v2013, %v2005
        %v2726 = vpack.c.b16 %v2014, %v2006
        %v2727 = vpack.c.b16 %v2015, %v2007
        %v2728 = vpack.c.b16 %v2016, %v2008
        %v2729 = vpack.c.b16 %v2025, %v2017
        %v2730 = vpack.c.b16 %v2026, %v2018
        %v2731 = vpack.c.b16 %v2027, %v2019
        %v2732 = vpack.c.b16 %v2028, %v2020
        %v2733 = vpack.c.b16 %v2029, %v2021
        %v2734 = vpack.c.b16 %v2030, %v2022
        %v2735 = vpack.c.b16 %v2031, %v2023
        %v2736 = vpack.c.b16 %v2032, %v2024
        %v2737 = vpack.c.b16 %v2041, %v2033
        %v2738 = vpack.c.b16 %v2042, %v2034
        %v2739 = vpack.c.b16 %v2043, %v2035
        %v2740 = vpack.c.b16 %v2044, %v2036
        %v2741 = vpack.c.b16 %v2045, %v2037
        %v2742 = vpack.c.b16 %v2046, %v2038
        %v2743 = vpack.c.b16 %v2047, %v2039
        %v2744 = vpack.c.b16 %v2048, %v2040
        %v2745 = vpack.c.b16 %v2057, %v2049
        %v2746 = vpack.c.b16 %v2058, %v2050
        %v2747 = vpack.c.b16 %v2059, %v2051
        %v2748 = vpack.c.b16 %v2060, %v2052
        %v2749 = vpack.c.b16 %v2061, %v2053
        %v2750 = vpack.c.b16 %v2062, %v2054
        %v2751 = vpack.c.b16 %v2063, %v2055
        %v2752 = vpack.c.b16 %v2064, %v2056
        %v2753 = vpack.c.b16 %v2073, %v2065
        %v2754 = vpack.c.b16 %v2074, %v2066
        %v2755 = vpack.c.b16 %v2075, %v2067
        %v2756 = vpack.c.b16 %v2076, %v2068
        %v2757 = vpack.c.b16 %v2077, %v2069
        %v2758 = vpack.c.b16 %v2078, %v2070
        %v2759 = vpack.c.b16 %v2079, %v2071
        %v2760 = vpack.c.b16 %v2080, %v2072
        %v2761 = vpack.c.b16 %v2089, %v2081
        %v2762 = vpack.c.b16 %v2090, %v2082
        %v2763 = vpack.c.b16 %v2091, %v2083
        %v2764 = vpack.c.b16 %v2092, %v2084
        %v2765 = vpack.c.b16 %v2093, %v2085
        %v2766 = vpack.c.b16 %v2094, %v2086
        %v2767 = vpack.c.b16 %v2095, %v2087
        %v2768 = vpack.c.b16 %v2096, %v2088
        %v2769 = vpack.c.b16 %v2105, %v2097
        %v2770 = vpack.c.b16 %v2106, %v2098
        %v2771 = vpack.c.b16 %v2107, %v2099
        %v2772 = vpack.c.b16 %v2108, %v2100
        %v2773 = vpack.c.b16 %v2109, %v2101
        %v2774 = vpack.c.b16 %v2110, %v2102
        %v2775 = vpack.c.b16 %v2111, %v2103
        %v2776 = vpack.c.b16 %v2112, %v2104
        %v2777 = vpack.c.b16 %v2121, %v2113
        %v2778 = vpack.c.b16 %v2122, %v2114
        %v2779 = vpack.c.b16 %v2123, %v2115
        %v2780 = vpack.c.b16 %v2124, %v2116
        %v2781 = vpack.c.b16 %v2125, %v2117
        %v2782 = vpack.c.b16 %v2126, %v2118
        %v2783 = vpack.c.b16 %v2127, %v2119
        %v2784 = vpack.c.b16 %v2128, %v2120
        %v2785 = vpack.c.b16 %v2137, %v2129
        %v2786 = vpack.c.b16 %v2138, %v2130
        %v2787 = vpack.c.b16 %v2139, %v2131
        %v2788 = vpack.c.b16 %v2140, %v2132
        %v2789 = vpack.c.b16 %v2141, %v2133
        %v2790 = vpack.c.b16 %v2142, %v2134
        %v2791 = vpack.c.b16 %v2143, %v2135
        %v2792 = vpack.c.b16 %v2144, %v2136
        %v2793 = vpack.c.b16 %v2153, %v2145
        %v2794 = vpack.c.b16 %v2154, %v2146
        %v2795 = vpack.c.b16 %v2155, %v2147
        %v2796 = vpack.c.b16 %v2156, %v2148
        %v2797 = vpack.c.b16 %v2157, %v2149
        %v2798 = vpack.c.b16 %v2158, %v2150
        %v2799 = vpack.c.b16 %v2159, %v2151
        %v2800 = vpack.c.b16 %v2160, %v2152
        %v2801 = vpack.c.b16 %v2169, %v2161
        %v2802 = vpack.c.b16 %v2170, %v2162
        %v2803 = vpack.c.b16 %v2171, %v2163
        %v2804 = vpack.c.b16 %v2172, %v2164
        %v2805 = vpack.c.b16 %v2173, %v2165
        %v2806 = vpack.c.b16 %v2174, %v2166
        %v2807 = vpack.c.b16 %v2175, %v2167
        %v2808 = vpack.c.b16 %v2176, %v2168
        %v2809 = vpack.c.b16 %v2185, %v2177
        %v2810 = vpack.c.b16 %v2186, %v2178
        %v2811 = vpack.c.b16 %v2187, %v2179
        %v2812 = vpack.c.b16 %v2188, %v2180
        %v2813 = vpack.c.b16 %v2189, %v2181
        %v2814 = vpack.c.b16 %v2190, %v2182
        %v2815 = vpack.c.b16 %v2191, %v2183
        %v2816 = vpack.c.b16 %v2192, %v2184
        %v2817 = vpack.c.b16 %v2201, %v2193
        %v2818 = vpack.c.b16 %v2202, %v2194
        %v2819 = vpack.c.b16 %v2203, %v2195
        %v2820 = vpack.c.b16 %v2204, %v2196
        %v2821 = vpack.c.b16 %v2205, %v2197
        %v2822 = vpack.c.b16 %v2206, %v2198
        %v2823 = vpack.c.b16 %v2207, %v2199
        %v2824 = vpack.c.b16 %v2208, %v2200
        %v2825 = vpack.c.b16 %v2217, %v2209
        %v2826 = vpack.c.b16 %v2218, %v2210
        %v2827 = vpack.c.b16 %v2219, %v2211
        %v2828 = vpack.c.b16 %v2220, %v2212
        %v2829 = vpack.c.b16 %v2221, %v2213
        %v2830 = vpack.c.b16 %v2222, %v2214
        %v2831 = vpack.c.b16 %v2223, %v2215
        %v2832 = vpack.c.b16 %v2224, %v2216
        %v2833 = vpack.c.b16 %v2233, %v2225
        %v2834 = vpack.c.b16 %v2234, %v2226
        %v2835 = vpack.c.b16 %v2235, %v2227
        %v2836 = vpack.c.b16 %v2236, %v2228
        %v2837 = vpack.c.b16 %v2237, %v2229
        %v2838 = vpack.c.b16 %v2238, %v2230
        %v2839 = vpack.c.b16 %v2239, %v2231
        %v2840 = vpack.c.b16 %v2240, %v2232
        %v2841 = vpack.c.b16 %v2249, %v2241
        %v2842 = vpack.c.b16 %v2250, %v2242
        %v2843 = vpack.c.b16 %v2251, %v2243
        %v2844 = vpack.c.b16 %v2252, %v2244
        %v2845 = vpack.c.b16 %v2253, %v2245
        %v2846 = vpack.c.b16 %v2254, %v2246
        %v2847 = vpack.c.b16 %v2255, %v2247
        %v2848 = vpack.c.b16 %v2256, %v2248
        %v2849 = vpack.c.b16 %v2265, %v2257
        %v2850 = vpack.c.b16 %v2266, %v2258
        %v2851 = vpack.c.b16 %v2267, %v2259
        %v2852 = vpack.c.b16 %v2268, %v2260
        %v2853 = vpack.c.b16 %v2269, %v2261
        %v2854 = vpack.c.b16 %v2270, %v2262
        %v2855 = vpack.c.b16 %v2271, %v2263
        %v2856 = vpack.c.b16 %v2272, %v2264
        %v2857 = vpack.c.b16 %v2281, %v2273
        %v2858 = vpack.c.b16 %v2282, %v2274
        %v2859 = vpack.c.b16 %v2283, %v2275
        %v2860 = vpack.c.b16 %v2284, %v2276
        %v2861 = vpack.c.b16 %v2285, %v2277
        %v2862 = vpack.c.b16 %v2286, %v2278
        %v2863 = vpack.c.b16 %v2287, %v2279
        %v2864 = vpack.c.b16 %v2288, %v2280
        %v2865 = vpack.c.b16 %v2297, %v2289
        %v2866 = vpack.c.b16 %v2298, %v2290
        %v2867 = vpack.c.b16 %v2299, %v2291
        %v2868 = vpack.c.b16 %v2300, %v2292
        %v2869 = vpack.c.b16 %v2301, %v2293
        %v2870 = vpack.c.b16 %v2302, %v2294
        %v2871 = vpack.c.b16 %v2303, %v2295
        %v2872 = vpack.c.b16 %v2304, %v2296
        %v2873 = vpack.c.b16 %v2313, %v2305
        %v2874 = vpack.c.b16 %v2314, %v2306
        %v2875 = vpack.c.b16 %v2315, %v2307
        %v2876 = vpack.c.b16 %v2316, %v2308
        %v2877 = vpack.c.b16 %v2317, %v2309
        %v2878 = vpack.c.b16 %v2318, %v2310
        %v2879 = vpack.c.b16 %v2319, %v2311
        %v2880 = vpack.c.b16 %v2320, %v2312
        %v2881 = vpack.c.b16 %v2329, %v2321
        %v2882 = vpack.c.b16 %v2330, %v2322
        %v2883 = vpack.c.b16 %v2331, %v2323
        %v2884 = vpack.c.b16 %v2332, %v2324
        %v2885 = vpack.c.b16 %v2333, %v2325
        %v2886 = vpack.c.b16 %v2334, %v2326
        %v2887 = vpack.c.b16 %v2335, %v2327
        %v2888 = vpack.c.b16 %v2336, %v2328
        %v2889 = vpack.c.b16 %v2345, %v2337
        %v2890 = vpack.c.b16 %v2346, %v2338
        %v2891 = vpack.c.b16 %v2347, %v2339
        %v2892 = vpack.c.b16 %v2348, %v2340
        %v2893 = vpack.c.b16 %v2349, %v2341
        %v2894 = vpack.c.b16 %v2350, %v2342
        %v2895 = vpack.c.b16 %v2351, %v2343
        %v2896 = vpack.c.b16 %v2352, %v2344
        %v2897 = vpack.c.b16 %v2361, %v2353
        %v2898 = vpack.c.b16 %v2362, %v2354
        %v2899 = vpack.c.b16 %v2363, %v2355
        %v2900 = vpack.c.b16 %v2364, %v2356
        %v2901 = vpack.c.b16 %v2365, %v2357
        %v2902 = vpack.c.b16 %v2366, %v2358
        %v2903 = vpack.c.b16 %v2367, %v2359
        %v2904 = vpack.c.b16 %v2368, %v2360
        %v2905 = vpack.c.b16 %v2377, %v2369
        %v2906 = vpack.c.b16 %v2378, %v2370
        %v2907 = vpack.c.b16 %v2379, %v2371
        %v2908 = vpack.c.b16 %v2380, %v2372
        %v2909 = vpack.c.b16 %v2381, %v2373
        %v2910 = vpack.c.b16 %v2382, %v2374
        %v2911 = vpack.c.b16 %v2383, %v2375
        %v2912 = vpack.c.b16 %v2384, %v2376
        %v2913 = vpack.c.b16 %v2393, %v2385
        %v2914 = vpack.c.b16 %v2394, %v2386
        %v2915 = vpack.c.b16 %v2395, %v2387
        %v2916 = vpack.c.b16 %v2396, %v2388
        %v2917 = vpack.c.b16 %v2397, %v2389
        %v2918 = vpack.c.b16 %v2398, %v2390
        %v2919 = vpack.c.b16 %v2399, %v2391
        %v2920 = vpack.c.b16 %v2400, %v2392
        %v2921 = vpack.c.b16 %v2409, %v2401
        %v2922 = vpack.c.b16 %v2410, %v2402
        %v2923 = vpack.c.b16 %v2411, %v2403
        %v2924 = vpack.c.b16 %v2412, %v2404
        %v2925 = vpack.c.b16 %v2413, %v2405
        %v2926 = vpack.c.b16 %v2414, %v2406
        %v2927 = vpack.c.b16 %v2415, %v2407
        %v2928 = vpack.c.b16 %v2416, %v2408
        %v3569 = vunpack.c.l.b16 %v753
        %v3570 = vunpack.c.l.b16 %v754
        %v3571 = vunpack.c.l.b16 %v755
        %v3572 = vunpack.c.l.b16 %v756
        %v3573 = vunpack.c.l.b16 %v757
        %v3574 = vunpack.c.l.b16 %v758
        %v3575 = vunpack.c.l.b16 %v759
        %v3576 = vunpack.c.l.b16 %v760
        %v3577 = vunpack.c.l.b16 %v761
        %v3578 = vunpack.c.l.b16 %v762
        %v3579 = vunpack.c.l.b16 %v763
        %v3580 = vunpack.c.l.b16 %v764
        %v3581 = vunpack.c.l.b16 %v765
        %v3582 = vunpack.c.l.b16 %v766
        %v3583 = vunpack.c.l.b16 %v767
        %v3584 = vunpack.c.l.b16 %v768
        %v3585 = vunpack.c.l.b16 %v769
        %v3586 = vunpack.c.l.b16 %v770
        %v3587 = vunpack.c.l.b16 %v771
        %v3588 = vunpack.c.l.b16 %v772
        %v3589 = vunpack.c.l.b16 %v773
        %v3590 = vunpack.c.l.b16 %v774
        %v3591 = vunpack.c.l.b16 %v775
        %v3592 = vunpack.c.l.b16 %v776
        %v3593 = vunpack.c.l.b16 %v777
        %v3594 = vunpack.c.l.b16 %v778
        %v3595 = vunpack.c.l.b16 %v779
        %v3596 = vunpack.c.l.b16 %v780
        %v3597 = vunpack.c.l.b16 %v781
        %v3598 = vunpack.c.l.b16 %v782
        %v3599 = vunpack.c.l.b16 %v783
        %v3600 = vunpack.c.l.b16 %v784
        %v3601 = vunpack.c.l.b16 %v785
        %v3602 = vunpack.c.l.b16 %v786
        %v3603 = vunpack.c.l.b16 %v787
        %v3604 = vunpack.c.l.b16 %v788
        %v3605 = vunpack.c.l.b16 %v789
        %v3606 = vunpack.c.l.b16 %v790
        %v3607 = vunpack.c.l.b16 %v791
        %v3608 = vunpack.c.l.b16 %v792
        %v3609 = vunpack.c.l.b16 %v793
        %v3610 = vunpack.c.l.b16 %v794
        %v3611 = vunpack.c.l.b16 %v795
        %v3612 = vunpack.c.l.b16 %v796
        %v3613 = vunpack.c.l.b16 %v797
        %v3614 = vunpack.c.l.b16 %v798
        %v3615 = vunpack.c.l.b16 %v799
        %v3616 = vunpack.c.l.b16 %v800
        %v3617 = vunpack.c.l.b16 %v801
        %v3618 = vunpack.c.l.b16 %v802
        %v3619 = vunpack.c.l.b16 %v803
        %v3620 = vunpack.c.l.b16 %v804
        %v3621 = vunpack.c.l.b16 %v805
        %v3622 = vunpack.c.l.b16 %v806
        %v3623 = vunpack.c.l.b16 %v807
        %v3624 = vunpack.c.l.b16 %v808
        %v3625 = vunpack.c.l.b16 %v809
        %v3626 = vunpack.c.l.b16 %v810
        %v3627 = vunpack.c.l.b16 %v811
        %v3628 = vunpack.c.l.b16 %v812
        %v3629 = vunpack.c.l.b16 %v813
        %v3630 = vunpack.c.l.b16 %v814
        %v3631 = vunpack.c.l.b16 %v815
        %v3632 = vunpack.c.l.b16 %v816
        %v3633 = vunpack.c.l.b16 %v817
        %v3634 = vunpack.c.l.b16 %v818
        %v3635 = vunpack.c.l.b16 %v819
        %v3636 = vunpack.c.l.b16 %v820
        %v3637 = vunpack.c.l.b16 %v821
        %v3638 = vunpack.c.l.b16 %v822
        %v3639 = vunpack.c.l.b16 %v823
        %v3640 = vunpack.c.l.b16 %v824
        %v3641 = vunpack.c.l.b16 %v825
        %v3642 = vunpack.c.l.b16 %v826
        %v3643 = vunpack.c.l.b16 %v827
        %v3644 = vunpack.c.l.b16 %v828
        %v3645 = vunpack.c.l.b16 %v829
        %v3646 = vunpack.c.l.b16 %v830
        %v3647 = vunpack.c.l.b16 %v831
        %v3648 = vunpack.c.l.b16 %v832
        %v3649 = vunpack.c.l.b16 %v833
        %v3650 = vunpack.c.l.b16 %v834
        %v3651 = vunpack.c.l.b16 %v835
        %v3652 = vunpack.c.l.b16 %v836
        %v3653 = vunpack.c.l.b16 %v837
        %v3654 = vunpack.c.l.b16 %v838
        %v3655 = vunpack.c.l.b16 %v839
        %v3656 = vunpack.c.l.b16 %v840
        %v3657 = vunpack.c.l.b16 %v841
        %v3658 = vunpack.c.l.b16 %v842
        %v3659 = vunpack.c.l.b16 %v843
        %v3660 = vunpack.c.l.b16 %v844
        %v3661 = vunpack.c.l.b16 %v845
        %v3662 = vunpack.c.l.b16 %v846
        %v3663 = vunpack.c.l.b16 %v847
        %v3664 = vunpack.c.l.b16 %v848
        %v3665 = vunpack.c.l.b16 %v849
        %v3666 = vunpack.c.l.b16 %v850
        %v3667 = vunpack.c.l.b16 %v851
        %v3668 = vunpack.c.l.b16 %v852
        %v3669 = vunpack.c.l.b16 %v853
        %v3670 = vunpack.c.l.b16 %v854
        %v3671 = vunpack.c.l.b16 %v855
        %v3672 = vunpack.c.l.b16 %v856
        %v3673 = vunpack.c.l.b16 %v857
        %v3674 = vunpack.c.l.b16 %v858
        %v3675 = vunpack.c.l.b16 %v859
        %v3676 = vunpack.c.l.b16 %v860
        %v3677 = vunpack.c.l.b16 %v861
        %v3678 = vunpack.c.l.b16 %v862
        %v3679 = vunpack.c.l.b16 %v863
        %v3680 = vunpack.c.l.b16 %v864
        %v3681 = vunpack.c.l.b16 %v865
        %v3682 = vunpack.c.l.b16 %v866
        %v3683 = vunpack.c.l.b16 %v867
        %v3684 = vunpack.c.l.b16 %v868
        %v3685 = vunpack.c.l.b16 %v869
        %v3686 = vunpack.c.l.b16 %v870
        %v3687 = vunpack.c.l.b16 %v871
        %v3688 = vunpack.c.l.b16 %v872
        %v3689 = vunpack.c.l.b16 %v873
        %v3690 = vunpack.c.l.b16 %v874
        %v3691 = vunpack.c.l.b16 %v875
        %v3692 = vunpack.c.l.b16 %v876
        %v3693 = vunpack.c.l.b16 %v877
        %v3694 = vunpack.c.l.b16 %v878
        %v3695 = vunpack.c.l.b16 %v879
        %v3696 = vunpack.c.l.b16 %v880
        %v3697 = vpack.c.b16 %v3570, %v3569
        %v3698 = vpack.c.b16 %v3572, %v3571
        %v3699 = vpack.c.b16 %v3574, %v3573
        %v3700 = vpack.c.b16 %v3576, %v3575
        %v3701 = vpack.c.b16 %v3578, %v3577
        %v3702 = vpack.c.b16 %v3580, %v3579
        %v3703 = vpack.c.b16 %v3582, %v3581
        %v3704 = vpack.c.b16 %v3584, %v3583
        %v3705 = vpack.c.b16 %v3586, %v3585
        %v3706 = vpack.c.b16 %v3588, %v3587
        %v3707 = vpack.c.b16 %v3590, %v3589
        %v3708 = vpack.c.b16 %v3592, %v3591
        %v3709 = vpack.c.b16 %v3594, %v3593
        %v3710 = vpack.c.b16 %v3596, %v3595
        %v3711 = vpack.c.b16 %v3598, %v3597
        %v3712 = vpack.c.b16 %v3600, %v3599
        %v3713 = vpack.c.b16 %v3602, %v3601
        %v3714 = vpack.c.b16 %v3604, %v3603
        %v3715 = vpack.c.b16 %v3606, %v3605
        %v3716 = vpack.c.b16 %v3608, %v3607
        %v3717 = vpack.c.b16 %v3610, %v3609
        %v3718 = vpack.c.b16 %v3612, %v3611
        %v3719 = vpack.c.b16 %v3614, %v3613
        %v3720 = vpack.c.b16 %v3616, %v3615
        %v3721 = vpack.c.b16 %v3618, %v3617
        %v3722 = vpack.c.b16 %v3620, %v3619
        %v3723 = vpack.c.b16 %v3622, %v3621
        %v3724 = vpack.c.b16 %v3624, %v3623
        %v3725 = vpack.c.b16 %v3626, %v3625
        %v3726 = vpack.c.b16 %v3628, %v3627
        %v3727 = vpack.c.b16 %v3630, %v3629
        %v3728 = vpack.c.b16 %v3632, %v3631
        %v3729 = vpack.c.b16 %v3634, %v3633
        %v3730 = vpack.c.b16 %v3636, %v3635
        %v3731 = vpack.c.b16 %v3638, %v3637
        %v3732 = vpack.c.b16 %v3640, %v3639
        %v3733 = vpack.c.b16 %v3642, %v3641
        %v3734 = vpack.c.b16 %v3644, %v3643
        %v3735 = vpack.c.b16 %v3646, %v3645
        %v3736 = vpack.c.b16 %v3648, %v3647
        %v3737 = vpack.c.b16 %v3650, %v3649
        %v3738 = vpack.c.b16 %v3652, %v3651
        %v3739 = vpack.c.b16 %v3654, %v3653
        %v3740 = vpack.c.b16 %v3656, %v3655
        %v3741 = vpack.c.b16 %v3658, %v3657
        %v3742 = vpack.c.b16 %v3660, %v3659
        %v3743 = vpack.c.b16 %v3662, %v3661
        %v3744 = vpack.c.b16 %v3664, %v3663
        %v3745 = vpack.c.b16 %v3666, %v3665
        %v3746 = vpack.c.b16 %v3668, %v3667
        %v3747 = vpack.c.b16 %v3670, %v3669
        %v3748 = vpack.c.b16 %v3672, %v3671
        %v3749 = vpack.c.b16 %v3674, %v3673
        %v3750 = vpack.c.b16 %v3676, %v3675
        %v3751 = vpack.c.b16 %v3678, %v3677
        %v3752 = vpack.c.b16 %v3680, %v3679
        %v3753 = vpack.c.b16 %v3682, %v3681
        %v3754 = vpack.c.b16 %v3684, %v3683
        %v3755 = vpack.c.b16 %v3686, %v3685
        %v3756 = vpack.c.b16 %v3688, %v3687
        %v3757 = vpack.c.b16 %v3690, %v3689
        %v3758 = vpack.c.b16 %v3692, %v3691
        %v3759 = vpack.c.b16 %v3694, %v3693
        %v3760 = vpack.c.b16 %v3696, %v3695
        %3825 = vmatpush.bf16.msra.mxu0 %v3704
        %3826 = vmatpush.bf16.msra.mxu0 %v3703
        %3827 = vmatpush.bf16.msra.mxu0 %v3702
        %3828 = vmatpush.bf16.msra.mxu0 %v3701
        %3829 = vmatpush.bf16.msra.mxu0 %v3700
        %3830 = vmatpush.bf16.msra.mxu0 %v3699
        %3831 = vmatpush.bf16.msra.mxu0 %v3698
        %3832 = vmatpush.bf16.msra.mxu0 %v3697
        %3833 = vmatmul.bf16.gmra.mxu0 %v2417
        %v3834 = vpop.f32.mrf.mxu0
        %v3835 = vadd.f32 0.0, %v3834
        %v3836 = vpop.f32.mrf.mxu0
        %v3837 = vadd.f32 0.0, %v3836
        %3838 = vmatmul.bf16.gmra.mxu0 %v2425
        %v3839 = vpop.f32.mrf.mxu0
        %v3840 = vadd.f32 0.0, %v3839
        %v3841 = vpop.f32.mrf.mxu0
        %v3842 = vadd.f32 0.0, %v3841
        %3843 = vmatmul.bf16.gmra.mxu0 %v2433
        %v3844 = vpop.f32.mrf.mxu0
        %v3845 = vadd.f32 0.0, %v3844
        %v3846 = vpop.f32.mrf.mxu0
        %v3847 = vadd.f32 0.0, %v3846
        %3848 = vmatmul.bf16.gmra.mxu0 %v2441
        %v3849 = vpop.f32.mrf.mxu0
        %v3850 = vadd.f32 0.0, %v3849
        %v3851 = vpop.f32.mrf.mxu0
        %v3852 = vadd.f32 0.0, %v3851
        %3853 = vmatmul.bf16.gmra.mxu0 %v2449
        %v3854 = vpop.f32.mrf.mxu0
        %v3855 = vadd.f32 0.0, %v3854
        %v3856 = vpop.f32.mrf.mxu0
        %v3857 = vadd.f32 0.0, %v3856
        %3858 = vmatmul.bf16.gmra.mxu0 %v2457
        %v3859 = vpop.f32.mrf.mxu0
        %v3860 = vadd.f32 0.0, %v3859
        %v3861 = vpop.f32.mrf.mxu0
        %v3862 = vadd.f32 0.0, %v3861
        %3863 = vmatmul.bf16.gmra.mxu0 %v2465
        %v3864 = vpop.f32.mrf.mxu0
        %v3865 = vadd.f32 0.0, %v3864
        %v3866 = vpop.f32.mrf.mxu0
        %v3867 = vadd.f32 0.0, %v3866
        %3868 = vmatmul.bf16.gmra.mxu0 %v2473
        %v3869 = vpop.f32.mrf.mxu0
        %v3870 = vadd.f32 0.0, %v3869
        %v3871 = vpop.f32.mrf.mxu0
        %v3872 = vadd.f32 0.0, %v3871
        %3873 = vmatmul.bf16.gmra.mxu0 %v2481
        %v3874 = vpop.f32.mrf.mxu0
        %v3875 = vadd.f32 0.0, %v3874
        %v3876 = vpop.f32.mrf.mxu0
        %v3877 = vadd.f32 0.0, %v3876
        %3878 = vmatmul.bf16.gmra.mxu0 %v2489
        %v3879 = vpop.f32.mrf.mxu0
        %v3880 = vadd.f32 0.0, %v3879
        %v3881 = vpop.f32.mrf.mxu0
        %v3882 = vadd.f32 0.0, %v3881
        %3883 = vmatmul.bf16.gmra.mxu0 %v2497
        %v3884 = vpop.f32.mrf.mxu0
        %v3885 = vadd.f32 0.0, %v3884
        %v3886 = vpop.f32.mrf.mxu0
        %v3887 = vadd.f32 0.0, %v3886
        %3888 = vmatmul.bf16.gmra.mxu0 %v2505
        %v3889 = vpop.f32.mrf.mxu0
        %v3890 = vadd.f32 0.0, %v3889
        %v3891 = vpop.f32.mrf.mxu0
        %v3892 = vadd.f32 0.0, %v3891
        %3893 = vmatmul.bf16.gmra.mxu0 %v2513
        %v3894 = vpop.f32.mrf.mxu0
        %v3895 = vadd.f32 0.0, %v3894
        %v3896 = vpop.f32.mrf.mxu0
        %v3897 = vadd.f32 0.0, %v3896
        %3898 = vmatmul.bf16.gmra.mxu0 %v2521
        %v3899 = vpop.f32.mrf.mxu0
        %v3900 = vadd.f32 0.0, %v3899
        %v3901 = vpop.f32.mrf.mxu0
        %v3902 = vadd.f32 0.0, %v3901
        %3903 = vmatmul.bf16.gmra.mxu0 %v2529
        %v3904 = vpop.f32.mrf.mxu0
        %v3905 = vadd.f32 0.0, %v3904
        %v3906 = vpop.f32.mrf.mxu0
        %v3907 = vadd.f32 0.0, %v3906
        %3908 = vmatmul.bf16.gmra.mxu0 %v2537
        %v3909 = vpop.f32.mrf.mxu0
        %v3910 = vadd.f32 0.0, %v3909
        %v3911 = vpop.f32.mrf.mxu0
        %v3912 = vadd.f32 0.0, %v3911
        %3913 = vmatmul.bf16.gmra.mxu0 %v2545
        %v3914 = vpop.f32.mrf.mxu0
        %v3915 = vadd.f32 0.0, %v3914
        %v3916 = vpop.f32.mrf.mxu0
        %v3917 = vadd.f32 0.0, %v3916
        %3918 = vmatmul.bf16.gmra.mxu0 %v2553
        %v3919 = vpop.f32.mrf.mxu0
        %v3920 = vadd.f32 0.0, %v3919
        %v3921 = vpop.f32.mrf.mxu0
        %v3922 = vadd.f32 0.0, %v3921
        %3923 = vmatmul.bf16.gmra.mxu0 %v2561
        %v3924 = vpop.f32.mrf.mxu0
        %v3925 = vadd.f32 0.0, %v3924
        %v3926 = vpop.f32.mrf.mxu0
        %v3927 = vadd.f32 0.0, %v3926
        %3928 = vmatmul.bf16.gmra.mxu0 %v2569
        %v3929 = vpop.f32.mrf.mxu0
        %v3930 = vadd.f32 0.0, %v3929
        %v3931 = vpop.f32.mrf.mxu0
        %v3932 = vadd.f32 0.0, %v3931
        %3933 = vmatmul.bf16.gmra.mxu0 %v2577
        %v3934 = vpop.f32.mrf.mxu0
        %v3935 = vadd.f32 0.0, %v3934
        %v3936 = vpop.f32.mrf.mxu0
        %v3937 = vadd.f32 0.0, %v3936
        %3938 = vmatmul.bf16.gmra.mxu0 %v2585
        %v3939 = vpop.f32.mrf.mxu0
        %v3940 = vadd.f32 0.0, %v3939
        %v3941 = vpop.f32.mrf.mxu0
        %v3942 = vadd.f32 0.0, %v3941
        %3943 = vmatmul.bf16.gmra.mxu0 %v2593
        %v3944 = vpop.f32.mrf.mxu0
        %v3945 = vadd.f32 0.0, %v3944
        %v3946 = vpop.f32.mrf.mxu0
        %v3947 = vadd.f32 0.0, %v3946
        %3948 = vmatmul.bf16.gmra.mxu0 %v2601
        %v3949 = vpop.f32.mrf.mxu0
        %v3950 = vadd.f32 0.0, %v3949
        %v3951 = vpop.f32.mrf.mxu0
        %v3952 = vadd.f32 0.0, %v3951
        %3953 = vmatmul.bf16.gmra.mxu0 %v2609
        %v3954 = vpop.f32.mrf.mxu0
        %v3955 = vadd.f32 0.0, %v3954
        %v3956 = vpop.f32.mrf.mxu0
        %v3957 = vadd.f32 0.0, %v3956
        %3958 = vmatmul.bf16.gmra.mxu0 %v2617
        %v3959 = vpop.f32.mrf.mxu0
        %v3960 = vadd.f32 0.0, %v3959
        %v3961 = vpop.f32.mrf.mxu0
        %v3962 = vadd.f32 0.0, %v3961
        %3963 = vmatmul.bf16.gmra.mxu0 %v2625
        %v3964 = vpop.f32.mrf.mxu0
        %v3965 = vadd.f32 0.0, %v3964
        %v3966 = vpop.f32.mrf.mxu0
        %v3967 = vadd.f32 0.0, %v3966
        %3968 = vmatmul.bf16.gmra.mxu0 %v2633
        %v3969 = vpop.f32.mrf.mxu0
        %v3970 = vadd.f32 0.0, %v3969
        %v3971 = vpop.f32.mrf.mxu0
        %v3972 = vadd.f32 0.0, %v3971
        %3973 = vmatmul.bf16.gmra.mxu0 %v2641
        %v3974 = vpop.f32.mrf.mxu0
        %v3975 = vadd.f32 0.0, %v3974
        %v3976 = vpop.f32.mrf.mxu0
        %v3977 = vadd.f32 0.0, %v3976
        %3978 = vmatmul.bf16.gmra.mxu0 %v2649
        %v3979 = vpop.f32.mrf.mxu0
        %v3980 = vadd.f32 0.0, %v3979
        %v3981 = vpop.f32.mrf.mxu0
        %v3982 = vadd.f32 0.0, %v3981
        %3983 = vmatmul.bf16.gmra.mxu0 %v2657
        %v3984 = vpop.f32.mrf.mxu0
        %v3985 = vadd.f32 0.0, %v3984
        %v3986 = vpop.f32.mrf.mxu0
        %v3987 = vadd.f32 0.0, %v3986
        %3988 = vmatmul.bf16.gmra.mxu0 %v2665
        %v3989 = vpop.f32.mrf.mxu0
        %v3990 = vadd.f32 0.0, %v3989
        %v3991 = vpop.f32.mrf.mxu0
        %v3992 = vadd.f32 0.0, %v3991
        %3993 = vmatmul.bf16.gmra.mxu0 %v2673
        %v3994 = vpop.f32.mrf.mxu0
        %v3995 = vadd.f32 0.0, %v3994
        %v3996 = vpop.f32.mrf.mxu0
        %v3997 = vadd.f32 0.0, %v3996
        %3998 = vmatmul.bf16.gmra.mxu0 %v2681
        %v3999 = vpop.f32.mrf.mxu0
        %v4000 = vadd.f32 0.0, %v3999
        %v4001 = vpop.f32.mrf.mxu0
        %v4002 = vadd.f32 0.0, %v4001
        %4003 = vmatmul.bf16.gmra.mxu0 %v2689
        %v4004 = vpop.f32.mrf.mxu0
        %v4005 = vadd.f32 0.0, %v4004
        %v4006 = vpop.f32.mrf.mxu0
        %v4007 = vadd.f32 0.0, %v4006
        %4008 = vmatmul.bf16.gmra.mxu0 %v2697
        %v4009 = vpop.f32.mrf.mxu0
        %v4010 = vadd.f32 0.0, %v4009
        %v4011 = vpop.f32.mrf.mxu0
        %v4012 = vadd.f32 0.0, %v4011
        %4013 = vmatmul.bf16.gmra.mxu0 %v2705
        %v4014 = vpop.f32.mrf.mxu0
        %v4015 = vadd.f32 0.0, %v4014
        %v4016 = vpop.f32.mrf.mxu0
        %v4017 = vadd.f32 0.0, %v4016
        %4018 = vmatmul.bf16.gmra.mxu0 %v2713
        %v4019 = vpop.f32.mrf.mxu0
        %v4020 = vadd.f32 0.0, %v4019
        %v4021 = vpop.f32.mrf.mxu0
        %v4022 = vadd.f32 0.0, %v4021
        %4023 = vmatmul.bf16.gmra.mxu0 %v2721
        %v4024 = vpop.f32.mrf.mxu0
        %v4025 = vadd.f32 0.0, %v4024
        %v4026 = vpop.f32.mrf.mxu0
        %v4027 = vadd.f32 0.0, %v4026
        %4028 = vmatmul.bf16.gmra.mxu0 %v2729
        %v4029 = vpop.f32.mrf.mxu0
        %v4030 = vadd.f32 0.0, %v4029
        %v4031 = vpop.f32.mrf.mxu0
        %v4032 = vadd.f32 0.0, %v4031
        %4033 = vmatmul.bf16.gmra.mxu0 %v2737
        %v4034 = vpop.f32.mrf.mxu0
        %v4035 = vadd.f32 0.0, %v4034
        %v4036 = vpop.f32.mrf.mxu0
        %v4037 = vadd.f32 0.0, %v4036
        %4038 = vmatmul.bf16.gmra.mxu0 %v2745
        %v4039 = vpop.f32.mrf.mxu0
        %v4040 = vadd.f32 0.0, %v4039
        %v4041 = vpop.f32.mrf.mxu0
        %v4042 = vadd.f32 0.0, %v4041
        %4043 = vmatmul.bf16.gmra.mxu0 %v2753
        %v4044 = vpop.f32.mrf.mxu0
        %v4045 = vadd.f32 0.0, %v4044
        %v4046 = vpop.f32.mrf.mxu0
        %v4047 = vadd.f32 0.0, %v4046
        %4048 = vmatmul.bf16.gmra.mxu0 %v2761
        %v4049 = vpop.f32.mrf.mxu0
        %v4050 = vadd.f32 0.0, %v4049
        %v4051 = vpop.f32.mrf.mxu0
        %v4052 = vadd.f32 0.0, %v4051
        %4053 = vmatmul.bf16.gmra.mxu0 %v2769
        %v4054 = vpop.f32.mrf.mxu0
        %v4055 = vadd.f32 0.0, %v4054
        %v4056 = vpop.f32.mrf.mxu0
        %v4057 = vadd.f32 0.0, %v4056
        %4058 = vmatmul.bf16.gmra.mxu0 %v2777
        %v4059 = vpop.f32.mrf.mxu0
        %v4060 = vadd.f32 0.0, %v4059
        %v4061 = vpop.f32.mrf.mxu0
        %v4062 = vadd.f32 0.0, %v4061
        %4063 = vmatmul.bf16.gmra.mxu0 %v2785
        %v4064 = vpop.f32.mrf.mxu0
        %v4065 = vadd.f32 0.0, %v4064
        %v4066 = vpop.f32.mrf.mxu0
        %v4067 = vadd.f32 0.0, %v4066
        %4068 = vmatmul.bf16.gmra.mxu0 %v2793
        %v4069 = vpop.f32.mrf.mxu0
        %v4070 = vadd.f32 0.0, %v4069
        %v4071 = vpop.f32.mrf.mxu0
        %v4072 = vadd.f32 0.0, %v4071
        %4073 = vmatmul.bf16.gmra.mxu0 %v2801
        %v4074 = vpop.f32.mrf.mxu0
        %v4075 = vadd.f32 0.0, %v4074
        %v4076 = vpop.f32.mrf.mxu0
        %v4077 = vadd.f32 0.0, %v4076
        %4078 = vmatmul.bf16.gmra.mxu0 %v2809
        %v4079 = vpop.f32.mrf.mxu0
        %v4080 = vadd.f32 0.0, %v4079
        %v4081 = vpop.f32.mrf.mxu0
        %v4082 = vadd.f32 0.0, %v4081
        %4083 = vmatmul.bf16.gmra.mxu0 %v2817
        %v4084 = vpop.f32.mrf.mxu0
        %v4085 = vadd.f32 0.0, %v4084
        %v4086 = vpop.f32.mrf.mxu0
        %v4087 = vadd.f32 0.0, %v4086
        %4088 = vmatmul.bf16.gmra.mxu0 %v2825
        %v4089 = vpop.f32.mrf.mxu0
        %v4090 = vadd.f32 0.0, %v4089
        %v4091 = vpop.f32.mrf.mxu0
        %v4092 = vadd.f32 0.0, %v4091
        %4093 = vmatmul.bf16.gmra.mxu0 %v2833
        %v4094 = vpop.f32.mrf.mxu0
        %v4095 = vadd.f32 0.0, %v4094
        %v4096 = vpop.f32.mrf.mxu0
        %v4097 = vadd.f32 0.0, %v4096
        %4098 = vmatmul.bf16.gmra.mxu0 %v2841
        %v4099 = vpop.f32.mrf.mxu0
        %v4100 = vadd.f32 0.0, %v4099
        %v4101 = vpop.f32.mrf.mxu0
        %v4102 = vadd.f32 0.0, %v4101
        %4103 = vmatmul.bf16.gmra.mxu0 %v2849
        %v4104 = vpop.f32.mrf.mxu0
        %v4105 = vadd.f32 0.0, %v4104
        %v4106 = vpop.f32.mrf.mxu0
        %v4107 = vadd.f32 0.0, %v4106
        %4108 = vmatmul.bf16.gmra.mxu0 %v2857
        %v4109 = vpop.f32.mrf.mxu0
        %v4110 = vadd.f32 0.0, %v4109
        %v4111 = vpop.f32.mrf.mxu0
        %v4112 = vadd.f32 0.0, %v4111
        %4113 = vmatmul.bf16.gmra.mxu0 %v2865
        %v4114 = vpop.f32.mrf.mxu0
        %v4115 = vadd.f32 0.0, %v4114
        %v4116 = vpop.f32.mrf.mxu0
        %v4117 = vadd.f32 0.0, %v4116
        %4118 = vmatmul.bf16.gmra.mxu0 %v2873
        %v4119 = vpop.f32.mrf.mxu0
        %v4120 = vadd.f32 0.0, %v4119
        %v4121 = vpop.f32.mrf.mxu0
        %v4122 = vadd.f32 0.0, %v4121
        %4123 = vmatmul.bf16.gmra.mxu0 %v2881
        %v4124 = vpop.f32.mrf.mxu0
        %v4125 = vadd.f32 0.0, %v4124
        %v4126 = vpop.f32.mrf.mxu0
        %v4127 = vadd.f32 0.0, %v4126
        %4128 = vmatmul.bf16.gmra.mxu0 %v2889
        %v4129 = vpop.f32.mrf.mxu0
        %v4130 = vadd.f32 0.0, %v4129
        %v4131 = vpop.f32.mrf.mxu0
        %v4132 = vadd.f32 0.0, %v4131
        %4133 = vmatmul.bf16.gmra.mxu0 %v2897
        %v4134 = vpop.f32.mrf.mxu0
        %v4135 = vadd.f32 0.0, %v4134
        %v4136 = vpop.f32.mrf.mxu0
        %v4137 = vadd.f32 0.0, %v4136
        %4138 = vmatmul.bf16.gmra.mxu0 %v2905
        %v4139 = vpop.f32.mrf.mxu0
        %v4140 = vadd.f32 0.0, %v4139
        %v4141 = vpop.f32.mrf.mxu0
        %v4142 = vadd.f32 0.0, %v4141
        %4143 = vmatmul.bf16.gmra.mxu0 %v2913
        %v4144 = vpop.f32.mrf.mxu0
        %v4145 = vadd.f32 0.0, %v4144
        %v4146 = vpop.f32.mrf.mxu0
        %v4147 = vadd.f32 0.0, %v4146
        %4148 = vmatmul.bf16.gmra.mxu0 %v2921
        %v4149 = vpop.f32.mrf.mxu0
        %v4150 = vadd.f32 0.0, %v4149
        %v4151 = vpop.f32.mrf.mxu0
        %v4152 = vadd.f32 0.0, %v4151
        %4153 = vdwg.mxu0
        %4154 = vmatpush.bf16.msra.mxu0 %v3712
        %4155 = vmatpush.bf16.msra.mxu0 %v3711
        %4156 = vmatpush.bf16.msra.mxu0 %v3710
        %4157 = vmatpush.bf16.msra.mxu0 %v3709
        %4158 = vmatpush.bf16.msra.mxu0 %v3708
        %4159 = vmatpush.bf16.msra.mxu0 %v3707
        %4160 = vmatpush.bf16.msra.mxu0 %v3706
        %4161 = vmatpush.bf16.msra.mxu0 %v3705
        %4162 = vmatmul.bf16.gmra.mxu0 %v2418
        %v4163 = vpop.f32.mrf.mxu0
        %v4164 = vadd.f32 %v3835, %v4163
        %v4165 = vpop.f32.mrf.mxu0
        %v4166 = vadd.f32 %v3837, %v4165
        %4167 = vmatmul.bf16.gmra.mxu0 %v2426
        %v4168 = vpop.f32.mrf.mxu0
        %v4169 = vadd.f32 %v3840, %v4168
        %v4170 = vpop.f32.mrf.mxu0
        %v4171 = vadd.f32 %v3842, %v4170
        %4172 = vmatmul.bf16.gmra.mxu0 %v2434
        %v4173 = vpop.f32.mrf.mxu0
        %v4174 = vadd.f32 %v3845, %v4173
        %v4175 = vpop.f32.mrf.mxu0
        %v4176 = vadd.f32 %v3847, %v4175
        %4177 = vmatmul.bf16.gmra.mxu0 %v2442
        %v4178 = vpop.f32.mrf.mxu0
        %v4179 = vadd.f32 %v3850, %v4178
        %v4180 = vpop.f32.mrf.mxu0
        %v4181 = vadd.f32 %v3852, %v4180
        %4182 = vmatmul.bf16.gmra.mxu0 %v2450
        %v4183 = vpop.f32.mrf.mxu0
        %v4184 = vadd.f32 %v3855, %v4183
        %v4185 = vpop.f32.mrf.mxu0
        %v4186 = vadd.f32 %v3857, %v4185
        %4187 = vmatmul.bf16.gmra.mxu0 %v2458
        %v4188 = vpop.f32.mrf.mxu0
        %v4189 = vadd.f32 %v3860, %v4188
        %v4190 = vpop.f32.mrf.mxu0
        %v4191 = vadd.f32 %v3862, %v4190
        %4192 = vmatmul.bf16.gmra.mxu0 %v2466
        %v4193 = vpop.f32.mrf.mxu0
        %v4194 = vadd.f32 %v3865, %v4193
        %v4195 = vpop.f32.mrf.mxu0
        %v4196 = vadd.f32 %v3867, %v4195
        %4197 = vmatmul.bf16.gmra.mxu0 %v2474
        %v4198 = vpop.f32.mrf.mxu0
        %v4199 = vadd.f32 %v3870, %v4198
        %v4200 = vpop.f32.mrf.mxu0
        %v4201 = vadd.f32 %v3872, %v4200
        %4202 = vmatmul.bf16.gmra.mxu0 %v2482
        %v4203 = vpop.f32.mrf.mxu0
        %v4204 = vadd.f32 %v3875, %v4203
        %v4205 = vpop.f32.mrf.mxu0
        %v4206 = vadd.f32 %v3877, %v4205
        %4207 = vmatmul.bf16.gmra.mxu0 %v2490
        %v4208 = vpop.f32.mrf.mxu0
        %v4209 = vadd.f32 %v3880, %v4208
        %v4210 = vpop.f32.mrf.mxu0
        %v4211 = vadd.f32 %v3882, %v4210
        %4212 = vmatmul.bf16.gmra.mxu0 %v2498
        %v4213 = vpop.f32.mrf.mxu0
        %v4214 = vadd.f32 %v3885, %v4213
        %v4215 = vpop.f32.mrf.mxu0
        %v4216 = vadd.f32 %v3887, %v4215
        %4217 = vmatmul.bf16.gmra.mxu0 %v2506
        %v4218 = vpop.f32.mrf.mxu0
        %v4219 = vadd.f32 %v3890, %v4218
        %v4220 = vpop.f32.mrf.mxu0
        %v4221 = vadd.f32 %v3892, %v4220
        %4222 = vmatmul.bf16.gmra.mxu0 %v2514
        %v4223 = vpop.f32.mrf.mxu0
        %v4224 = vadd.f32 %v3895, %v4223
        %v4225 = vpop.f32.mrf.mxu0
        %v4226 = vadd.f32 %v3897, %v4225
        %4227 = vmatmul.bf16.gmra.mxu0 %v2522
        %v4228 = vpop.f32.mrf.mxu0
        %v4229 = vadd.f32 %v3900, %v4228
        %v4230 = vpop.f32.mrf.mxu0
        %v4231 = vadd.f32 %v3902, %v4230
        %4232 = vmatmul.bf16.gmra.mxu0 %v2530
        %v4233 = vpop.f32.mrf.mxu0
        %v4234 = vadd.f32 %v3905, %v4233
        %v4235 = vpop.f32.mrf.mxu0
        %v4236 = vadd.f32 %v3907, %v4235
        %4237 = vmatmul.bf16.gmra.mxu0 %v2538
        %v4238 = vpop.f32.mrf.mxu0
        %v4239 = vadd.f32 %v3910, %v4238
        %v4240 = vpop.f32.mrf.mxu0
        %v4241 = vadd.f32 %v3912, %v4240
        %4242 = vmatmul.bf16.gmra.mxu0 %v2546
        %v4243 = vpop.f32.mrf.mxu0
        %v4244 = vadd.f32 %v3915, %v4243
        %v4245 = vpop.f32.mrf.mxu0
        %v4246 = vadd.f32 %v3917, %v4245
        %4247 = vmatmul.bf16.gmra.mxu0 %v2554
        %v4248 = vpop.f32.mrf.mxu0
        %v4249 = vadd.f32 %v3920, %v4248
        %v4250 = vpop.f32.mrf.mxu0
        %v4251 = vadd.f32 %v3922, %v4250
        %4252 = vmatmul.bf16.gmra.mxu0 %v2562
        %v4253 = vpop.f32.mrf.mxu0
        %v4254 = vadd.f32 %v3925, %v4253
        %v4255 = vpop.f32.mrf.mxu0
        %v4256 = vadd.f32 %v3927, %v4255
        %4257 = vmatmul.bf16.gmra.mxu0 %v2570
        %v4258 = vpop.f32.mrf.mxu0
        %v4259 = vadd.f32 %v3930, %v4258
        %v4260 = vpop.f32.mrf.mxu0
        %v4261 = vadd.f32 %v3932, %v4260
        %4262 = vmatmul.bf16.gmra.mxu0 %v2578
        %v4263 = vpop.f32.mrf.mxu0
        %v4264 = vadd.f32 %v3935, %v4263
        %v4265 = vpop.f32.mrf.mxu0
        %v4266 = vadd.f32 %v3937, %v4265
        %4267 = vmatmul.bf16.gmra.mxu0 %v2586
        %v4268 = vpop.f32.mrf.mxu0
        %v4269 = vadd.f32 %v3940, %v4268
        %v4270 = vpop.f32.mrf.mxu0
        %v4271 = vadd.f32 %v3942, %v4270
        %4272 = vmatmul.bf16.gmra.mxu0 %v2594
        %v4273 = vpop.f32.mrf.mxu0
        %v4274 = vadd.f32 %v3945, %v4273
        %v4275 = vpop.f32.mrf.mxu0
        %v4276 = vadd.f32 %v3947, %v4275
        %4277 = vmatmul.bf16.gmra.mxu0 %v2602
        %v4278 = vpop.f32.mrf.mxu0
        %v4279 = vadd.f32 %v3950, %v4278
        %v4280 = vpop.f32.mrf.mxu0
        %v4281 = vadd.f32 %v3952, %v4280
        %4282 = vmatmul.bf16.gmra.mxu0 %v2610
        %v4283 = vpop.f32.mrf.mxu0
        %v4284 = vadd.f32 %v3955, %v4283
        %v4285 = vpop.f32.mrf.mxu0
        %v4286 = vadd.f32 %v3957, %v4285
        %4287 = vmatmul.bf16.gmra.mxu0 %v2618
        %v4288 = vpop.f32.mrf.mxu0
        %v4289 = vadd.f32 %v3960, %v4288
        %v4290 = vpop.f32.mrf.mxu0
        %v4291 = vadd.f32 %v3962, %v4290
        %4292 = vmatmul.bf16.gmra.mxu0 %v2626
        %v4293 = vpop.f32.mrf.mxu0
        %v4294 = vadd.f32 %v3965, %v4293
        %v4295 = vpop.f32.mrf.mxu0
        %v4296 = vadd.f32 %v3967, %v4295
        %4297 = vmatmul.bf16.gmra.mxu0 %v2634
        %v4298 = vpop.f32.mrf.mxu0
        %v4299 = vadd.f32 %v3970, %v4298
        %v4300 = vpop.f32.mrf.mxu0
        %v4301 = vadd.f32 %v3972, %v4300
        %4302 = vmatmul.bf16.gmra.mxu0 %v2642
        %v4303 = vpop.f32.mrf.mxu0
        %v4304 = vadd.f32 %v3975, %v4303
        %v4305 = vpop.f32.mrf.mxu0
        %v4306 = vadd.f32 %v3977, %v4305
        %4307 = vmatmul.bf16.gmra.mxu0 %v2650
        %v4308 = vpop.f32.mrf.mxu0
        %v4309 = vadd.f32 %v3980, %v4308
        %v4310 = vpop.f32.mrf.mxu0
        %v4311 = vadd.f32 %v3982, %v4310
        %4312 = vmatmul.bf16.gmra.mxu0 %v2658
        %v4313 = vpop.f32.mrf.mxu0
        %v4314 = vadd.f32 %v3985, %v4313
        %v4315 = vpop.f32.mrf.mxu0
        %v4316 = vadd.f32 %v3987, %v4315
        %4317 = vmatmul.bf16.gmra.mxu0 %v2666
        %v4318 = vpop.f32.mrf.mxu0
        %v4319 = vadd.f32 %v3990, %v4318
        %v4320 = vpop.f32.mrf.mxu0
        %v4321 = vadd.f32 %v3992, %v4320
        %4322 = vmatmul.bf16.gmra.mxu0 %v2674
        %v4323 = vpop.f32.mrf.mxu0
        %v4324 = vadd.f32 %v3995, %v4323
        %v4325 = vpop.f32.mrf.mxu0
        %v4326 = vadd.f32 %v3997, %v4325
        %4327 = vmatmul.bf16.gmra.mxu0 %v2682
        %v4328 = vpop.f32.mrf.mxu0
        %v4329 = vadd.f32 %v4000, %v4328
        %v4330 = vpop.f32.mrf.mxu0
        %v4331 = vadd.f32 %v4002, %v4330
        %4332 = vmatmul.bf16.gmra.mxu0 %v2690
        %v4333 = vpop.f32.mrf.mxu0
        %v4334 = vadd.f32 %v4005, %v4333
        %v4335 = vpop.f32.mrf.mxu0
        %v4336 = vadd.f32 %v4007, %v4335
        %4337 = vmatmul.bf16.gmra.mxu0 %v2698
        %v4338 = vpop.f32.mrf.mxu0
        %v4339 = vadd.f32 %v4010, %v4338
        %v4340 = vpop.f32.mrf.mxu0
        %v4341 = vadd.f32 %v4012, %v4340
        %4342 = vmatmul.bf16.gmra.mxu0 %v2706
        %v4343 = vpop.f32.mrf.mxu0
        %v4344 = vadd.f32 %v4015, %v4343
        %v4345 = vpop.f32.mrf.mxu0
        %v4346 = vadd.f32 %v4017, %v4345
        %4347 = vmatmul.bf16.gmra.mxu0 %v2714
        %v4348 = vpop.f32.mrf.mxu0
        %v4349 = vadd.f32 %v4020, %v4348
        %v4350 = vpop.f32.mrf.mxu0
        %v4351 = vadd.f32 %v4022, %v4350
        %4352 = vmatmul.bf16.gmra.mxu0 %v2722
        %v4353 = vpop.f32.mrf.mxu0
        %v4354 = vadd.f32 %v4025, %v4353
        %v4355 = vpop.f32.mrf.mxu0
        %v4356 = vadd.f32 %v4027, %v4355
        %4357 = vmatmul.bf16.gmra.mxu0 %v2730
        %v4358 = vpop.f32.mrf.mxu0
        %v4359 = vadd.f32 %v4030, %v4358
        %v4360 = vpop.f32.mrf.mxu0
        %v4361 = vadd.f32 %v4032, %v4360
        %4362 = vmatmul.bf16.gmra.mxu0 %v2738
        %v4363 = vpop.f32.mrf.mxu0
        %v4364 = vadd.f32 %v4035, %v4363
        %v4365 = vpop.f32.mrf.mxu0
        %v4366 = vadd.f32 %v4037, %v4365
        %4367 = vmatmul.bf16.gmra.mxu0 %v2746
        %v4368 = vpop.f32.mrf.mxu0
        %v4369 = vadd.f32 %v4040, %v4368
        %v4370 = vpop.f32.mrf.mxu0
        %v4371 = vadd.f32 %v4042, %v4370
        %4372 = vmatmul.bf16.gmra.mxu0 %v2754
        %v4373 = vpop.f32.mrf.mxu0
        %v4374 = vadd.f32 %v4045, %v4373
        %v4375 = vpop.f32.mrf.mxu0
        %v4376 = vadd.f32 %v4047, %v4375
        %4377 = vmatmul.bf16.gmra.mxu0 %v2762
        %v4378 = vpop.f32.mrf.mxu0
        %v4379 = vadd.f32 %v4050, %v4378
        %v4380 = vpop.f32.mrf.mxu0
        %v4381 = vadd.f32 %v4052, %v4380
        %4382 = vmatmul.bf16.gmra.mxu0 %v2770
        %v4383 = vpop.f32.mrf.mxu0
        %v4384 = vadd.f32 %v4055, %v4383
        %v4385 = vpop.f32.mrf.mxu0
        %v4386 = vadd.f32 %v4057, %v4385
        %4387 = vmatmul.bf16.gmra.mxu0 %v2778
        %v4388 = vpop.f32.mrf.mxu0
        %v4389 = vadd.f32 %v4060, %v4388
        %v4390 = vpop.f32.mrf.mxu0
        %v4391 = vadd.f32 %v4062, %v4390
        %4392 = vmatmul.bf16.gmra.mxu0 %v2786
        %v4393 = vpop.f32.mrf.mxu0
        %v4394 = vadd.f32 %v4065, %v4393
        %v4395 = vpop.f32.mrf.mxu0
        %v4396 = vadd.f32 %v4067, %v4395
        %4397 = vmatmul.bf16.gmra.mxu0 %v2794
        %v4398 = vpop.f32.mrf.mxu0
        %v4399 = vadd.f32 %v4070, %v4398
        %v4400 = vpop.f32.mrf.mxu0
        %v4401 = vadd.f32 %v4072, %v4400
        %4402 = vmatmul.bf16.gmra.mxu0 %v2802
        %v4403 = vpop.f32.mrf.mxu0
        %v4404 = vadd.f32 %v4075, %v4403
        %v4405 = vpop.f32.mrf.mxu0
        %v4406 = vadd.f32 %v4077, %v4405
        %4407 = vmatmul.bf16.gmra.mxu0 %v2810
        %v4408 = vpop.f32.mrf.mxu0
        %v4409 = vadd.f32 %v4080, %v4408
        %v4410 = vpop.f32.mrf.mxu0
        %v4411 = vadd.f32 %v4082, %v4410
        %4412 = vmatmul.bf16.gmra.mxu0 %v2818
        %v4413 = vpop.f32.mrf.mxu0
        %v4414 = vadd.f32 %v4085, %v4413
        %v4415 = vpop.f32.mrf.mxu0
        %v4416 = vadd.f32 %v4087, %v4415
        %4417 = vmatmul.bf16.gmra.mxu0 %v2826
        %v4418 = vpop.f32.mrf.mxu0
        %v4419 = vadd.f32 %v4090, %v4418
        %v4420 = vpop.f32.mrf.mxu0
        %v4421 = vadd.f32 %v4092, %v4420
        %4422 = vmatmul.bf16.gmra.mxu0 %v2834
        %v4423 = vpop.f32.mrf.mxu0
        %v4424 = vadd.f32 %v4095, %v4423
        %v4425 = vpop.f32.mrf.mxu0
        %v4426 = vadd.f32 %v4097, %v4425
        %4427 = vmatmul.bf16.gmra.mxu0 %v2842
        %v4428 = vpop.f32.mrf.mxu0
        %v4429 = vadd.f32 %v4100, %v4428
        %v4430 = vpop.f32.mrf.mxu0
        %v4431 = vadd.f32 %v4102, %v4430
        %4432 = vmatmul.bf16.gmra.mxu0 %v2850
        %v4433 = vpop.f32.mrf.mxu0
        %v4434 = vadd.f32 %v4105, %v4433
        %v4435 = vpop.f32.mrf.mxu0
        %v4436 = vadd.f32 %v4107, %v4435
        %4437 = vmatmul.bf16.gmra.mxu0 %v2858
        %v4438 = vpop.f32.mrf.mxu0
        %v4439 = vadd.f32 %v4110, %v4438
        %v4440 = vpop.f32.mrf.mxu0
        %v4441 = vadd.f32 %v4112, %v4440
        %4442 = vmatmul.bf16.gmra.mxu0 %v2866
        %v4443 = vpop.f32.mrf.mxu0
        %v4444 = vadd.f32 %v4115, %v4443
        %v4445 = vpop.f32.mrf.mxu0
        %v4446 = vadd.f32 %v4117, %v4445
        %4447 = vmatmul.bf16.gmra.mxu0 %v2874
        %v4448 = vpop.f32.mrf.mxu0
        %v4449 = vadd.f32 %v4120, %v4448
        %v4450 = vpop.f32.mrf.mxu0
        %v4451 = vadd.f32 %v4122, %v4450
        %4452 = vmatmul.bf16.gmra.mxu0 %v2882
        %v4453 = vpop.f32.mrf.mxu0
        %v4454 = vadd.f32 %v4125, %v4453
        %v4455 = vpop.f32.mrf.mxu0
        %v4456 = vadd.f32 %v4127, %v4455
        %4457 = vmatmul.bf16.gmra.mxu0 %v2890
        %v4458 = vpop.f32.mrf.mxu0
        %v4459 = vadd.f32 %v4130, %v4458
        %v4460 = vpop.f32.mrf.mxu0
        %v4461 = vadd.f32 %v4132, %v4460
        %4462 = vmatmul.bf16.gmra.mxu0 %v2898
        %v4463 = vpop.f32.mrf.mxu0
        %v4464 = vadd.f32 %v4135, %v4463
        %v4465 = vpop.f32.mrf.mxu0
        %v4466 = vadd.f32 %v4137, %v4465
        %4467 = vmatmul.bf16.gmra.mxu0 %v2906
        %v4468 = vpop.f32.mrf.mxu0
        %v4469 = vadd.f32 %v4140, %v4468
        %v4470 = vpop.f32.mrf.mxu0
        %v4471 = vadd.f32 %v4142, %v4470
        %4472 = vmatmul.bf16.gmra.mxu0 %v2914
        %v4473 = vpop.f32.mrf.mxu0
        %v4474 = vadd.f32 %v4145, %v4473
        %v4475 = vpop.f32.mrf.mxu0
        %v4476 = vadd.f32 %v4147, %v4475
        %4477 = vmatmul.bf16.gmra.mxu0 %v2922
        %v4478 = vpop.f32.mrf.mxu0
        %v4479 = vadd.f32 %v4150, %v4478
        %v4480 = vpop.f32.mrf.mxu0
        %v4481 = vadd.f32 %v4152, %v4480
        %4482 = vdwg.mxu0
        %4483 = vmatpush.bf16.msra.mxu0 %v3720
        %4484 = vmatpush.bf16.msra.mxu0 %v3719
        %4485 = vmatpush.bf16.msra.mxu0 %v3718
        %4486 = vmatpush.bf16.msra.mxu0 %v3717
        %4487 = vmatpush.bf16.msra.mxu0 %v3716
        %4488 = vmatpush.bf16.msra.mxu0 %v3715
        %4489 = vmatpush.bf16.msra.mxu0 %v3714
        %4490 = vmatpush.bf16.msra.mxu0 %v3713
        %4491 = vmatmul.bf16.gmra.mxu0 %v2419
        %v4492 = vpop.f32.mrf.mxu0
        %v4493 = vadd.f32 %v4164, %v4492
        %v4494 = vpop.f32.mrf.mxu0
        %v4495 = vadd.f32 %v4166, %v4494
        %4496 = vmatmul.bf16.gmra.mxu0 %v2427
        %v4497 = vpop.f32.mrf.mxu0
        %v4498 = vadd.f32 %v4169, %v4497
        %v4499 = vpop.f32.mrf.mxu0
        %v4500 = vadd.f32 %v4171, %v4499
        %4501 = vmatmul.bf16.gmra.mxu0 %v2435
        %v4502 = vpop.f32.mrf.mxu0
        %v4503 = vadd.f32 %v4174, %v4502
        %v4504 = vpop.f32.mrf.mxu0
        %v4505 = vadd.f32 %v4176, %v4504
        %4506 = vmatmul.bf16.gmra.mxu0 %v2443
        %v4507 = vpop.f32.mrf.mxu0
        %v4508 = vadd.f32 %v4179, %v4507
        %v4509 = vpop.f32.mrf.mxu0
        %v4510 = vadd.f32 %v4181, %v4509
        %4511 = vmatmul.bf16.gmra.mxu0 %v2451
        %v4512 = vpop.f32.mrf.mxu0
        %v4513 = vadd.f32 %v4184, %v4512
        %v4514 = vpop.f32.mrf.mxu0
        %v4515 = vadd.f32 %v4186, %v4514
        %4516 = vmatmul.bf16.gmra.mxu0 %v2459
        %v4517 = vpop.f32.mrf.mxu0
        %v4518 = vadd.f32 %v4189, %v4517
        %v4519 = vpop.f32.mrf.mxu0
        %v4520 = vadd.f32 %v4191, %v4519
        %4521 = vmatmul.bf16.gmra.mxu0 %v2467
        %v4522 = vpop.f32.mrf.mxu0
        %v4523 = vadd.f32 %v4194, %v4522
        %v4524 = vpop.f32.mrf.mxu0
        %v4525 = vadd.f32 %v4196, %v4524
        %4526 = vmatmul.bf16.gmra.mxu0 %v2475
        %v4527 = vpop.f32.mrf.mxu0
        %v4528 = vadd.f32 %v4199, %v4527
        %v4529 = vpop.f32.mrf.mxu0
        %v4530 = vadd.f32 %v4201, %v4529
        %4531 = vmatmul.bf16.gmra.mxu0 %v2483
        %v4532 = vpop.f32.mrf.mxu0
        %v4533 = vadd.f32 %v4204, %v4532
        %v4534 = vpop.f32.mrf.mxu0
        %v4535 = vadd.f32 %v4206, %v4534
        %4536 = vmatmul.bf16.gmra.mxu0 %v2491
        %v4537 = vpop.f32.mrf.mxu0
        %v4538 = vadd.f32 %v4209, %v4537
        %v4539 = vpop.f32.mrf.mxu0
        %v4540 = vadd.f32 %v4211, %v4539
        %4541 = vmatmul.bf16.gmra.mxu0 %v2499
        %v4542 = vpop.f32.mrf.mxu0
        %v4543 = vadd.f32 %v4214, %v4542
        %v4544 = vpop.f32.mrf.mxu0
        %v4545 = vadd.f32 %v4216, %v4544
        %4546 = vmatmul.bf16.gmra.mxu0 %v2507
        %v4547 = vpop.f32.mrf.mxu0
        %v4548 = vadd.f32 %v4219, %v4547
        %v4549 = vpop.f32.mrf.mxu0
        %v4550 = vadd.f32 %v4221, %v4549
        %4551 = vmatmul.bf16.gmra.mxu0 %v2515
        %v4552 = vpop.f32.mrf.mxu0
        %v4553 = vadd.f32 %v4224, %v4552
        %v4554 = vpop.f32.mrf.mxu0
        %v4555 = vadd.f32 %v4226, %v4554
        %4556 = vmatmul.bf16.gmra.mxu0 %v2523
        %v4557 = vpop.f32.mrf.mxu0
        %v4558 = vadd.f32 %v4229, %v4557
        %v4559 = vpop.f32.mrf.mxu0
        %v4560 = vadd.f32 %v4231, %v4559
        %4561 = vmatmul.bf16.gmra.mxu0 %v2531
        %v4562 = vpop.f32.mrf.mxu0
        %v4563 = vadd.f32 %v4234, %v4562
        %v4564 = vpop.f32.mrf.mxu0
        %v4565 = vadd.f32 %v4236, %v4564
        %4566 = vmatmul.bf16.gmra.mxu0 %v2539
        %v4567 = vpop.f32.mrf.mxu0
        %v4568 = vadd.f32 %v4239, %v4567
        %v4569 = vpop.f32.mrf.mxu0
        %v4570 = vadd.f32 %v4241, %v4569
        %4571 = vmatmul.bf16.gmra.mxu0 %v2547
        %v4572 = vpop.f32.mrf.mxu0
        %v4573 = vadd.f32 %v4244, %v4572
        %v4574 = vpop.f32.mrf.mxu0
        %v4575 = vadd.f32 %v4246, %v4574
        %4576 = vmatmul.bf16.gmra.mxu0 %v2555
        %v4577 = vpop.f32.mrf.mxu0
        %v4578 = vadd.f32 %v4249, %v4577
        %v4579 = vpop.f32.mrf.mxu0
        %v4580 = vadd.f32 %v4251, %v4579
        %4581 = vmatmul.bf16.gmra.mxu0 %v2563
        %v4582 = vpop.f32.mrf.mxu0
        %v4583 = vadd.f32 %v4254, %v4582
        %v4584 = vpop.f32.mrf.mxu0
        %v4585 = vadd.f32 %v4256, %v4584
        %4586 = vmatmul.bf16.gmra.mxu0 %v2571
        %v4587 = vpop.f32.mrf.mxu0
        %v4588 = vadd.f32 %v4259, %v4587
        %v4589 = vpop.f32.mrf.mxu0
        %v4590 = vadd.f32 %v4261, %v4589
        %4591 = vmatmul.bf16.gmra.mxu0 %v2579
        %v4592 = vpop.f32.mrf.mxu0
        %v4593 = vadd.f32 %v4264, %v4592
        %v4594 = vpop.f32.mrf.mxu0
        %v4595 = vadd.f32 %v4266, %v4594
        %4596 = vmatmul.bf16.gmra.mxu0 %v2587
        %v4597 = vpop.f32.mrf.mxu0
        %v4598 = vadd.f32 %v4269, %v4597
        %v4599 = vpop.f32.mrf.mxu0
        %v4600 = vadd.f32 %v4271, %v4599
        %4601 = vmatmul.bf16.gmra.mxu0 %v2595
        %v4602 = vpop.f32.mrf.mxu0
        %v4603 = vadd.f32 %v4274, %v4602
        %v4604 = vpop.f32.mrf.mxu0
        %v4605 = vadd.f32 %v4276, %v4604
        %4606 = vmatmul.bf16.gmra.mxu0 %v2603
        %v4607 = vpop.f32.mrf.mxu0
        %v4608 = vadd.f32 %v4279, %v4607
        %v4609 = vpop.f32.mrf.mxu0
        %v4610 = vadd.f32 %v4281, %v4609
        %4611 = vmatmul.bf16.gmra.mxu0 %v2611
        %v4612 = vpop.f32.mrf.mxu0
        %v4613 = vadd.f32 %v4284, %v4612
        %v4614 = vpop.f32.mrf.mxu0
        %v4615 = vadd.f32 %v4286, %v4614
        %4616 = vmatmul.bf16.gmra.mxu0 %v2619
        %v4617 = vpop.f32.mrf.mxu0
        %v4618 = vadd.f32 %v4289, %v4617
        %v4619 = vpop.f32.mrf.mxu0
        %v4620 = vadd.f32 %v4291, %v4619
        %4621 = vmatmul.bf16.gmra.mxu0 %v2627
        %v4622 = vpop.f32.mrf.mxu0
        %v4623 = vadd.f32 %v4294, %v4622
        %v4624 = vpop.f32.mrf.mxu0
        %v4625 = vadd.f32 %v4296, %v4624
        %4626 = vmatmul.bf16.gmra.mxu0 %v2635
        %v4627 = vpop.f32.mrf.mxu0
        %v4628 = vadd.f32 %v4299, %v4627
        %v4629 = vpop.f32.mrf.mxu0
        %v4630 = vadd.f32 %v4301, %v4629
        %4631 = vmatmul.bf16.gmra.mxu0 %v2643
        %v4632 = vpop.f32.mrf.mxu0
        %v4633 = vadd.f32 %v4304, %v4632
        %v4634 = vpop.f32.mrf.mxu0
        %v4635 = vadd.f32 %v4306, %v4634
        %4636 = vmatmul.bf16.gmra.mxu0 %v2651
        %v4637 = vpop.f32.mrf.mxu0
        %v4638 = vadd.f32 %v4309, %v4637
        %v4639 = vpop.f32.mrf.mxu0
        %v4640 = vadd.f32 %v4311, %v4639
        %4641 = vmatmul.bf16.gmra.mxu0 %v2659
        %v4642 = vpop.f32.mrf.mxu0
        %v4643 = vadd.f32 %v4314, %v4642
        %v4644 = vpop.f32.mrf.mxu0
        %v4645 = vadd.f32 %v4316, %v4644
        %4646 = vmatmul.bf16.gmra.mxu0 %v2667
        %v4647 = vpop.f32.mrf.mxu0
        %v4648 = vadd.f32 %v4319, %v4647
        %v4649 = vpop.f32.mrf.mxu0
        %v4650 = vadd.f32 %v4321, %v4649
        %4651 = vmatmul.bf16.gmra.mxu0 %v2675
        %v4652 = vpop.f32.mrf.mxu0
        %v4653 = vadd.f32 %v4324, %v4652
        %v4654 = vpop.f32.mrf.mxu0
        %v4655 = vadd.f32 %v4326, %v4654
        %4656 = vmatmul.bf16.gmra.mxu0 %v2683
        %v4657 = vpop.f32.mrf.mxu0
        %v4658 = vadd.f32 %v4329, %v4657
        %v4659 = vpop.f32.mrf.mxu0
        %v4660 = vadd.f32 %v4331, %v4659
        %4661 = vmatmul.bf16.gmra.mxu0 %v2691
        %v4662 = vpop.f32.mrf.mxu0
        %v4663 = vadd.f32 %v4334, %v4662
        %v4664 = vpop.f32.mrf.mxu0
        %v4665 = vadd.f32 %v4336, %v4664
        %4666 = vmatmul.bf16.gmra.mxu0 %v2699
        %v4667 = vpop.f32.mrf.mxu0
        %v4668 = vadd.f32 %v4339, %v4667
        %v4669 = vpop.f32.mrf.mxu0
        %v4670 = vadd.f32 %v4341, %v4669
        %4671 = vmatmul.bf16.gmra.mxu0 %v2707
        %v4672 = vpop.f32.mrf.mxu0
        %v4673 = vadd.f32 %v4344, %v4672
        %v4674 = vpop.f32.mrf.mxu0
        %v4675 = vadd.f32 %v4346, %v4674
        %4676 = vmatmul.bf16.gmra.mxu0 %v2715
        %v4677 = vpop.f32.mrf.mxu0
        %v4678 = vadd.f32 %v4349, %v4677
        %v4679 = vpop.f32.mrf.mxu0
        %v4680 = vadd.f32 %v4351, %v4679
        %4681 = vmatmul.bf16.gmra.mxu0 %v2723
        %v4682 = vpop.f32.mrf.mxu0
        %v4683 = vadd.f32 %v4354, %v4682
        %v4684 = vpop.f32.mrf.mxu0
        %v4685 = vadd.f32 %v4356, %v4684
        %4686 = vmatmul.bf16.gmra.mxu0 %v2731
        %v4687 = vpop.f32.mrf.mxu0
        %v4688 = vadd.f32 %v4359, %v4687
        %v4689 = vpop.f32.mrf.mxu0
        %v4690 = vadd.f32 %v4361, %v4689
        %4691 = vmatmul.bf16.gmra.mxu0 %v2739
        %v4692 = vpop.f32.mrf.mxu0
        %v4693 = vadd.f32 %v4364, %v4692
        %v4694 = vpop.f32.mrf.mxu0
        %v4695 = vadd.f32 %v4366, %v4694
        %4696 = vmatmul.bf16.gmra.mxu0 %v2747
        %v4697 = vpop.f32.mrf.mxu0
        %v4698 = vadd.f32 %v4369, %v4697
        %v4699 = vpop.f32.mrf.mxu0
        %v4700 = vadd.f32 %v4371, %v4699
        %4701 = vmatmul.bf16.gmra.mxu0 %v2755
        %v4702 = vpop.f32.mrf.mxu0
        %v4703 = vadd.f32 %v4374, %v4702
        %v4704 = vpop.f32.mrf.mxu0
        %v4705 = vadd.f32 %v4376, %v4704
        %4706 = vmatmul.bf16.gmra.mxu0 %v2763
        %v4707 = vpop.f32.mrf.mxu0
        %v4708 = vadd.f32 %v4379, %v4707
        %v4709 = vpop.f32.mrf.mxu0
        %v4710 = vadd.f32 %v4381, %v4709
        %4711 = vmatmul.bf16.gmra.mxu0 %v2771
        %v4712 = vpop.f32.mrf.mxu0
        %v4713 = vadd.f32 %v4384, %v4712
        %v4714 = vpop.f32.mrf.mxu0
        %v4715 = vadd.f32 %v4386, %v4714
        %4716 = vmatmul.bf16.gmra.mxu0 %v2779
        %v4717 = vpop.f32.mrf.mxu0
        %v4718 = vadd.f32 %v4389, %v4717
        %v4719 = vpop.f32.mrf.mxu0
        %v4720 = vadd.f32 %v4391, %v4719
        %4721 = vmatmul.bf16.gmra.mxu0 %v2787
        %v4722 = vpop.f32.mrf.mxu0
        %v4723 = vadd.f32 %v4394, %v4722
        %v4724 = vpop.f32.mrf.mxu0
        %v4725 = vadd.f32 %v4396, %v4724
        %4726 = vmatmul.bf16.gmra.mxu0 %v2795
        %v4727 = vpop.f32.mrf.mxu0
        %v4728 = vadd.f32 %v4399, %v4727
        %v4729 = vpop.f32.mrf.mxu0
        %v4730 = vadd.f32 %v4401, %v4729
        %4731 = vmatmul.bf16.gmra.mxu0 %v2803
        %v4732 = vpop.f32.mrf.mxu0
        %v4733 = vadd.f32 %v4404, %v4732
        %v4734 = vpop.f32.mrf.mxu0
        %v4735 = vadd.f32 %v4406, %v4734
        %4736 = vmatmul.bf16.gmra.mxu0 %v2811
        %v4737 = vpop.f32.mrf.mxu0
        %v4738 = vadd.f32 %v4409, %v4737
        %v4739 = vpop.f32.mrf.mxu0
        %v4740 = vadd.f32 %v4411, %v4739
        %4741 = vmatmul.bf16.gmra.mxu0 %v2819
        %v4742 = vpop.f32.mrf.mxu0
        %v4743 = vadd.f32 %v4414, %v4742
        %v4744 = vpop.f32.mrf.mxu0
        %v4745 = vadd.f32 %v4416, %v4744
        %4746 = vmatmul.bf16.gmra.mxu0 %v2827
        %v4747 = vpop.f32.mrf.mxu0
        %v4748 = vadd.f32 %v4419, %v4747
        %v4749 = vpop.f32.mrf.mxu0
        %v4750 = vadd.f32 %v4421, %v4749
        %4751 = vmatmul.bf16.gmra.mxu0 %v2835
        %v4752 = vpop.f32.mrf.mxu0
        %v4753 = vadd.f32 %v4424, %v4752
        %v4754 = vpop.f32.mrf.mxu0
        %v4755 = vadd.f32 %v4426, %v4754
        %4756 = vmatmul.bf16.gmra.mxu0 %v2843
        %v4757 = vpop.f32.mrf.mxu0
        %v4758 = vadd.f32 %v4429, %v4757
        %v4759 = vpop.f32.mrf.mxu0
        %v4760 = vadd.f32 %v4431, %v4759
        %4761 = vmatmul.bf16.gmra.mxu0 %v2851
        %v4762 = vpop.f32.mrf.mxu0
        %v4763 = vadd.f32 %v4434, %v4762
        %v4764 = vpop.f32.mrf.mxu0
        %v4765 = vadd.f32 %v4436, %v4764
        %4766 = vmatmul.bf16.gmra.mxu0 %v2859
        %v4767 = vpop.f32.mrf.mxu0
        %v4768 = vadd.f32 %v4439, %v4767
        %v4769 = vpop.f32.mrf.mxu0
        %v4770 = vadd.f32 %v4441, %v4769
        %4771 = vmatmul.bf16.gmra.mxu0 %v2867
        %v4772 = vpop.f32.mrf.mxu0
        %v4773 = vadd.f32 %v4444, %v4772
        %v4774 = vpop.f32.mrf.mxu0
        %v4775 = vadd.f32 %v4446, %v4774
        %4776 = vmatmul.bf16.gmra.mxu0 %v2875
        %v4777 = vpop.f32.mrf.mxu0
        %v4778 = vadd.f32 %v4449, %v4777
        %v4779 = vpop.f32.mrf.mxu0
        %v4780 = vadd.f32 %v4451, %v4779
        %4781 = vmatmul.bf16.gmra.mxu0 %v2883
        %v4782 = vpop.f32.mrf.mxu0
        %v4783 = vadd.f32 %v4454, %v4782
        %v4784 = vpop.f32.mrf.mxu0
        %v4785 = vadd.f32 %v4456, %v4784
        %4786 = vmatmul.bf16.gmra.mxu0 %v2891
        %v4787 = vpop.f32.mrf.mxu0
        %v4788 = vadd.f32 %v4459, %v4787
        %v4789 = vpop.f32.mrf.mxu0
        %v4790 = vadd.f32 %v4461, %v4789
        %4791 = vmatmul.bf16.gmra.mxu0 %v2899
        %v4792 = vpop.f32.mrf.mxu0
        %v4793 = vadd.f32 %v4464, %v4792
        %v4794 = vpop.f32.mrf.mxu0
        %v4795 = vadd.f32 %v4466, %v4794
        %4796 = vmatmul.bf16.gmra.mxu0 %v2907
        %v4797 = vpop.f32.mrf.mxu0
        %v4798 = vadd.f32 %v4469, %v4797
        %v4799 = vpop.f32.mrf.mxu0
        %v4800 = vadd.f32 %v4471, %v4799
        %4801 = vmatmul.bf16.gmra.mxu0 %v2915
        %v4802 = vpop.f32.mrf.mxu0
        %v4803 = vadd.f32 %v4474, %v4802
        %v4804 = vpop.f32.mrf.mxu0
        %v4805 = vadd.f32 %v4476, %v4804
        %4806 = vmatmul.bf16.gmra.mxu0 %v2923
        %v4807 = vpop.f32.mrf.mxu0
        %v4808 = vadd.f32 %v4479, %v4807
        %v4809 = vpop.f32.mrf.mxu0
        %v4810 = vadd.f32 %v4481, %v4809
        %4811 = vdwg.mxu0
        %4812 = vmatpush.bf16.msra.mxu0 %v3728
        %4813 = vmatpush.bf16.msra.mxu0 %v3727
        %4814 = vmatpush.bf16.msra.mxu0 %v3726
        %4815 = vmatpush.bf16.msra.mxu0 %v3725
        %4816 = vmatpush.bf16.msra.mxu0 %v3724
        %4817 = vmatpush.bf16.msra.mxu0 %v3723
        %4818 = vmatpush.bf16.msra.mxu0 %v3722
        %4819 = vmatpush.bf16.msra.mxu0 %v3721
        %4820 = vmatmul.bf16.gmra.mxu0 %v2420
        %v4821 = vpop.f32.mrf.mxu0
        %v4822 = vadd.f32 %v4493, %v4821
        %v4823 = vpop.f32.mrf.mxu0
        %v4824 = vadd.f32 %v4495, %v4823
        %4825 = vmatmul.bf16.gmra.mxu0 %v2428
        %v4826 = vpop.f32.mrf.mxu0
        %v4827 = vadd.f32 %v4498, %v4826
        %v4828 = vpop.f32.mrf.mxu0
        %v4829 = vadd.f32 %v4500, %v4828
        %4830 = vmatmul.bf16.gmra.mxu0 %v2436
        %v4831 = vpop.f32.mrf.mxu0
        %v4832 = vadd.f32 %v4503, %v4831
        %v4833 = vpop.f32.mrf.mxu0
        %v4834 = vadd.f32 %v4505, %v4833
        %4835 = vmatmul.bf16.gmra.mxu0 %v2444
        %v4836 = vpop.f32.mrf.mxu0
        %v4837 = vadd.f32 %v4508, %v4836
        %v4838 = vpop.f32.mrf.mxu0
        %v4839 = vadd.f32 %v4510, %v4838
        %4840 = vmatmul.bf16.gmra.mxu0 %v2452
        %v4841 = vpop.f32.mrf.mxu0
        %v4842 = vadd.f32 %v4513, %v4841
        %v4843 = vpop.f32.mrf.mxu0
        %v4844 = vadd.f32 %v4515, %v4843
        %4845 = vmatmul.bf16.gmra.mxu0 %v2460
        %v4846 = vpop.f32.mrf.mxu0
        %v4847 = vadd.f32 %v4518, %v4846
        %v4848 = vpop.f32.mrf.mxu0
        %v4849 = vadd.f32 %v4520, %v4848
        %4850 = vmatmul.bf16.gmra.mxu0 %v2468
        %v4851 = vpop.f32.mrf.mxu0
        %v4852 = vadd.f32 %v4523, %v4851
        %v4853 = vpop.f32.mrf.mxu0
        %v4854 = vadd.f32 %v4525, %v4853
        %4855 = vmatmul.bf16.gmra.mxu0 %v2476
        %v4856 = vpop.f32.mrf.mxu0
        %v4857 = vadd.f32 %v4528, %v4856
        %v4858 = vpop.f32.mrf.mxu0
        %v4859 = vadd.f32 %v4530, %v4858
        %4860 = vmatmul.bf16.gmra.mxu0 %v2484
        %v4861 = vpop.f32.mrf.mxu0
        %v4862 = vadd.f32 %v4533, %v4861
        %v4863 = vpop.f32.mrf.mxu0
        %v4864 = vadd.f32 %v4535, %v4863
        %4865 = vmatmul.bf16.gmra.mxu0 %v2492
        %v4866 = vpop.f32.mrf.mxu0
        %v4867 = vadd.f32 %v4538, %v4866
        %v4868 = vpop.f32.mrf.mxu0
        %v4869 = vadd.f32 %v4540, %v4868
        %4870 = vmatmul.bf16.gmra.mxu0 %v2500
        %v4871 = vpop.f32.mrf.mxu0
        %v4872 = vadd.f32 %v4543, %v4871
        %v4873 = vpop.f32.mrf.mxu0
        %v4874 = vadd.f32 %v4545, %v4873
        %4875 = vmatmul.bf16.gmra.mxu0 %v2508
        %v4876 = vpop.f32.mrf.mxu0
        %v4877 = vadd.f32 %v4548, %v4876
        %v4878 = vpop.f32.mrf.mxu0
        %v4879 = vadd.f32 %v4550, %v4878
        %4880 = vmatmul.bf16.gmra.mxu0 %v2516
        %v4881 = vpop.f32.mrf.mxu0
        %v4882 = vadd.f32 %v4553, %v4881
        %v4883 = vpop.f32.mrf.mxu0
        %v4884 = vadd.f32 %v4555, %v4883
        %4885 = vmatmul.bf16.gmra.mxu0 %v2524
        %v4886 = vpop.f32.mrf.mxu0
        %v4887 = vadd.f32 %v4558, %v4886
        %v4888 = vpop.f32.mrf.mxu0
        %v4889 = vadd.f32 %v4560, %v4888
        %4890 = vmatmul.bf16.gmra.mxu0 %v2532
        %v4891 = vpop.f32.mrf.mxu0
        %v4892 = vadd.f32 %v4563, %v4891
        %v4893 = vpop.f32.mrf.mxu0
        %v4894 = vadd.f32 %v4565, %v4893
        %4895 = vmatmul.bf16.gmra.mxu0 %v2540
        %v4896 = vpop.f32.mrf.mxu0
        %v4897 = vadd.f32 %v4568, %v4896
        %v4898 = vpop.f32.mrf.mxu0
        %v4899 = vadd.f32 %v4570, %v4898
        %4900 = vmatmul.bf16.gmra.mxu0 %v2548
        %v4901 = vpop.f32.mrf.mxu0
        %v4902 = vadd.f32 %v4573, %v4901
        %v4903 = vpop.f32.mrf.mxu0
        %v4904 = vadd.f32 %v4575, %v4903
        %4905 = vmatmul.bf16.gmra.mxu0 %v2556
        %v4906 = vpop.f32.mrf.mxu0
        %v4907 = vadd.f32 %v4578, %v4906
        %v4908 = vpop.f32.mrf.mxu0
        %v4909 = vadd.f32 %v4580, %v4908
        %4910 = vmatmul.bf16.gmra.mxu0 %v2564
        %v4911 = vpop.f32.mrf.mxu0
        %v4912 = vadd.f32 %v4583, %v4911
        %v4913 = vpop.f32.mrf.mxu0
        %v4914 = vadd.f32 %v4585, %v4913
        %4915 = vmatmul.bf16.gmra.mxu0 %v2572
        %v4916 = vpop.f32.mrf.mxu0
        %v4917 = vadd.f32 %v4588, %v4916
        %v4918 = vpop.f32.mrf.mxu0
        %v4919 = vadd.f32 %v4590, %v4918
        %4920 = vmatmul.bf16.gmra.mxu0 %v2580
        %v4921 = vpop.f32.mrf.mxu0
        %v4922 = vadd.f32 %v4593, %v4921
        %v4923 = vpop.f32.mrf.mxu0
        %v4924 = vadd.f32 %v4595, %v4923
        %4925 = vmatmul.bf16.gmra.mxu0 %v2588
        %v4926 = vpop.f32.mrf.mxu0
        %v4927 = vadd.f32 %v4598, %v4926
        %v4928 = vpop.f32.mrf.mxu0
        %v4929 = vadd.f32 %v4600, %v4928
        %4930 = vmatmul.bf16.gmra.mxu0 %v2596
        %v4931 = vpop.f32.mrf.mxu0
        %v4932 = vadd.f32 %v4603, %v4931
        %v4933 = vpop.f32.mrf.mxu0
        %v4934 = vadd.f32 %v4605, %v4933
        %4935 = vmatmul.bf16.gmra.mxu0 %v2604
        %v4936 = vpop.f32.mrf.mxu0
        %v4937 = vadd.f32 %v4608, %v4936
        %v4938 = vpop.f32.mrf.mxu0
        %v4939 = vadd.f32 %v4610, %v4938
        %4940 = vmatmul.bf16.gmra.mxu0 %v2612
        %v4941 = vpop.f32.mrf.mxu0
        %v4942 = vadd.f32 %v4613, %v4941
        %v4943 = vpop.f32.mrf.mxu0
        %v4944 = vadd.f32 %v4615, %v4943
        %4945 = vmatmul.bf16.gmra.mxu0 %v2620
        %v4946 = vpop.f32.mrf.mxu0
        %v4947 = vadd.f32 %v4618, %v4946
        %v4948 = vpop.f32.mrf.mxu0
        %v4949 = vadd.f32 %v4620, %v4948
        %4950 = vmatmul.bf16.gmra.mxu0 %v2628
        %v4951 = vpop.f32.mrf.mxu0
        %v4952 = vadd.f32 %v4623, %v4951
        %v4953 = vpop.f32.mrf.mxu0
        %v4954 = vadd.f32 %v4625, %v4953
        %4955 = vmatmul.bf16.gmra.mxu0 %v2636
        %v4956 = vpop.f32.mrf.mxu0
        %v4957 = vadd.f32 %v4628, %v4956
        %v4958 = vpop.f32.mrf.mxu0
        %v4959 = vadd.f32 %v4630, %v4958
        %4960 = vmatmul.bf16.gmra.mxu0 %v2644
        %v4961 = vpop.f32.mrf.mxu0
        %v4962 = vadd.f32 %v4633, %v4961
        %v4963 = vpop.f32.mrf.mxu0
        %v4964 = vadd.f32 %v4635, %v4963
        %4965 = vmatmul.bf16.gmra.mxu0 %v2652
        %v4966 = vpop.f32.mrf.mxu0
        %v4967 = vadd.f32 %v4638, %v4966
        %v4968 = vpop.f32.mrf.mxu0
        %v4969 = vadd.f32 %v4640, %v4968
        %4970 = vmatmul.bf16.gmra.mxu0 %v2660
        %v4971 = vpop.f32.mrf.mxu0
        %v4972 = vadd.f32 %v4643, %v4971
        %v4973 = vpop.f32.mrf.mxu0
        %v4974 = vadd.f32 %v4645, %v4973
        %4975 = vmatmul.bf16.gmra.mxu0 %v2668
        %v4976 = vpop.f32.mrf.mxu0
        %v4977 = vadd.f32 %v4648, %v4976
        %v4978 = vpop.f32.mrf.mxu0
        %v4979 = vadd.f32 %v4650, %v4978
        %4980 = vmatmul.bf16.gmra.mxu0 %v2676
        %v4981 = vpop.f32.mrf.mxu0
        %v4982 = vadd.f32 %v4653, %v4981
        %v4983 = vpop.f32.mrf.mxu0
        %v4984 = vadd.f32 %v4655, %v4983
        %4985 = vmatmul.bf16.gmra.mxu0 %v2684
        %v4986 = vpop.f32.mrf.mxu0
        %v4987 = vadd.f32 %v4658, %v4986
        %v4988 = vpop.f32.mrf.mxu0
        %v4989 = vadd.f32 %v4660, %v4988
        %4990 = vmatmul.bf16.gmra.mxu0 %v2692
        %v4991 = vpop.f32.mrf.mxu0
        %v4992 = vadd.f32 %v4663, %v4991
        %v4993 = vpop.f32.mrf.mxu0
        %v4994 = vadd.f32 %v4665, %v4993
        %4995 = vmatmul.bf16.gmra.mxu0 %v2700
        %v4996 = vpop.f32.mrf.mxu0
        %v4997 = vadd.f32 %v4668, %v4996
        %v4998 = vpop.f32.mrf.mxu0
        %v4999 = vadd.f32 %v4670, %v4998
        %5000 = vmatmul.bf16.gmra.mxu0 %v2708
        %v5001 = vpop.f32.mrf.mxu0
        %v5002 = vadd.f32 %v4673, %v5001
        %v5003 = vpop.f32.mrf.mxu0
        %v5004 = vadd.f32 %v4675, %v5003
        %5005 = vmatmul.bf16.gmra.mxu0 %v2716
        %v5006 = vpop.f32.mrf.mxu0
        %v5007 = vadd.f32 %v4678, %v5006
        %v5008 = vpop.f32.mrf.mxu0
        %v5009 = vadd.f32 %v4680, %v5008
        %5010 = vmatmul.bf16.gmra.mxu0 %v2724
        %v5011 = vpop.f32.mrf.mxu0
        %v5012 = vadd.f32 %v4683, %v5011
        %v5013 = vpop.f32.mrf.mxu0
        %v5014 = vadd.f32 %v4685, %v5013
        %5015 = vmatmul.bf16.gmra.mxu0 %v2732
        %v5016 = vpop.f32.mrf.mxu0
        %v5017 = vadd.f32 %v4688, %v5016
        %v5018 = vpop.f32.mrf.mxu0
        %v5019 = vadd.f32 %v4690, %v5018
        %5020 = vmatmul.bf16.gmra.mxu0 %v2740
        %v5021 = vpop.f32.mrf.mxu0
        %v5022 = vadd.f32 %v4693, %v5021
        %v5023 = vpop.f32.mrf.mxu0
        %v5024 = vadd.f32 %v4695, %v5023
        %5025 = vmatmul.bf16.gmra.mxu0 %v2748
        %v5026 = vpop.f32.mrf.mxu0
        %v5027 = vadd.f32 %v4698, %v5026
        %v5028 = vpop.f32.mrf.mxu0
        %v5029 = vadd.f32 %v4700, %v5028
        %5030 = vmatmul.bf16.gmra.mxu0 %v2756
        %v5031 = vpop.f32.mrf.mxu0
        %v5032 = vadd.f32 %v4703, %v5031
        %v5033 = vpop.f32.mrf.mxu0
        %v5034 = vadd.f32 %v4705, %v5033
        %5035 = vmatmul.bf16.gmra.mxu0 %v2764
        %v5036 = vpop.f32.mrf.mxu0
        %v5037 = vadd.f32 %v4708, %v5036
        %v5038 = vpop.f32.mrf.mxu0
        %v5039 = vadd.f32 %v4710, %v5038
        %5040 = vmatmul.bf16.gmra.mxu0 %v2772
        %v5041 = vpop.f32.mrf.mxu0
        %v5042 = vadd.f32 %v4713, %v5041
        %v5043 = vpop.f32.mrf.mxu0
        %v5044 = vadd.f32 %v4715, %v5043
        %5045 = vmatmul.bf16.gmra.mxu0 %v2780
        %v5046 = vpop.f32.mrf.mxu0
        %v5047 = vadd.f32 %v4718, %v5046
        %v5048 = vpop.f32.mrf.mxu0
        %v5049 = vadd.f32 %v4720, %v5048
        %5050 = vmatmul.bf16.gmra.mxu0 %v2788
        %v5051 = vpop.f32.mrf.mxu0
        %v5052 = vadd.f32 %v4723, %v5051
        %v5053 = vpop.f32.mrf.mxu0
        %v5054 = vadd.f32 %v4725, %v5053
        %5055 = vmatmul.bf16.gmra.mxu0 %v2796
        %v5056 = vpop.f32.mrf.mxu0
        %v5057 = vadd.f32 %v4728, %v5056
        %v5058 = vpop.f32.mrf.mxu0
        %v5059 = vadd.f32 %v4730, %v5058
        %5060 = vmatmul.bf16.gmra.mxu0 %v2804
        %v5061 = vpop.f32.mrf.mxu0
        %v5062 = vadd.f32 %v4733, %v5061
        %v5063 = vpop.f32.mrf.mxu0
        %v5064 = vadd.f32 %v4735, %v5063
        %5065 = vmatmul.bf16.gmra.mxu0 %v2812
        %v5066 = vpop.f32.mrf.mxu0
        %v5067 = vadd.f32 %v4738, %v5066
        %v5068 = vpop.f32.mrf.mxu0
        %v5069 = vadd.f32 %v4740, %v5068
        %5070 = vmatmul.bf16.gmra.mxu0 %v2820
        %v5071 = vpop.f32.mrf.mxu0
        %v5072 = vadd.f32 %v4743, %v5071
        %v5073 = vpop.f32.mrf.mxu0
        %v5074 = vadd.f32 %v4745, %v5073
        %5075 = vmatmul.bf16.gmra.mxu0 %v2828
        %v5076 = vpop.f32.mrf.mxu0
        %v5077 = vadd.f32 %v4748, %v5076
        %v5078 = vpop.f32.mrf.mxu0
        %v5079 = vadd.f32 %v4750, %v5078
        %5080 = vmatmul.bf16.gmra.mxu0 %v2836
        %v5081 = vpop.f32.mrf.mxu0
        %v5082 = vadd.f32 %v4753, %v5081
        %v5083 = vpop.f32.mrf.mxu0
        %v5084 = vadd.f32 %v4755, %v5083
        %5085 = vmatmul.bf16.gmra.mxu0 %v2844
        %v5086 = vpop.f32.mrf.mxu0
        %v5087 = vadd.f32 %v4758, %v5086
        %v5088 = vpop.f32.mrf.mxu0
        %v5089 = vadd.f32 %v4760, %v5088
        %5090 = vmatmul.bf16.gmra.mxu0 %v2852
        %v5091 = vpop.f32.mrf.mxu0
        %v5092 = vadd.f32 %v4763, %v5091
        %v5093 = vpop.f32.mrf.mxu0
        %v5094 = vadd.f32 %v4765, %v5093
        %5095 = vmatmul.bf16.gmra.mxu0 %v2860
        %v5096 = vpop.f32.mrf.mxu0
        %v5097 = vadd.f32 %v4768, %v5096
        %v5098 = vpop.f32.mrf.mxu0
        %v5099 = vadd.f32 %v4770, %v5098
        %5100 = vmatmul.bf16.gmra.mxu0 %v2868
        %v5101 = vpop.f32.mrf.mxu0
        %v5102 = vadd.f32 %v4773, %v5101
        %v5103 = vpop.f32.mrf.mxu0
        %v5104 = vadd.f32 %v4775, %v5103
        %5105 = vmatmul.bf16.gmra.mxu0 %v2876
        %v5106 = vpop.f32.mrf.mxu0
        %v5107 = vadd.f32 %v4778, %v5106
        %v5108 = vpop.f32.mrf.mxu0
        %v5109 = vadd.f32 %v4780, %v5108
        %5110 = vmatmul.bf16.gmra.mxu0 %v2884
        %v5111 = vpop.f32.mrf.mxu0
        %v5112 = vadd.f32 %v4783, %v5111
        %v5113 = vpop.f32.mrf.mxu0
        %v5114 = vadd.f32 %v4785, %v5113
        %5115 = vmatmul.bf16.gmra.mxu0 %v2892
        %v5116 = vpop.f32.mrf.mxu0
        %v5117 = vadd.f32 %v4788, %v5116
        %v5118 = vpop.f32.mrf.mxu0
        %v5119 = vadd.f32 %v4790, %v5118
        %5120 = vmatmul.bf16.gmra.mxu0 %v2900
        %v5121 = vpop.f32.mrf.mxu0
        %v5122 = vadd.f32 %v4793, %v5121
        %v5123 = vpop.f32.mrf.mxu0
        %v5124 = vadd.f32 %v4795, %v5123
        %5125 = vmatmul.bf16.gmra.mxu0 %v2908
        %v5126 = vpop.f32.mrf.mxu0
        %v5127 = vadd.f32 %v4798, %v5126
        %v5128 = vpop.f32.mrf.mxu0
        %v5129 = vadd.f32 %v4800, %v5128
        %5130 = vmatmul.bf16.gmra.mxu0 %v2916
        %v5131 = vpop.f32.mrf.mxu0
        %v5132 = vadd.f32 %v4803, %v5131
        %v5133 = vpop.f32.mrf.mxu0
        %v5134 = vadd.f32 %v4805, %v5133
        %5135 = vmatmul.bf16.gmra.mxu0 %v2924
        %v5136 = vpop.f32.mrf.mxu0
        %v5137 = vadd.f32 %v4808, %v5136
        %v5138 = vpop.f32.mrf.mxu0
        %v5139 = vadd.f32 %v4810, %v5138
        %5140 = vdwg.mxu0
        %5141 = vmatpush.bf16.msra.mxu0 %v3736
        %5142 = vmatpush.bf16.msra.mxu0 %v3735
        %5143 = vmatpush.bf16.msra.mxu0 %v3734
        %5144 = vmatpush.bf16.msra.mxu0 %v3733
        %5145 = vmatpush.bf16.msra.mxu0 %v3732
        %5146 = vmatpush.bf16.msra.mxu0 %v3731
        %5147 = vmatpush.bf16.msra.mxu0 %v3730
        %5148 = vmatpush.bf16.msra.mxu0 %v3729
        %5149 = vmatmul.bf16.gmra.mxu0 %v2421
        %v5150 = vpop.f32.mrf.mxu0
        %v5151 = vadd.f32 %v4822, %v5150
        %v5152 = vpop.f32.mrf.mxu0
        %v5153 = vadd.f32 %v4824, %v5152
        %5154 = vmatmul.bf16.gmra.mxu0 %v2429
        %v5155 = vpop.f32.mrf.mxu0
        %v5156 = vadd.f32 %v4827, %v5155
        %v5157 = vpop.f32.mrf.mxu0
        %v5158 = vadd.f32 %v4829, %v5157
        %5159 = vmatmul.bf16.gmra.mxu0 %v2437
        %v5160 = vpop.f32.mrf.mxu0
        %v5161 = vadd.f32 %v4832, %v5160
        %v5162 = vpop.f32.mrf.mxu0
        %v5163 = vadd.f32 %v4834, %v5162
        %5164 = vmatmul.bf16.gmra.mxu0 %v2445
        %v5165 = vpop.f32.mrf.mxu0
        %v5166 = vadd.f32 %v4837, %v5165
        %v5167 = vpop.f32.mrf.mxu0
        %v5168 = vadd.f32 %v4839, %v5167
        %5169 = vmatmul.bf16.gmra.mxu0 %v2453
        %v5170 = vpop.f32.mrf.mxu0
        %v5171 = vadd.f32 %v4842, %v5170
        %v5172 = vpop.f32.mrf.mxu0
        %v5173 = vadd.f32 %v4844, %v5172
        %5174 = vmatmul.bf16.gmra.mxu0 %v2461
        %v5175 = vpop.f32.mrf.mxu0
        %v5176 = vadd.f32 %v4847, %v5175
        %v5177 = vpop.f32.mrf.mxu0
        %v5178 = vadd.f32 %v4849, %v5177
        %5179 = vmatmul.bf16.gmra.mxu0 %v2469
        %v5180 = vpop.f32.mrf.mxu0
        %v5181 = vadd.f32 %v4852, %v5180
        %v5182 = vpop.f32.mrf.mxu0
        %v5183 = vadd.f32 %v4854, %v5182
        %5184 = vmatmul.bf16.gmra.mxu0 %v2477
        %v5185 = vpop.f32.mrf.mxu0
        %v5186 = vadd.f32 %v4857, %v5185
        %v5187 = vpop.f32.mrf.mxu0
        %v5188 = vadd.f32 %v4859, %v5187
        %5189 = vmatmul.bf16.gmra.mxu0 %v2485
        %v5190 = vpop.f32.mrf.mxu0
        %v5191 = vadd.f32 %v4862, %v5190
        %v5192 = vpop.f32.mrf.mxu0
        %v5193 = vadd.f32 %v4864, %v5192
        %5194 = vmatmul.bf16.gmra.mxu0 %v2493
        %v5195 = vpop.f32.mrf.mxu0
        %v5196 = vadd.f32 %v4867, %v5195
        %v5197 = vpop.f32.mrf.mxu0
        %v5198 = vadd.f32 %v4869, %v5197
        %5199 = vmatmul.bf16.gmra.mxu0 %v2501
        %v5200 = vpop.f32.mrf.mxu0
        %v5201 = vadd.f32 %v4872, %v5200
        %v5202 = vpop.f32.mrf.mxu0
        %v5203 = vadd.f32 %v4874, %v5202
        %5204 = vmatmul.bf16.gmra.mxu0 %v2509
        %v5205 = vpop.f32.mrf.mxu0
        %v5206 = vadd.f32 %v4877, %v5205
        %v5207 = vpop.f32.mrf.mxu0
        %v5208 = vadd.f32 %v4879, %v5207
        %5209 = vmatmul.bf16.gmra.mxu0 %v2517
        %v5210 = vpop.f32.mrf.mxu0
        %v5211 = vadd.f32 %v4882, %v5210
        %v5212 = vpop.f32.mrf.mxu0
        %v5213 = vadd.f32 %v4884, %v5212
        %5214 = vmatmul.bf16.gmra.mxu0 %v2525
        %v5215 = vpop.f32.mrf.mxu0
        %v5216 = vadd.f32 %v4887, %v5215
        %v5217 = vpop.f32.mrf.mxu0
        %v5218 = vadd.f32 %v4889, %v5217
        %5219 = vmatmul.bf16.gmra.mxu0 %v2533
        %v5220 = vpop.f32.mrf.mxu0
        %v5221 = vadd.f32 %v4892, %v5220
        %v5222 = vpop.f32.mrf.mxu0
        %v5223 = vadd.f32 %v4894, %v5222
        %5224 = vmatmul.bf16.gmra.mxu0 %v2541
        %v5225 = vpop.f32.mrf.mxu0
        %v5226 = vadd.f32 %v4897, %v5225
        %v5227 = vpop.f32.mrf.mxu0
        %v5228 = vadd.f32 %v4899, %v5227
        %5229 = vmatmul.bf16.gmra.mxu0 %v2549
        %v5230 = vpop.f32.mrf.mxu0
        %v5231 = vadd.f32 %v4902, %v5230
        %v5232 = vpop.f32.mrf.mxu0
        %v5233 = vadd.f32 %v4904, %v5232
        %5234 = vmatmul.bf16.gmra.mxu0 %v2557
        %v5235 = vpop.f32.mrf.mxu0
        %v5236 = vadd.f32 %v4907, %v5235
        %v5237 = vpop.f32.mrf.mxu0
        %v5238 = vadd.f32 %v4909, %v5237
        %5239 = vmatmul.bf16.gmra.mxu0 %v2565
        %v5240 = vpop.f32.mrf.mxu0
        %v5241 = vadd.f32 %v4912, %v5240
        %v5242 = vpop.f32.mrf.mxu0
        %v5243 = vadd.f32 %v4914, %v5242
        %5244 = vmatmul.bf16.gmra.mxu0 %v2573
        %v5245 = vpop.f32.mrf.mxu0
        %v5246 = vadd.f32 %v4917, %v5245
        %v5247 = vpop.f32.mrf.mxu0
        %v5248 = vadd.f32 %v4919, %v5247
        %5249 = vmatmul.bf16.gmra.mxu0 %v2581
        %v5250 = vpop.f32.mrf.mxu0
        %v5251 = vadd.f32 %v4922, %v5250
        %v5252 = vpop.f32.mrf.mxu0
        %v5253 = vadd.f32 %v4924, %v5252
        %5254 = vmatmul.bf16.gmra.mxu0 %v2589
        %v5255 = vpop.f32.mrf.mxu0
        %v5256 = vadd.f32 %v4927, %v5255
        %v5257 = vpop.f32.mrf.mxu0
        %v5258 = vadd.f32 %v4929, %v5257
        %5259 = vmatmul.bf16.gmra.mxu0 %v2597
        %v5260 = vpop.f32.mrf.mxu0
        %v5261 = vadd.f32 %v4932, %v5260
        %v5262 = vpop.f32.mrf.mxu0
        %v5263 = vadd.f32 %v4934, %v5262
        %5264 = vmatmul.bf16.gmra.mxu0 %v2605
        %v5265 = vpop.f32.mrf.mxu0
        %v5266 = vadd.f32 %v4937, %v5265
        %v5267 = vpop.f32.mrf.mxu0
        %v5268 = vadd.f32 %v4939, %v5267
        %5269 = vmatmul.bf16.gmra.mxu0 %v2613
        %v5270 = vpop.f32.mrf.mxu0
        %v5271 = vadd.f32 %v4942, %v5270
        %v5272 = vpop.f32.mrf.mxu0
        %v5273 = vadd.f32 %v4944, %v5272
        %5274 = vmatmul.bf16.gmra.mxu0 %v2621
        %v5275 = vpop.f32.mrf.mxu0
        %v5276 = vadd.f32 %v4947, %v5275
        %v5277 = vpop.f32.mrf.mxu0
        %v5278 = vadd.f32 %v4949, %v5277
        %5279 = vmatmul.bf16.gmra.mxu0 %v2629
        %v5280 = vpop.f32.mrf.mxu0
        %v5281 = vadd.f32 %v4952, %v5280
        %v5282 = vpop.f32.mrf.mxu0
        %v5283 = vadd.f32 %v4954, %v5282
        %5284 = vmatmul.bf16.gmra.mxu0 %v2637
        %v5285 = vpop.f32.mrf.mxu0
        %v5286 = vadd.f32 %v4957, %v5285
        %v5287 = vpop.f32.mrf.mxu0
        %v5288 = vadd.f32 %v4959, %v5287
        %5289 = vmatmul.bf16.gmra.mxu0 %v2645
        %v5290 = vpop.f32.mrf.mxu0
        %v5291 = vadd.f32 %v4962, %v5290
        %v5292 = vpop.f32.mrf.mxu0
        %v5293 = vadd.f32 %v4964, %v5292
        %5294 = vmatmul.bf16.gmra.mxu0 %v2653
        %v5295 = vpop.f32.mrf.mxu0
        %v5296 = vadd.f32 %v4967, %v5295
        %v5297 = vpop.f32.mrf.mxu0
        %v5298 = vadd.f32 %v4969, %v5297
        %5299 = vmatmul.bf16.gmra.mxu0 %v2661
        %v5300 = vpop.f32.mrf.mxu0
        %v5301 = vadd.f32 %v4972, %v5300
        %v5302 = vpop.f32.mrf.mxu0
        %v5303 = vadd.f32 %v4974, %v5302
        %5304 = vmatmul.bf16.gmra.mxu0 %v2669
        %v5305 = vpop.f32.mrf.mxu0
        %v5306 = vadd.f32 %v4977, %v5305
        %v5307 = vpop.f32.mrf.mxu0
        %v5308 = vadd.f32 %v4979, %v5307
        %5309 = vmatmul.bf16.gmra.mxu0 %v2677
        %v5310 = vpop.f32.mrf.mxu0
        %v5311 = vadd.f32 %v4982, %v5310
        %v5312 = vpop.f32.mrf.mxu0
        %v5313 = vadd.f32 %v4984, %v5312
        %5314 = vmatmul.bf16.gmra.mxu0 %v2685
        %v5315 = vpop.f32.mrf.mxu0
        %v5316 = vadd.f32 %v4987, %v5315
        %v5317 = vpop.f32.mrf.mxu0
        %v5318 = vadd.f32 %v4989, %v5317
        %5319 = vmatmul.bf16.gmra.mxu0 %v2693
        %v5320 = vpop.f32.mrf.mxu0
        %v5321 = vadd.f32 %v4992, %v5320
        %v5322 = vpop.f32.mrf.mxu0
        %v5323 = vadd.f32 %v4994, %v5322
        %5324 = vmatmul.bf16.gmra.mxu0 %v2701
        %v5325 = vpop.f32.mrf.mxu0
        %v5326 = vadd.f32 %v4997, %v5325
        %v5327 = vpop.f32.mrf.mxu0
        %v5328 = vadd.f32 %v4999, %v5327
        %5329 = vmatmul.bf16.gmra.mxu0 %v2709
        %v5330 = vpop.f32.mrf.mxu0
        %v5331 = vadd.f32 %v5002, %v5330
        %v5332 = vpop.f32.mrf.mxu0
        %v5333 = vadd.f32 %v5004, %v5332
        %5334 = vmatmul.bf16.gmra.mxu0 %v2717
        %v5335 = vpop.f32.mrf.mxu0
        %v5336 = vadd.f32 %v5007, %v5335
        %v5337 = vpop.f32.mrf.mxu0
        %v5338 = vadd.f32 %v5009, %v5337
        %5339 = vmatmul.bf16.gmra.mxu0 %v2725
        %v5340 = vpop.f32.mrf.mxu0
        %v5341 = vadd.f32 %v5012, %v5340
        %v5342 = vpop.f32.mrf.mxu0
        %v5343 = vadd.f32 %v5014, %v5342
        %5344 = vmatmul.bf16.gmra.mxu0 %v2733
        %v5345 = vpop.f32.mrf.mxu0
        %v5346 = vadd.f32 %v5017, %v5345
        %v5347 = vpop.f32.mrf.mxu0
        %v5348 = vadd.f32 %v5019, %v5347
        %5349 = vmatmul.bf16.gmra.mxu0 %v2741
        %v5350 = vpop.f32.mrf.mxu0
        %v5351 = vadd.f32 %v5022, %v5350
        %v5352 = vpop.f32.mrf.mxu0
        %v5353 = vadd.f32 %v5024, %v5352
        %5354 = vmatmul.bf16.gmra.mxu0 %v2749
        %v5355 = vpop.f32.mrf.mxu0
        %v5356 = vadd.f32 %v5027, %v5355
        %v5357 = vpop.f32.mrf.mxu0
        %v5358 = vadd.f32 %v5029, %v5357
        %5359 = vmatmul.bf16.gmra.mxu0 %v2757
        %v5360 = vpop.f32.mrf.mxu0
        %v5361 = vadd.f32 %v5032, %v5360
        %v5362 = vpop.f32.mrf.mxu0
        %v5363 = vadd.f32 %v5034, %v5362
        %5364 = vmatmul.bf16.gmra.mxu0 %v2765
        %v5365 = vpop.f32.mrf.mxu0
        %v5366 = vadd.f32 %v5037, %v5365
        %v5367 = vpop.f32.mrf.mxu0
        %v5368 = vadd.f32 %v5039, %v5367
        %5369 = vmatmul.bf16.gmra.mxu0 %v2773
        %v5370 = vpop.f32.mrf.mxu0
        %v5371 = vadd.f32 %v5042, %v5370
        %v5372 = vpop.f32.mrf.mxu0
        %v5373 = vadd.f32 %v5044, %v5372
        %5374 = vmatmul.bf16.gmra.mxu0 %v2781
        %v5375 = vpop.f32.mrf.mxu0
        %v5376 = vadd.f32 %v5047, %v5375
        %v5377 = vpop.f32.mrf.mxu0
        %v5378 = vadd.f32 %v5049, %v5377
        %5379 = vmatmul.bf16.gmra.mxu0 %v2789
        %v5380 = vpop.f32.mrf.mxu0
        %v5381 = vadd.f32 %v5052, %v5380
        %v5382 = vpop.f32.mrf.mxu0
        %v5383 = vadd.f32 %v5054, %v5382
        %5384 = vmatmul.bf16.gmra.mxu0 %v2797
        %v5385 = vpop.f32.mrf.mxu0
        %v5386 = vadd.f32 %v5057, %v5385
        %v5387 = vpop.f32.mrf.mxu0
        %v5388 = vadd.f32 %v5059, %v5387
        %5389 = vmatmul.bf16.gmra.mxu0 %v2805
        %v5390 = vpop.f32.mrf.mxu0
        %v5391 = vadd.f32 %v5062, %v5390
        %v5392 = vpop.f32.mrf.mxu0
        %v5393 = vadd.f32 %v5064, %v5392
        %5394 = vmatmul.bf16.gmra.mxu0 %v2813
        %v5395 = vpop.f32.mrf.mxu0
        %v5396 = vadd.f32 %v5067, %v5395
        %v5397 = vpop.f32.mrf.mxu0
        %v5398 = vadd.f32 %v5069, %v5397
        %5399 = vmatmul.bf16.gmra.mxu0 %v2821
        %v5400 = vpop.f32.mrf.mxu0
        %v5401 = vadd.f32 %v5072, %v5400
        %v5402 = vpop.f32.mrf.mxu0
        %v5403 = vadd.f32 %v5074, %v5402
        %5404 = vmatmul.bf16.gmra.mxu0 %v2829
        %v5405 = vpop.f32.mrf.mxu0
        %v5406 = vadd.f32 %v5077, %v5405
        %v5407 = vpop.f32.mrf.mxu0
        %v5408 = vadd.f32 %v5079, %v5407
        %5409 = vmatmul.bf16.gmra.mxu0 %v2837
        %v5410 = vpop.f32.mrf.mxu0
        %v5411 = vadd.f32 %v5082, %v5410
        %v5412 = vpop.f32.mrf.mxu0
        %v5413 = vadd.f32 %v5084, %v5412
        %5414 = vmatmul.bf16.gmra.mxu0 %v2845
        %v5415 = vpop.f32.mrf.mxu0
        %v5416 = vadd.f32 %v5087, %v5415
        %v5417 = vpop.f32.mrf.mxu0
        %v5418 = vadd.f32 %v5089, %v5417
        %5419 = vmatmul.bf16.gmra.mxu0 %v2853
        %v5420 = vpop.f32.mrf.mxu0
        %v5421 = vadd.f32 %v5092, %v5420
        %v5422 = vpop.f32.mrf.mxu0
        %v5423 = vadd.f32 %v5094, %v5422
        %5424 = vmatmul.bf16.gmra.mxu0 %v2861
        %v5425 = vpop.f32.mrf.mxu0
        %v5426 = vadd.f32 %v5097, %v5425
        %v5427 = vpop.f32.mrf.mxu0
        %v5428 = vadd.f32 %v5099, %v5427
        %5429 = vmatmul.bf16.gmra.mxu0 %v2869
        %v5430 = vpop.f32.mrf.mxu0
        %v5431 = vadd.f32 %v5102, %v5430
        %v5432 = vpop.f32.mrf.mxu0
        %v5433 = vadd.f32 %v5104, %v5432
        %5434 = vmatmul.bf16.gmra.mxu0 %v2877
        %v5435 = vpop.f32.mrf.mxu0
        %v5436 = vadd.f32 %v5107, %v5435
        %v5437 = vpop.f32.mrf.mxu0
        %v5438 = vadd.f32 %v5109, %v5437
        %5439 = vmatmul.bf16.gmra.mxu0 %v2885
        %v5440 = vpop.f32.mrf.mxu0
        %v5441 = vadd.f32 %v5112, %v5440
        %v5442 = vpop.f32.mrf.mxu0
        %v5443 = vadd.f32 %v5114, %v5442
        %5444 = vmatmul.bf16.gmra.mxu0 %v2893
        %v5445 = vpop.f32.mrf.mxu0
        %v5446 = vadd.f32 %v5117, %v5445
        %v5447 = vpop.f32.mrf.mxu0
        %v5448 = vadd.f32 %v5119, %v5447
        %5449 = vmatmul.bf16.gmra.mxu0 %v2901
        %v5450 = vpop.f32.mrf.mxu0
        %v5451 = vadd.f32 %v5122, %v5450
        %v5452 = vpop.f32.mrf.mxu0
        %v5453 = vadd.f32 %v5124, %v5452
        %5454 = vmatmul.bf16.gmra.mxu0 %v2909
        %v5455 = vpop.f32.mrf.mxu0
        %v5456 = vadd.f32 %v5127, %v5455
        %v5457 = vpop.f32.mrf.mxu0
        %v5458 = vadd.f32 %v5129, %v5457
        %5459 = vmatmul.bf16.gmra.mxu0 %v2917
        %v5460 = vpop.f32.mrf.mxu0
        %v5461 = vadd.f32 %v5132, %v5460
        %v5462 = vpop.f32.mrf.mxu0
        %v5463 = vadd.f32 %v5134, %v5462
        %5464 = vmatmul.bf16.gmra.mxu0 %v2925
        %v5465 = vpop.f32.mrf.mxu0
        %v5466 = vadd.f32 %v5137, %v5465
        %v5467 = vpop.f32.mrf.mxu0
        %v5468 = vadd.f32 %v5139, %v5467
        %5469 = vdwg.mxu0
        %5470 = vmatpush.bf16.msra.mxu0 %v3744
        %5471 = vmatpush.bf16.msra.mxu0 %v3743
        %5472 = vmatpush.bf16.msra.mxu0 %v3742
        %5473 = vmatpush.bf16.msra.mxu0 %v3741
        %5474 = vmatpush.bf16.msra.mxu0 %v3740
        %5475 = vmatpush.bf16.msra.mxu0 %v3739
        %5476 = vmatpush.bf16.msra.mxu0 %v3738
        %5477 = vmatpush.bf16.msra.mxu0 %v3737
        %5478 = vmatmul.bf16.gmra.mxu0 %v2422
        %v5479 = vpop.f32.mrf.mxu0
        %v5480 = vadd.f32 %v5151, %v5479
        %v5481 = vpop.f32.mrf.mxu0
        %v5482 = vadd.f32 %v5153, %v5481
        %5483 = vmatmul.bf16.gmra.mxu0 %v2430
        %v5484 = vpop.f32.mrf.mxu0
        %v5485 = vadd.f32 %v5156, %v5484
        %v5486 = vpop.f32.mrf.mxu0
        %v5487 = vadd.f32 %v5158, %v5486
        %5488 = vmatmul.bf16.gmra.mxu0 %v2438
        %v5489 = vpop.f32.mrf.mxu0
        %v5490 = vadd.f32 %v5161, %v5489
        %v5491 = vpop.f32.mrf.mxu0
        %v5492 = vadd.f32 %v5163, %v5491
        %5493 = vmatmul.bf16.gmra.mxu0 %v2446
        %v5494 = vpop.f32.mrf.mxu0
        %v5495 = vadd.f32 %v5166, %v5494
        %v5496 = vpop.f32.mrf.mxu0
        %v5497 = vadd.f32 %v5168, %v5496
        %5498 = vmatmul.bf16.gmra.mxu0 %v2454
        %v5499 = vpop.f32.mrf.mxu0
        %v5500 = vadd.f32 %v5171, %v5499
        %v5501 = vpop.f32.mrf.mxu0
        %v5502 = vadd.f32 %v5173, %v5501
        %5503 = vmatmul.bf16.gmra.mxu0 %v2462
        %v5504 = vpop.f32.mrf.mxu0
        %v5505 = vadd.f32 %v5176, %v5504
        %v5506 = vpop.f32.mrf.mxu0
        %v5507 = vadd.f32 %v5178, %v5506
        %5508 = vmatmul.bf16.gmra.mxu0 %v2470
        %v5509 = vpop.f32.mrf.mxu0
        %v5510 = vadd.f32 %v5181, %v5509
        %v5511 = vpop.f32.mrf.mxu0
        %v5512 = vadd.f32 %v5183, %v5511
        %5513 = vmatmul.bf16.gmra.mxu0 %v2478
        %v5514 = vpop.f32.mrf.mxu0
        %v5515 = vadd.f32 %v5186, %v5514
        %v5516 = vpop.f32.mrf.mxu0
        %v5517 = vadd.f32 %v5188, %v5516
        %5518 = vmatmul.bf16.gmra.mxu0 %v2486
        %v5519 = vpop.f32.mrf.mxu0
        %v5520 = vadd.f32 %v5191, %v5519
        %v5521 = vpop.f32.mrf.mxu0
        %v5522 = vadd.f32 %v5193, %v5521
        %5523 = vmatmul.bf16.gmra.mxu0 %v2494
        %v5524 = vpop.f32.mrf.mxu0
        %v5525 = vadd.f32 %v5196, %v5524
        %v5526 = vpop.f32.mrf.mxu0
        %v5527 = vadd.f32 %v5198, %v5526
        %5528 = vmatmul.bf16.gmra.mxu0 %v2502
        %v5529 = vpop.f32.mrf.mxu0
        %v5530 = vadd.f32 %v5201, %v5529
        %v5531 = vpop.f32.mrf.mxu0
        %v5532 = vadd.f32 %v5203, %v5531
        %5533 = vmatmul.bf16.gmra.mxu0 %v2510
        %v5534 = vpop.f32.mrf.mxu0
        %v5535 = vadd.f32 %v5206, %v5534
        %v5536 = vpop.f32.mrf.mxu0
        %v5537 = vadd.f32 %v5208, %v5536
        %5538 = vmatmul.bf16.gmra.mxu0 %v2518
        %v5539 = vpop.f32.mrf.mxu0
        %v5540 = vadd.f32 %v5211, %v5539
        %v5541 = vpop.f32.mrf.mxu0
        %v5542 = vadd.f32 %v5213, %v5541
        %5543 = vmatmul.bf16.gmra.mxu0 %v2526
        %v5544 = vpop.f32.mrf.mxu0
        %v5545 = vadd.f32 %v5216, %v5544
        %v5546 = vpop.f32.mrf.mxu0
        %v5547 = vadd.f32 %v5218, %v5546
        %5548 = vmatmul.bf16.gmra.mxu0 %v2534
        %v5549 = vpop.f32.mrf.mxu0
        %v5550 = vadd.f32 %v5221, %v5549
        %v5551 = vpop.f32.mrf.mxu0
        %v5552 = vadd.f32 %v5223, %v5551
        %5553 = vmatmul.bf16.gmra.mxu0 %v2542
        %v5554 = vpop.f32.mrf.mxu0
        %v5555 = vadd.f32 %v5226, %v5554
        %v5556 = vpop.f32.mrf.mxu0
        %v5557 = vadd.f32 %v5228, %v5556
        %5558 = vmatmul.bf16.gmra.mxu0 %v2550
        %v5559 = vpop.f32.mrf.mxu0
        %v5560 = vadd.f32 %v5231, %v5559
        %v5561 = vpop.f32.mrf.mxu0
        %v5562 = vadd.f32 %v5233, %v5561
        %5563 = vmatmul.bf16.gmra.mxu0 %v2558
        %v5564 = vpop.f32.mrf.mxu0
        %v5565 = vadd.f32 %v5236, %v5564
        %v5566 = vpop.f32.mrf.mxu0
        %v5567 = vadd.f32 %v5238, %v5566
        %5568 = vmatmul.bf16.gmra.mxu0 %v2566
        %v5569 = vpop.f32.mrf.mxu0
        %v5570 = vadd.f32 %v5241, %v5569
        %v5571 = vpop.f32.mrf.mxu0
        %v5572 = vadd.f32 %v5243, %v5571
        %5573 = vmatmul.bf16.gmra.mxu0 %v2574
        %v5574 = vpop.f32.mrf.mxu0
        %v5575 = vadd.f32 %v5246, %v5574
        %v5576 = vpop.f32.mrf.mxu0
        %v5577 = vadd.f32 %v5248, %v5576
        %5578 = vmatmul.bf16.gmra.mxu0 %v2582
        %v5579 = vpop.f32.mrf.mxu0
        %v5580 = vadd.f32 %v5251, %v5579
        %v5581 = vpop.f32.mrf.mxu0
        %v5582 = vadd.f32 %v5253, %v5581
        %5583 = vmatmul.bf16.gmra.mxu0 %v2590
        %v5584 = vpop.f32.mrf.mxu0
        %v5585 = vadd.f32 %v5256, %v5584
        %v5586 = vpop.f32.mrf.mxu0
        %v5587 = vadd.f32 %v5258, %v5586
        %5588 = vmatmul.bf16.gmra.mxu0 %v2598
        %v5589 = vpop.f32.mrf.mxu0
        %v5590 = vadd.f32 %v5261, %v5589
        %v5591 = vpop.f32.mrf.mxu0
        %v5592 = vadd.f32 %v5263, %v5591
        %5593 = vmatmul.bf16.gmra.mxu0 %v2606
        %v5594 = vpop.f32.mrf.mxu0
        %v5595 = vadd.f32 %v5266, %v5594
        %v5596 = vpop.f32.mrf.mxu0
        %v5597 = vadd.f32 %v5268, %v5596
        %5598 = vmatmul.bf16.gmra.mxu0 %v2614
        %v5599 = vpop.f32.mrf.mxu0
        %v5600 = vadd.f32 %v5271, %v5599
        %v5601 = vpop.f32.mrf.mxu0
        %v5602 = vadd.f32 %v5273, %v5601
        %5603 = vmatmul.bf16.gmra.mxu0 %v2622
        %v5604 = vpop.f32.mrf.mxu0
        %v5605 = vadd.f32 %v5276, %v5604
        %v5606 = vpop.f32.mrf.mxu0
        %v5607 = vadd.f32 %v5278, %v5606
        %5608 = vmatmul.bf16.gmra.mxu0 %v2630
        %v5609 = vpop.f32.mrf.mxu0
        %v5610 = vadd.f32 %v5281, %v5609
        %v5611 = vpop.f32.mrf.mxu0
        %v5612 = vadd.f32 %v5283, %v5611
        %5613 = vmatmul.bf16.gmra.mxu0 %v2638
        %v5614 = vpop.f32.mrf.mxu0
        %v5615 = vadd.f32 %v5286, %v5614
        %v5616 = vpop.f32.mrf.mxu0
        %v5617 = vadd.f32 %v5288, %v5616
        %5618 = vmatmul.bf16.gmra.mxu0 %v2646
        %v5619 = vpop.f32.mrf.mxu0
        %v5620 = vadd.f32 %v5291, %v5619
        %v5621 = vpop.f32.mrf.mxu0
        %v5622 = vadd.f32 %v5293, %v5621
        %5623 = vmatmul.bf16.gmra.mxu0 %v2654
        %v5624 = vpop.f32.mrf.mxu0
        %v5625 = vadd.f32 %v5296, %v5624
        %v5626 = vpop.f32.mrf.mxu0
        %v5627 = vadd.f32 %v5298, %v5626
        %5628 = vmatmul.bf16.gmra.mxu0 %v2662
        %v5629 = vpop.f32.mrf.mxu0
        %v5630 = vadd.f32 %v5301, %v5629
        %v5631 = vpop.f32.mrf.mxu0
        %v5632 = vadd.f32 %v5303, %v5631
        %5633 = vmatmul.bf16.gmra.mxu0 %v2670
        %v5634 = vpop.f32.mrf.mxu0
        %v5635 = vadd.f32 %v5306, %v5634
        %v5636 = vpop.f32.mrf.mxu0
        %v5637 = vadd.f32 %v5308, %v5636
        %5638 = vmatmul.bf16.gmra.mxu0 %v2678
        %v5639 = vpop.f32.mrf.mxu0
        %v5640 = vadd.f32 %v5311, %v5639
        %v5641 = vpop.f32.mrf.mxu0
        %v5642 = vadd.f32 %v5313, %v5641
        %5643 = vmatmul.bf16.gmra.mxu0 %v2686
        %v5644 = vpop.f32.mrf.mxu0
        %v5645 = vadd.f32 %v5316, %v5644
        %v5646 = vpop.f32.mrf.mxu0
        %v5647 = vadd.f32 %v5318, %v5646
        %5648 = vmatmul.bf16.gmra.mxu0 %v2694
        %v5649 = vpop.f32.mrf.mxu0
        %v5650 = vadd.f32 %v5321, %v5649
        %v5651 = vpop.f32.mrf.mxu0
        %v5652 = vadd.f32 %v5323, %v5651
        %5653 = vmatmul.bf16.gmra.mxu0 %v2702
        %v5654 = vpop.f32.mrf.mxu0
        %v5655 = vadd.f32 %v5326, %v5654
        %v5656 = vpop.f32.mrf.mxu0
        %v5657 = vadd.f32 %v5328, %v5656
        %5658 = vmatmul.bf16.gmra.mxu0 %v2710
        %v5659 = vpop.f32.mrf.mxu0
        %v5660 = vadd.f32 %v5331, %v5659
        %v5661 = vpop.f32.mrf.mxu0
        %v5662 = vadd.f32 %v5333, %v5661
        %5663 = vmatmul.bf16.gmra.mxu0 %v2718
        %v5664 = vpop.f32.mrf.mxu0
        %v5665 = vadd.f32 %v5336, %v5664
        %v5666 = vpop.f32.mrf.mxu0
        %v5667 = vadd.f32 %v5338, %v5666
        %5668 = vmatmul.bf16.gmra.mxu0 %v2726
        %v5669 = vpop.f32.mrf.mxu0
        %v5670 = vadd.f32 %v5341, %v5669
        %v5671 = vpop.f32.mrf.mxu0
        %v5672 = vadd.f32 %v5343, %v5671
        %5673 = vmatmul.bf16.gmra.mxu0 %v2734
        %v5674 = vpop.f32.mrf.mxu0
        %v5675 = vadd.f32 %v5346, %v5674
        %v5676 = vpop.f32.mrf.mxu0
        %v5677 = vadd.f32 %v5348, %v5676
        %5678 = vmatmul.bf16.gmra.mxu0 %v2742
        %v5679 = vpop.f32.mrf.mxu0
        %v5680 = vadd.f32 %v5351, %v5679
        %v5681 = vpop.f32.mrf.mxu0
        %v5682 = vadd.f32 %v5353, %v5681
        %5683 = vmatmul.bf16.gmra.mxu0 %v2750
        %v5684 = vpop.f32.mrf.mxu0
        %v5685 = vadd.f32 %v5356, %v5684
        %v5686 = vpop.f32.mrf.mxu0
        %v5687 = vadd.f32 %v5358, %v5686
        %5688 = vmatmul.bf16.gmra.mxu0 %v2758
        %v5689 = vpop.f32.mrf.mxu0
        %v5690 = vadd.f32 %v5361, %v5689
        %v5691 = vpop.f32.mrf.mxu0
        %v5692 = vadd.f32 %v5363, %v5691
        %5693 = vmatmul.bf16.gmra.mxu0 %v2766
        %v5694 = vpop.f32.mrf.mxu0
        %v5695 = vadd.f32 %v5366, %v5694
        %v5696 = vpop.f32.mrf.mxu0
        %v5697 = vadd.f32 %v5368, %v5696
        %5698 = vmatmul.bf16.gmra.mxu0 %v2774
        %v5699 = vpop.f32.mrf.mxu0
        %v5700 = vadd.f32 %v5371, %v5699
        %v5701 = vpop.f32.mrf.mxu0
        %v5702 = vadd.f32 %v5373, %v5701
        %5703 = vmatmul.bf16.gmra.mxu0 %v2782
        %v5704 = vpop.f32.mrf.mxu0
        %v5705 = vadd.f32 %v5376, %v5704
        %v5706 = vpop.f32.mrf.mxu0
        %v5707 = vadd.f32 %v5378, %v5706
        %5708 = vmatmul.bf16.gmra.mxu0 %v2790
        %v5709 = vpop.f32.mrf.mxu0
        %v5710 = vadd.f32 %v5381, %v5709
        %v5711 = vpop.f32.mrf.mxu0
        %v5712 = vadd.f32 %v5383, %v5711
        %5713 = vmatmul.bf16.gmra.mxu0 %v2798
        %v5714 = vpop.f32.mrf.mxu0
        %v5715 = vadd.f32 %v5386, %v5714
        %v5716 = vpop.f32.mrf.mxu0
        %v5717 = vadd.f32 %v5388, %v5716
        %5718 = vmatmul.bf16.gmra.mxu0 %v2806
        %v5719 = vpop.f32.mrf.mxu0
        %v5720 = vadd.f32 %v5391, %v5719
        %v5721 = vpop.f32.mrf.mxu0
        %v5722 = vadd.f32 %v5393, %v5721
        %5723 = vmatmul.bf16.gmra.mxu0 %v2814
        %v5724 = vpop.f32.mrf.mxu0
        %v5725 = vadd.f32 %v5396, %v5724
        %v5726 = vpop.f32.mrf.mxu0
        %v5727 = vadd.f32 %v5398, %v5726
        %5728 = vmatmul.bf16.gmra.mxu0 %v2822
        %v5729 = vpop.f32.mrf.mxu0
        %v5730 = vadd.f32 %v5401, %v5729
        %v5731 = vpop.f32.mrf.mxu0
        %v5732 = vadd.f32 %v5403, %v5731
        %5733 = vmatmul.bf16.gmra.mxu0 %v2830
        %v5734 = vpop.f32.mrf.mxu0
        %v5735 = vadd.f32 %v5406, %v5734
        %v5736 = vpop.f32.mrf.mxu0
        %v5737 = vadd.f32 %v5408, %v5736
        %5738 = vmatmul.bf16.gmra.mxu0 %v2838
        %v5739 = vpop.f32.mrf.mxu0
        %v5740 = vadd.f32 %v5411, %v5739
        %v5741 = vpop.f32.mrf.mxu0
        %v5742 = vadd.f32 %v5413, %v5741
        %5743 = vmatmul.bf16.gmra.mxu0 %v2846
        %v5744 = vpop.f32.mrf.mxu0
        %v5745 = vadd.f32 %v5416, %v5744
        %v5746 = vpop.f32.mrf.mxu0
        %v5747 = vadd.f32 %v5418, %v5746
        %5748 = vmatmul.bf16.gmra.mxu0 %v2854
        %v5749 = vpop.f32.mrf.mxu0
        %v5750 = vadd.f32 %v5421, %v5749
        %v5751 = vpop.f32.mrf.mxu0
        %v5752 = vadd.f32 %v5423, %v5751
        %5753 = vmatmul.bf16.gmra.mxu0 %v2862
        %v5754 = vpop.f32.mrf.mxu0
        %v5755 = vadd.f32 %v5426, %v5754
        %v5756 = vpop.f32.mrf.mxu0
        %v5757 = vadd.f32 %v5428, %v5756
        %5758 = vmatmul.bf16.gmra.mxu0 %v2870
        %v5759 = vpop.f32.mrf.mxu0
        %v5760 = vadd.f32 %v5431, %v5759
        %v5761 = vpop.f32.mrf.mxu0
        %v5762 = vadd.f32 %v5433, %v5761
        %5763 = vmatmul.bf16.gmra.mxu0 %v2878
        %v5764 = vpop.f32.mrf.mxu0
        %v5765 = vadd.f32 %v5436, %v5764
        %v5766 = vpop.f32.mrf.mxu0
        %v5767 = vadd.f32 %v5438, %v5766
        %5768 = vmatmul.bf16.gmra.mxu0 %v2886
        %v5769 = vpop.f32.mrf.mxu0
        %v5770 = vadd.f32 %v5441, %v5769
        %v5771 = vpop.f32.mrf.mxu0
        %v5772 = vadd.f32 %v5443, %v5771
        %5773 = vmatmul.bf16.gmra.mxu0 %v2894
        %v5774 = vpop.f32.mrf.mxu0
        %v5775 = vadd.f32 %v5446, %v5774
        %v5776 = vpop.f32.mrf.mxu0
        %v5777 = vadd.f32 %v5448, %v5776
        %5778 = vmatmul.bf16.gmra.mxu0 %v2902
        %v5779 = vpop.f32.mrf.mxu0
        %v5780 = vadd.f32 %v5451, %v5779
        %v5781 = vpop.f32.mrf.mxu0
        %v5782 = vadd.f32 %v5453, %v5781
        %5783 = vmatmul.bf16.gmra.mxu0 %v2910
        %v5784 = vpop.f32.mrf.mxu0
        %v5785 = vadd.f32 %v5456, %v5784
        %v5786 = vpop.f32.mrf.mxu0
        %v5787 = vadd.f32 %v5458, %v5786
        %5788 = vmatmul.bf16.gmra.mxu0 %v2918
        %v5789 = vpop.f32.mrf.mxu0
        %v5790 = vadd.f32 %v5461, %v5789
        %v5791 = vpop.f32.mrf.mxu0
        %v5792 = vadd.f32 %v5463, %v5791
        %5793 = vmatmul.bf16.gmra.mxu0 %v2926
        %v5794 = vpop.f32.mrf.mxu0
        %v5795 = vadd.f32 %v5466, %v5794
        %v5796 = vpop.f32.mrf.mxu0
        %v5797 = vadd.f32 %v5468, %v5796
        %5798 = vdwg.mxu0
        %5799 = vmatpush.bf16.msra.mxu0 %v3752
        %5800 = vmatpush.bf16.msra.mxu0 %v3751
        %5801 = vmatpush.bf16.msra.mxu0 %v3750
        %5802 = vmatpush.bf16.msra.mxu0 %v3749
        %5803 = vmatpush.bf16.msra.mxu0 %v3748
        %5804 = vmatpush.bf16.msra.mxu0 %v3747
        %5805 = vmatpush.bf16.msra.mxu0 %v3746
        %5806 = vmatpush.bf16.msra.mxu0 %v3745
        %5807 = vmatmul.bf16.gmra.mxu0 %v2423
        %v5808 = vpop.f32.mrf.mxu0
        %v5809 = vadd.f32 %v5480, %v5808
        %v5810 = vpop.f32.mrf.mxu0
        %v5811 = vadd.f32 %v5482, %v5810
        %5812 = vmatmul.bf16.gmra.mxu0 %v2431
        %v5813 = vpop.f32.mrf.mxu0
        %v5814 = vadd.f32 %v5485, %v5813
        %v5815 = vpop.f32.mrf.mxu0
        %v5816 = vadd.f32 %v5487, %v5815
        %5817 = vmatmul.bf16.gmra.mxu0 %v2439
        %v5818 = vpop.f32.mrf.mxu0
        %v5819 = vadd.f32 %v5490, %v5818
        %v5820 = vpop.f32.mrf.mxu0
        %v5821 = vadd.f32 %v5492, %v5820
        %5822 = vmatmul.bf16.gmra.mxu0 %v2447
        %v5823 = vpop.f32.mrf.mxu0
        %v5824 = vadd.f32 %v5495, %v5823
        %v5825 = vpop.f32.mrf.mxu0
        %v5826 = vadd.f32 %v5497, %v5825
        %5827 = vmatmul.bf16.gmra.mxu0 %v2455
        %v5828 = vpop.f32.mrf.mxu0
        %v5829 = vadd.f32 %v5500, %v5828
        %v5830 = vpop.f32.mrf.mxu0
        %v5831 = vadd.f32 %v5502, %v5830
        %5832 = vmatmul.bf16.gmra.mxu0 %v2463
        %v5833 = vpop.f32.mrf.mxu0
        %v5834 = vadd.f32 %v5505, %v5833
        %v5835 = vpop.f32.mrf.mxu0
        %v5836 = vadd.f32 %v5507, %v5835
        %5837 = vmatmul.bf16.gmra.mxu0 %v2471
        %v5838 = vpop.f32.mrf.mxu0
        %v5839 = vadd.f32 %v5510, %v5838
        %v5840 = vpop.f32.mrf.mxu0
        %v5841 = vadd.f32 %v5512, %v5840
        %5842 = vmatmul.bf16.gmra.mxu0 %v2479
        %v5843 = vpop.f32.mrf.mxu0
        %v5844 = vadd.f32 %v5515, %v5843
        %v5845 = vpop.f32.mrf.mxu0
        %v5846 = vadd.f32 %v5517, %v5845
        %5847 = vmatmul.bf16.gmra.mxu0 %v2487
        %v5848 = vpop.f32.mrf.mxu0
        %v5849 = vadd.f32 %v5520, %v5848
        %v5850 = vpop.f32.mrf.mxu0
        %v5851 = vadd.f32 %v5522, %v5850
        %5852 = vmatmul.bf16.gmra.mxu0 %v2495
        %v5853 = vpop.f32.mrf.mxu0
        %v5854 = vadd.f32 %v5525, %v5853
        %v5855 = vpop.f32.mrf.mxu0
        %v5856 = vadd.f32 %v5527, %v5855
        %5857 = vmatmul.bf16.gmra.mxu0 %v2503
        %v5858 = vpop.f32.mrf.mxu0
        %v5859 = vadd.f32 %v5530, %v5858
        %v5860 = vpop.f32.mrf.mxu0
        %v5861 = vadd.f32 %v5532, %v5860
        %5862 = vmatmul.bf16.gmra.mxu0 %v2511
        %v5863 = vpop.f32.mrf.mxu0
        %v5864 = vadd.f32 %v5535, %v5863
        %v5865 = vpop.f32.mrf.mxu0
        %v5866 = vadd.f32 %v5537, %v5865
        %5867 = vmatmul.bf16.gmra.mxu0 %v2519
        %v5868 = vpop.f32.mrf.mxu0
        %v5869 = vadd.f32 %v5540, %v5868
        %v5870 = vpop.f32.mrf.mxu0
        %v5871 = vadd.f32 %v5542, %v5870
        %5872 = vmatmul.bf16.gmra.mxu0 %v2527
        %v5873 = vpop.f32.mrf.mxu0
        %v5874 = vadd.f32 %v5545, %v5873
        %v5875 = vpop.f32.mrf.mxu0
        %v5876 = vadd.f32 %v5547, %v5875
        %5877 = vmatmul.bf16.gmra.mxu0 %v2535
        %v5878 = vpop.f32.mrf.mxu0
        %v5879 = vadd.f32 %v5550, %v5878
        %v5880 = vpop.f32.mrf.mxu0
        %v5881 = vadd.f32 %v5552, %v5880
        %5882 = vmatmul.bf16.gmra.mxu0 %v2543
        %v5883 = vpop.f32.mrf.mxu0
        %v5884 = vadd.f32 %v5555, %v5883
        %v5885 = vpop.f32.mrf.mxu0
        %v5886 = vadd.f32 %v5557, %v5885
        %5887 = vmatmul.bf16.gmra.mxu0 %v2551
        %v5888 = vpop.f32.mrf.mxu0
        %v5889 = vadd.f32 %v5560, %v5888
        %v5890 = vpop.f32.mrf.mxu0
        %v5891 = vadd.f32 %v5562, %v5890
        %5892 = vmatmul.bf16.gmra.mxu0 %v2559
        %v5893 = vpop.f32.mrf.mxu0
        %v5894 = vadd.f32 %v5565, %v5893
        %v5895 = vpop.f32.mrf.mxu0
        %v5896 = vadd.f32 %v5567, %v5895
        %5897 = vmatmul.bf16.gmra.mxu0 %v2567
        %v5898 = vpop.f32.mrf.mxu0
        %v5899 = vadd.f32 %v5570, %v5898
        %v5900 = vpop.f32.mrf.mxu0
        %v5901 = vadd.f32 %v5572, %v5900
        %5902 = vmatmul.bf16.gmra.mxu0 %v2575
        %v5903 = vpop.f32.mrf.mxu0
        %v5904 = vadd.f32 %v5575, %v5903
        %v5905 = vpop.f32.mrf.mxu0
        %v5906 = vadd.f32 %v5577, %v5905
        %5907 = vmatmul.bf16.gmra.mxu0 %v2583
        %v5908 = vpop.f32.mrf.mxu0
        %v5909 = vadd.f32 %v5580, %v5908
        %v5910 = vpop.f32.mrf.mxu0
        %v5911 = vadd.f32 %v5582, %v5910
        %5912 = vmatmul.bf16.gmra.mxu0 %v2591
        %v5913 = vpop.f32.mrf.mxu0
        %v5914 = vadd.f32 %v5585, %v5913
        %v5915 = vpop.f32.mrf.mxu0
        %v5916 = vadd.f32 %v5587, %v5915
        %5917 = vmatmul.bf16.gmra.mxu0 %v2599
        %v5918 = vpop.f32.mrf.mxu0
        %v5919 = vadd.f32 %v5590, %v5918
        %v5920 = vpop.f32.mrf.mxu0
        %v5921 = vadd.f32 %v5592, %v5920
        %5922 = vmatmul.bf16.gmra.mxu0 %v2607
        %v5923 = vpop.f32.mrf.mxu0
        %v5924 = vadd.f32 %v5595, %v5923
        %v5925 = vpop.f32.mrf.mxu0
        %v5926 = vadd.f32 %v5597, %v5925
        %5927 = vmatmul.bf16.gmra.mxu0 %v2615
        %v5928 = vpop.f32.mrf.mxu0
        %v5929 = vadd.f32 %v5600, %v5928
        %v5930 = vpop.f32.mrf.mxu0
        %v5931 = vadd.f32 %v5602, %v5930
        %5932 = vmatmul.bf16.gmra.mxu0 %v2623
        %v5933 = vpop.f32.mrf.mxu0
        %v5934 = vadd.f32 %v5605, %v5933
        %v5935 = vpop.f32.mrf.mxu0
        %v5936 = vadd.f32 %v5607, %v5935
        %5937 = vmatmul.bf16.gmra.mxu0 %v2631
        %v5938 = vpop.f32.mrf.mxu0
        %v5939 = vadd.f32 %v5610, %v5938
        %v5940 = vpop.f32.mrf.mxu0
        %v5941 = vadd.f32 %v5612, %v5940
        %5942 = vmatmul.bf16.gmra.mxu0 %v2639
        %v5943 = vpop.f32.mrf.mxu0
        %v5944 = vadd.f32 %v5615, %v5943
        %v5945 = vpop.f32.mrf.mxu0
        %v5946 = vadd.f32 %v5617, %v5945
        %5947 = vmatmul.bf16.gmra.mxu0 %v2647
        %v5948 = vpop.f32.mrf.mxu0
        %v5949 = vadd.f32 %v5620, %v5948
        %v5950 = vpop.f32.mrf.mxu0
        %v5951 = vadd.f32 %v5622, %v5950
        %5952 = vmatmul.bf16.gmra.mxu0 %v2655
        %v5953 = vpop.f32.mrf.mxu0
        %v5954 = vadd.f32 %v5625, %v5953
        %v5955 = vpop.f32.mrf.mxu0
        %v5956 = vadd.f32 %v5627, %v5955
        %5957 = vmatmul.bf16.gmra.mxu0 %v2663
        %v5958 = vpop.f32.mrf.mxu0
        %v5959 = vadd.f32 %v5630, %v5958
        %v5960 = vpop.f32.mrf.mxu0
        %v5961 = vadd.f32 %v5632, %v5960
        %5962 = vmatmul.bf16.gmra.mxu0 %v2671
        %v5963 = vpop.f32.mrf.mxu0
        %v5964 = vadd.f32 %v5635, %v5963
        %v5965 = vpop.f32.mrf.mxu0
        %v5966 = vadd.f32 %v5637, %v5965
        %5967 = vmatmul.bf16.gmra.mxu0 %v2679
        %v5968 = vpop.f32.mrf.mxu0
        %v5969 = vadd.f32 %v5640, %v5968
        %v5970 = vpop.f32.mrf.mxu0
        %v5971 = vadd.f32 %v5642, %v5970
        %5972 = vmatmul.bf16.gmra.mxu0 %v2687
        %v5973 = vpop.f32.mrf.mxu0
        %v5974 = vadd.f32 %v5645, %v5973
        %v5975 = vpop.f32.mrf.mxu0
        %v5976 = vadd.f32 %v5647, %v5975
        %5977 = vmatmul.bf16.gmra.mxu0 %v2695
        %v5978 = vpop.f32.mrf.mxu0
        %v5979 = vadd.f32 %v5650, %v5978
        %v5980 = vpop.f32.mrf.mxu0
        %v5981 = vadd.f32 %v5652, %v5980
        %5982 = vmatmul.bf16.gmra.mxu0 %v2703
        %v5983 = vpop.f32.mrf.mxu0
        %v5984 = vadd.f32 %v5655, %v5983
        %v5985 = vpop.f32.mrf.mxu0
        %v5986 = vadd.f32 %v5657, %v5985
        %5987 = vmatmul.bf16.gmra.mxu0 %v2711
        %v5988 = vpop.f32.mrf.mxu0
        %v5989 = vadd.f32 %v5660, %v5988
        %v5990 = vpop.f32.mrf.mxu0
        %v5991 = vadd.f32 %v5662, %v5990
        %5992 = vmatmul.bf16.gmra.mxu0 %v2719
        %v5993 = vpop.f32.mrf.mxu0
        %v5994 = vadd.f32 %v5665, %v5993
        %v5995 = vpop.f32.mrf.mxu0
        %v5996 = vadd.f32 %v5667, %v5995
        %5997 = vmatmul.bf16.gmra.mxu0 %v2727
        %v5998 = vpop.f32.mrf.mxu0
        %v5999 = vadd.f32 %v5670, %v5998
        %v6000 = vpop.f32.mrf.mxu0
        %v6001 = vadd.f32 %v5672, %v6000
        %6002 = vmatmul.bf16.gmra.mxu0 %v2735
        %v6003 = vpop.f32.mrf.mxu0
        %v6004 = vadd.f32 %v5675, %v6003
        %v6005 = vpop.f32.mrf.mxu0
        %v6006 = vadd.f32 %v5677, %v6005
        %6007 = vmatmul.bf16.gmra.mxu0 %v2743
        %v6008 = vpop.f32.mrf.mxu0
        %v6009 = vadd.f32 %v5680, %v6008
        %v6010 = vpop.f32.mrf.mxu0
        %v6011 = vadd.f32 %v5682, %v6010
        %6012 = vmatmul.bf16.gmra.mxu0 %v2751
        %v6013 = vpop.f32.mrf.mxu0
        %v6014 = vadd.f32 %v5685, %v6013
        %v6015 = vpop.f32.mrf.mxu0
        %v6016 = vadd.f32 %v5687, %v6015
        %6017 = vmatmul.bf16.gmra.mxu0 %v2759
        %v6018 = vpop.f32.mrf.mxu0
        %v6019 = vadd.f32 %v5690, %v6018
        %v6020 = vpop.f32.mrf.mxu0
        %v6021 = vadd.f32 %v5692, %v6020
        %6022 = vmatmul.bf16.gmra.mxu0 %v2767
        %v6023 = vpop.f32.mrf.mxu0
        %v6024 = vadd.f32 %v5695, %v6023
        %v6025 = vpop.f32.mrf.mxu0
        %v6026 = vadd.f32 %v5697, %v6025
        %6027 = vmatmul.bf16.gmra.mxu0 %v2775
        %v6028 = vpop.f32.mrf.mxu0
        %v6029 = vadd.f32 %v5700, %v6028
        %v6030 = vpop.f32.mrf.mxu0
        %v6031 = vadd.f32 %v5702, %v6030
        %6032 = vmatmul.bf16.gmra.mxu0 %v2783
        %v6033 = vpop.f32.mrf.mxu0
        %v6034 = vadd.f32 %v5705, %v6033
        %v6035 = vpop.f32.mrf.mxu0
        %v6036 = vadd.f32 %v5707, %v6035
        %6037 = vmatmul.bf16.gmra.mxu0 %v2791
        %v6038 = vpop.f32.mrf.mxu0
        %v6039 = vadd.f32 %v5710, %v6038
        %v6040 = vpop.f32.mrf.mxu0
        %v6041 = vadd.f32 %v5712, %v6040
        %6042 = vmatmul.bf16.gmra.mxu0 %v2799
        %v6043 = vpop.f32.mrf.mxu0
        %v6044 = vadd.f32 %v5715, %v6043
        %v6045 = vpop.f32.mrf.mxu0
        %v6046 = vadd.f32 %v5717, %v6045
        %6047 = vmatmul.bf16.gmra.mxu0 %v2807
        %v6048 = vpop.f32.mrf.mxu0
        %v6049 = vadd.f32 %v5720, %v6048
        %v6050 = vpop.f32.mrf.mxu0
        %v6051 = vadd.f32 %v5722, %v6050
        %6052 = vmatmul.bf16.gmra.mxu0 %v2815
        %v6053 = vpop.f32.mrf.mxu0
        %v6054 = vadd.f32 %v5725, %v6053
        %v6055 = vpop.f32.mrf.mxu0
        %v6056 = vadd.f32 %v5727, %v6055
        %6057 = vmatmul.bf16.gmra.mxu0 %v2823
        %v6058 = vpop.f32.mrf.mxu0
        %v6059 = vadd.f32 %v5730, %v6058
        %v6060 = vpop.f32.mrf.mxu0
        %v6061 = vadd.f32 %v5732, %v6060
        %6062 = vmatmul.bf16.gmra.mxu0 %v2831
        %v6063 = vpop.f32.mrf.mxu0
        %v6064 = vadd.f32 %v5735, %v6063
        %v6065 = vpop.f32.mrf.mxu0
        %v6066 = vadd.f32 %v5737, %v6065
        %6067 = vmatmul.bf16.gmra.mxu0 %v2839
        %v6068 = vpop.f32.mrf.mxu0
        %v6069 = vadd.f32 %v5740, %v6068
        %v6070 = vpop.f32.mrf.mxu0
        %v6071 = vadd.f32 %v5742, %v6070
        %6072 = vmatmul.bf16.gmra.mxu0 %v2847
        %v6073 = vpop.f32.mrf.mxu0
        %v6074 = vadd.f32 %v5745, %v6073
        %v6075 = vpop.f32.mrf.mxu0
        %v6076 = vadd.f32 %v5747, %v6075
        %6077 = vmatmul.bf16.gmra.mxu0 %v2855
        %v6078 = vpop.f32.mrf.mxu0
        %v6079 = vadd.f32 %v5750, %v6078
        %v6080 = vpop.f32.mrf.mxu0
        %v6081 = vadd.f32 %v5752, %v6080
        %6082 = vmatmul.bf16.gmra.mxu0 %v2863
        %v6083 = vpop.f32.mrf.mxu0
        %v6084 = vadd.f32 %v5755, %v6083
        %v6085 = vpop.f32.mrf.mxu0
        %v6086 = vadd.f32 %v5757, %v6085
        %6087 = vmatmul.bf16.gmra.mxu0 %v2871
        %v6088 = vpop.f32.mrf.mxu0
        %v6089 = vadd.f32 %v5760, %v6088
        %v6090 = vpop.f32.mrf.mxu0
        %v6091 = vadd.f32 %v5762, %v6090
        %6092 = vmatmul.bf16.gmra.mxu0 %v2879
        %v6093 = vpop.f32.mrf.mxu0
        %v6094 = vadd.f32 %v5765, %v6093
        %v6095 = vpop.f32.mrf.mxu0
        %v6096 = vadd.f32 %v5767, %v6095
        %6097 = vmatmul.bf16.gmra.mxu0 %v2887
        %v6098 = vpop.f32.mrf.mxu0
        %v6099 = vadd.f32 %v5770, %v6098
        %v6100 = vpop.f32.mrf.mxu0
        %v6101 = vadd.f32 %v5772, %v6100
        %6102 = vmatmul.bf16.gmra.mxu0 %v2895
        %v6103 = vpop.f32.mrf.mxu0
        %v6104 = vadd.f32 %v5775, %v6103
        %v6105 = vpop.f32.mrf.mxu0
        %v6106 = vadd.f32 %v5777, %v6105
        %6107 = vmatmul.bf16.gmra.mxu0 %v2903
        %v6108 = vpop.f32.mrf.mxu0
        %v6109 = vadd.f32 %v5780, %v6108
        %v6110 = vpop.f32.mrf.mxu0
        %v6111 = vadd.f32 %v5782, %v6110
        %6112 = vmatmul.bf16.gmra.mxu0 %v2911
        %v6113 = vpop.f32.mrf.mxu0
        %v6114 = vadd.f32 %v5785, %v6113
        %v6115 = vpop.f32.mrf.mxu0
        %v6116 = vadd.f32 %v5787, %v6115
        %6117 = vmatmul.bf16.gmra.mxu0 %v2919
        %v6118 = vpop.f32.mrf.mxu0
        %v6119 = vadd.f32 %v5790, %v6118
        %v6120 = vpop.f32.mrf.mxu0
        %v6121 = vadd.f32 %v5792, %v6120
        %6122 = vmatmul.bf16.gmra.mxu0 %v2927
        %v6123 = vpop.f32.mrf.mxu0
        %v6124 = vadd.f32 %v5795, %v6123
        %v6125 = vpop.f32.mrf.mxu0
        %v6126 = vadd.f32 %v5797, %v6125
        %6127 = vdwg.mxu0
        %6128 = vmatpush.bf16.msra.mxu0 %v3760
        %6129 = vmatpush.bf16.msra.mxu0 %v3759
        %6130 = vmatpush.bf16.msra.mxu0 %v3758
        %6131 = vmatpush.bf16.msra.mxu0 %v3757
        %6132 = vmatpush.bf16.msra.mxu0 %v3756
        %6133 = vmatpush.bf16.msra.mxu0 %v3755
        %6134 = vmatpush.bf16.msra.mxu0 %v3754
        %6135 = vmatpush.bf16.msra.mxu0 %v3753
        %6136 = vmatmul.bf16.gmra.mxu0 %v2424
        %v6137 = vpop.f32.mrf.mxu0
        %v6138 = vadd.f32 %v5809, %v6137
        %v6139 = vpop.f32.mrf.mxu0
        %v6140 = vadd.f32 %v5811, %v6139
        %6141 = vmatmul.bf16.gmra.mxu0 %v2432
        %v6142 = vpop.f32.mrf.mxu0
        %v6143 = vadd.f32 %v5814, %v6142
        %v6144 = vpop.f32.mrf.mxu0
        %v6145 = vadd.f32 %v5816, %v6144
        %6146 = vmatmul.bf16.gmra.mxu0 %v2440
        %v6147 = vpop.f32.mrf.mxu0
        %v6148 = vadd.f32 %v5819, %v6147
        %v6149 = vpop.f32.mrf.mxu0
        %v6150 = vadd.f32 %v5821, %v6149
        %6151 = vmatmul.bf16.gmra.mxu0 %v2448
        %v6152 = vpop.f32.mrf.mxu0
        %v6153 = vadd.f32 %v5824, %v6152
        %v6154 = vpop.f32.mrf.mxu0
        %v6155 = vadd.f32 %v5826, %v6154
        %6156 = vmatmul.bf16.gmra.mxu0 %v2456
        %v6157 = vpop.f32.mrf.mxu0
        %v6158 = vadd.f32 %v5829, %v6157
        %v6159 = vpop.f32.mrf.mxu0
        %v6160 = vadd.f32 %v5831, %v6159
        %6161 = vmatmul.bf16.gmra.mxu0 %v2464
        %v6162 = vpop.f32.mrf.mxu0
        %v6163 = vadd.f32 %v5834, %v6162
        %v6164 = vpop.f32.mrf.mxu0
        %v6165 = vadd.f32 %v5836, %v6164
        %6166 = vmatmul.bf16.gmra.mxu0 %v2472
        %v6167 = vpop.f32.mrf.mxu0
        %v6168 = vadd.f32 %v5839, %v6167
        %v6169 = vpop.f32.mrf.mxu0
        %v6170 = vadd.f32 %v5841, %v6169
        %6171 = vmatmul.bf16.gmra.mxu0 %v2480
        %v6172 = vpop.f32.mrf.mxu0
        %v6173 = vadd.f32 %v5844, %v6172
        %v6174 = vpop.f32.mrf.mxu0
        %v6175 = vadd.f32 %v5846, %v6174
        %6176 = vmatmul.bf16.gmra.mxu0 %v2488
        %v6177 = vpop.f32.mrf.mxu0
        %v6178 = vadd.f32 %v5849, %v6177
        %v6179 = vpop.f32.mrf.mxu0
        %v6180 = vadd.f32 %v5851, %v6179
        %6181 = vmatmul.bf16.gmra.mxu0 %v2496
        %v6182 = vpop.f32.mrf.mxu0
        %v6183 = vadd.f32 %v5854, %v6182
        %v6184 = vpop.f32.mrf.mxu0
        %v6185 = vadd.f32 %v5856, %v6184
        %6186 = vmatmul.bf16.gmra.mxu0 %v2504
        %v6187 = vpop.f32.mrf.mxu0
        %v6188 = vadd.f32 %v5859, %v6187
        %v6189 = vpop.f32.mrf.mxu0
        %v6190 = vadd.f32 %v5861, %v6189
        %6191 = vmatmul.bf16.gmra.mxu0 %v2512
        %v6192 = vpop.f32.mrf.mxu0
        %v6193 = vadd.f32 %v5864, %v6192
        %v6194 = vpop.f32.mrf.mxu0
        %v6195 = vadd.f32 %v5866, %v6194
        %6196 = vmatmul.bf16.gmra.mxu0 %v2520
        %v6197 = vpop.f32.mrf.mxu0
        %v6198 = vadd.f32 %v5869, %v6197
        %v6199 = vpop.f32.mrf.mxu0
        %v6200 = vadd.f32 %v5871, %v6199
        %6201 = vmatmul.bf16.gmra.mxu0 %v2528
        %v6202 = vpop.f32.mrf.mxu0
        %v6203 = vadd.f32 %v5874, %v6202
        %v6204 = vpop.f32.mrf.mxu0
        %v6205 = vadd.f32 %v5876, %v6204
        %6206 = vmatmul.bf16.gmra.mxu0 %v2536
        %v6207 = vpop.f32.mrf.mxu0
        %v6208 = vadd.f32 %v5879, %v6207
        %v6209 = vpop.f32.mrf.mxu0
        %v6210 = vadd.f32 %v5881, %v6209
        %6211 = vmatmul.bf16.gmra.mxu0 %v2544
        %v6212 = vpop.f32.mrf.mxu0
        %v6213 = vadd.f32 %v5884, %v6212
        %v6214 = vpop.f32.mrf.mxu0
        %v6215 = vadd.f32 %v5886, %v6214
        %6216 = vmatmul.bf16.gmra.mxu0 %v2552
        %v6217 = vpop.f32.mrf.mxu0
        %v6218 = vadd.f32 %v5889, %v6217
        %v6219 = vpop.f32.mrf.mxu0
        %v6220 = vadd.f32 %v5891, %v6219
        %6221 = vmatmul.bf16.gmra.mxu0 %v2560
        %v6222 = vpop.f32.mrf.mxu0
        %v6223 = vadd.f32 %v5894, %v6222
        %v6224 = vpop.f32.mrf.mxu0
        %v6225 = vadd.f32 %v5896, %v6224
        %6226 = vmatmul.bf16.gmra.mxu0 %v2568
        %v6227 = vpop.f32.mrf.mxu0
        %v6228 = vadd.f32 %v5899, %v6227
        %v6229 = vpop.f32.mrf.mxu0
        %v6230 = vadd.f32 %v5901, %v6229
        %6231 = vmatmul.bf16.gmra.mxu0 %v2576
        %v6232 = vpop.f32.mrf.mxu0
        %v6233 = vadd.f32 %v5904, %v6232
        %v6234 = vpop.f32.mrf.mxu0
        %v6235 = vadd.f32 %v5906, %v6234
        %6236 = vmatmul.bf16.gmra.mxu0 %v2584
        %v6237 = vpop.f32.mrf.mxu0
        %v6238 = vadd.f32 %v5909, %v6237
        %v6239 = vpop.f32.mrf.mxu0
        %v6240 = vadd.f32 %v5911, %v6239
        %6241 = vmatmul.bf16.gmra.mxu0 %v2592
        %v6242 = vpop.f32.mrf.mxu0
        %v6243 = vadd.f32 %v5914, %v6242
        %v6244 = vpop.f32.mrf.mxu0
        %v6245 = vadd.f32 %v5916, %v6244
        %6246 = vmatmul.bf16.gmra.mxu0 %v2600
        %v6247 = vpop.f32.mrf.mxu0
        %v6248 = vadd.f32 %v5919, %v6247
        %v6249 = vpop.f32.mrf.mxu0
        %v6250 = vadd.f32 %v5921, %v6249
        %6251 = vmatmul.bf16.gmra.mxu0 %v2608
        %v6252 = vpop.f32.mrf.mxu0
        %v6253 = vadd.f32 %v5924, %v6252
        %v6254 = vpop.f32.mrf.mxu0
        %v6255 = vadd.f32 %v5926, %v6254
        %6256 = vmatmul.bf16.gmra.mxu0 %v2616
        %v6257 = vpop.f32.mrf.mxu0
        %v6258 = vadd.f32 %v5929, %v6257
        %v6259 = vpop.f32.mrf.mxu0
        %v6260 = vadd.f32 %v5931, %v6259
        %6261 = vmatmul.bf16.gmra.mxu0 %v2624
        %v6262 = vpop.f32.mrf.mxu0
        %v6263 = vadd.f32 %v5934, %v6262
        %v6264 = vpop.f32.mrf.mxu0
        %v6265 = vadd.f32 %v5936, %v6264
        %6266 = vmatmul.bf16.gmra.mxu0 %v2632
        %v6267 = vpop.f32.mrf.mxu0
        %v6268 = vadd.f32 %v5939, %v6267
        %v6269 = vpop.f32.mrf.mxu0
        %v6270 = vadd.f32 %v5941, %v6269
        %6271 = vmatmul.bf16.gmra.mxu0 %v2640
        %v6272 = vpop.f32.mrf.mxu0
        %v6273 = vadd.f32 %v5944, %v6272
        %v6274 = vpop.f32.mrf.mxu0
        %v6275 = vadd.f32 %v5946, %v6274
        %6276 = vmatmul.bf16.gmra.mxu0 %v2648
        %v6277 = vpop.f32.mrf.mxu0
        %v6278 = vadd.f32 %v5949, %v6277
        %v6279 = vpop.f32.mrf.mxu0
        %v6280 = vadd.f32 %v5951, %v6279
        %6281 = vmatmul.bf16.gmra.mxu0 %v2656
        %v6282 = vpop.f32.mrf.mxu0
        %v6283 = vadd.f32 %v5954, %v6282
        %v6284 = vpop.f32.mrf.mxu0
        %v6285 = vadd.f32 %v5956, %v6284
        %6286 = vmatmul.bf16.gmra.mxu0 %v2664
        %v6287 = vpop.f32.mrf.mxu0
        %v6288 = vadd.f32 %v5959, %v6287
        %v6289 = vpop.f32.mrf.mxu0
        %v6290 = vadd.f32 %v5961, %v6289
        %6291 = vmatmul.bf16.gmra.mxu0 %v2672
        %v6292 = vpop.f32.mrf.mxu0
        %v6293 = vadd.f32 %v5964, %v6292
        %v6294 = vpop.f32.mrf.mxu0
        %v6295 = vadd.f32 %v5966, %v6294
        %6296 = vmatmul.bf16.gmra.mxu0 %v2680
        %v6297 = vpop.f32.mrf.mxu0
        %v6298 = vadd.f32 %v5969, %v6297
        %v6299 = vpop.f32.mrf.mxu0
        %v6300 = vadd.f32 %v5971, %v6299
        %6301 = vmatmul.bf16.gmra.mxu0 %v2688
        %v6302 = vpop.f32.mrf.mxu0
        %v6303 = vadd.f32 %v5974, %v6302
        %v6304 = vpop.f32.mrf.mxu0
        %v6305 = vadd.f32 %v5976, %v6304
        %6306 = vmatmul.bf16.gmra.mxu0 %v2696
        %v6307 = vpop.f32.mrf.mxu0
        %v6308 = vadd.f32 %v5979, %v6307
        %v6309 = vpop.f32.mrf.mxu0
        %v6310 = vadd.f32 %v5981, %v6309
        %6311 = vmatmul.bf16.gmra.mxu0 %v2704
        %v6312 = vpop.f32.mrf.mxu0
        %v6313 = vadd.f32 %v5984, %v6312
        %v6314 = vpop.f32.mrf.mxu0
        %v6315 = vadd.f32 %v5986, %v6314
        %6316 = vmatmul.bf16.gmra.mxu0 %v2712
        %v6317 = vpop.f32.mrf.mxu0
        %v6318 = vadd.f32 %v5989, %v6317
        %v6319 = vpop.f32.mrf.mxu0
        %v6320 = vadd.f32 %v5991, %v6319
        %6321 = vmatmul.bf16.gmra.mxu0 %v2720
        %v6322 = vpop.f32.mrf.mxu0
        %v6323 = vadd.f32 %v5994, %v6322
        %v6324 = vpop.f32.mrf.mxu0
        %v6325 = vadd.f32 %v5996, %v6324
        %6326 = vmatmul.bf16.gmra.mxu0 %v2728
        %v6327 = vpop.f32.mrf.mxu0
        %v6328 = vadd.f32 %v5999, %v6327
        %v6329 = vpop.f32.mrf.mxu0
        %v6330 = vadd.f32 %v6001, %v6329
        %6331 = vmatmul.bf16.gmra.mxu0 %v2736
        %v6332 = vpop.f32.mrf.mxu0
        %v6333 = vadd.f32 %v6004, %v6332
        %v6334 = vpop.f32.mrf.mxu0
        %v6335 = vadd.f32 %v6006, %v6334
        %6336 = vmatmul.bf16.gmra.mxu0 %v2744
        %v6337 = vpop.f32.mrf.mxu0
        %v6338 = vadd.f32 %v6009, %v6337
        %v6339 = vpop.f32.mrf.mxu0
        %v6340 = vadd.f32 %v6011, %v6339
        %6341 = vmatmul.bf16.gmra.mxu0 %v2752
        %v6342 = vpop.f32.mrf.mxu0
        %v6343 = vadd.f32 %v6014, %v6342
        %v6344 = vpop.f32.mrf.mxu0
        %v6345 = vadd.f32 %v6016, %v6344
        %6346 = vmatmul.bf16.gmra.mxu0 %v2760
        %v6347 = vpop.f32.mrf.mxu0
        %v6348 = vadd.f32 %v6019, %v6347
        %v6349 = vpop.f32.mrf.mxu0
        %v6350 = vadd.f32 %v6021, %v6349
        %6351 = vmatmul.bf16.gmra.mxu0 %v2768
        %v6352 = vpop.f32.mrf.mxu0
        %v6353 = vadd.f32 %v6024, %v6352
        %v6354 = vpop.f32.mrf.mxu0
        %v6355 = vadd.f32 %v6026, %v6354
        %6356 = vmatmul.bf16.gmra.mxu0 %v2776
        %v6357 = vpop.f32.mrf.mxu0
        %v6358 = vadd.f32 %v6029, %v6357
        %v6359 = vpop.f32.mrf.mxu0
        %v6360 = vadd.f32 %v6031, %v6359
        %6361 = vmatmul.bf16.gmra.mxu0 %v2784
        %v6362 = vpop.f32.mrf.mxu0
        %v6363 = vadd.f32 %v6034, %v6362
        %v6364 = vpop.f32.mrf.mxu0
        %v6365 = vadd.f32 %v6036, %v6364
        %6366 = vmatmul.bf16.gmra.mxu0 %v2792
        %v6367 = vpop.f32.mrf.mxu0
        %v6368 = vadd.f32 %v6039, %v6367
        %v6369 = vpop.f32.mrf.mxu0
        %v6370 = vadd.f32 %v6041, %v6369
        %6371 = vmatmul.bf16.gmra.mxu0 %v2800
        %v6372 = vpop.f32.mrf.mxu0
        %v6373 = vadd.f32 %v6044, %v6372
        %v6374 = vpop.f32.mrf.mxu0
        %v6375 = vadd.f32 %v6046, %v6374
        %6376 = vmatmul.bf16.gmra.mxu0 %v2808
        %v6377 = vpop.f32.mrf.mxu0
        %v6378 = vadd.f32 %v6049, %v6377
        %v6379 = vpop.f32.mrf.mxu0
        %v6380 = vadd.f32 %v6051, %v6379
        %6381 = vmatmul.bf16.gmra.mxu0 %v2816
        %v6382 = vpop.f32.mrf.mxu0
        %v6383 = vadd.f32 %v6054, %v6382
        %v6384 = vpop.f32.mrf.mxu0
        %v6385 = vadd.f32 %v6056, %v6384
        %6386 = vmatmul.bf16.gmra.mxu0 %v2824
        %v6387 = vpop.f32.mrf.mxu0
        %v6388 = vadd.f32 %v6059, %v6387
        %v6389 = vpop.f32.mrf.mxu0
        %v6390 = vadd.f32 %v6061, %v6389
        %6391 = vmatmul.bf16.gmra.mxu0 %v2832
        %v6392 = vpop.f32.mrf.mxu0
        %v6393 = vadd.f32 %v6064, %v6392
        %v6394 = vpop.f32.mrf.mxu0
        %v6395 = vadd.f32 %v6066, %v6394
        %6396 = vmatmul.bf16.gmra.mxu0 %v2840
        %v6397 = vpop.f32.mrf.mxu0
        %v6398 = vadd.f32 %v6069, %v6397
        %v6399 = vpop.f32.mrf.mxu0
        %v6400 = vadd.f32 %v6071, %v6399
        %6401 = vmatmul.bf16.gmra.mxu0 %v2848
        %v6402 = vpop.f32.mrf.mxu0
        %v6403 = vadd.f32 %v6074, %v6402
        %v6404 = vpop.f32.mrf.mxu0
        %v6405 = vadd.f32 %v6076, %v6404
        %6406 = vmatmul.bf16.gmra.mxu0 %v2856
        %v6407 = vpop.f32.mrf.mxu0
        %v6408 = vadd.f32 %v6079, %v6407
        %v6409 = vpop.f32.mrf.mxu0
        %v6410 = vadd.f32 %v6081, %v6409
        %6411 = vmatmul.bf16.gmra.mxu0 %v2864
        %v6412 = vpop.f32.mrf.mxu0
        %v6413 = vadd.f32 %v6084, %v6412
        %v6414 = vpop.f32.mrf.mxu0
        %v6415 = vadd.f32 %v6086, %v6414
        %6416 = vmatmul.bf16.gmra.mxu0 %v2872
        %v6417 = vpop.f32.mrf.mxu0
        %v6418 = vadd.f32 %v6089, %v6417
        %v6419 = vpop.f32.mrf.mxu0
        %v6420 = vadd.f32 %v6091, %v6419
        %6421 = vmatmul.bf16.gmra.mxu0 %v2880
        %v6422 = vpop.f32.mrf.mxu0
        %v6423 = vadd.f32 %v6094, %v6422
        %v6424 = vpop.f32.mrf.mxu0
        %v6425 = vadd.f32 %v6096, %v6424
        %6426 = vmatmul.bf16.gmra.mxu0 %v2888
        %v6427 = vpop.f32.mrf.mxu0
        %v6428 = vadd.f32 %v6099, %v6427
        %v6429 = vpop.f32.mrf.mxu0
        %v6430 = vadd.f32 %v6101, %v6429
        %6431 = vmatmul.bf16.gmra.mxu0 %v2896
        %v6432 = vpop.f32.mrf.mxu0
        %v6433 = vadd.f32 %v6104, %v6432
        %v6434 = vpop.f32.mrf.mxu0
        %v6435 = vadd.f32 %v6106, %v6434
        %6436 = vmatmul.bf16.gmra.mxu0 %v2904
        %v6437 = vpop.f32.mrf.mxu0
        %v6438 = vadd.f32 %v6109, %v6437
        %v6439 = vpop.f32.mrf.mxu0
        %v6440 = vadd.f32 %v6111, %v6439
        %6441 = vmatmul.bf16.gmra.mxu0 %v2912
        %v6442 = vpop.f32.mrf.mxu0
        %v6443 = vadd.f32 %v6114, %v6442
        %v6444 = vpop.f32.mrf.mxu0
        %v6445 = vadd.f32 %v6116, %v6444
        %6446 = vmatmul.bf16.gmra.mxu0 %v2920
        %v6447 = vpop.f32.mrf.mxu0
        %v6448 = vadd.f32 %v6119, %v6447
        %v6449 = vpop.f32.mrf.mxu0
        %v6450 = vadd.f32 %v6121, %v6449
        %6451 = vmatmul.bf16.gmra.mxu0 %v2928
        %v6452 = vpop.f32.mrf.mxu0
        %v6453 = vadd.f32 %v6124, %v6452
        %v6454 = vpop.f32.mrf.mxu0
        %v6455 = vadd.f32 %v6126, %v6454
        %6456 = vdwg.mxu0
        %v6457 = vmul.f32 %v6138, %v6138
        %v6458 = vmul.f32 %v6140, %v6140
        %v6459 = vmul.f32 %v6143, %v6143
        %v6460 = vmul.f32 %v6145, %v6145
        %v6461 = vmul.f32 %v6148, %v6148
        %v6462 = vmul.f32 %v6150, %v6150
        %v6463 = vmul.f32 %v6153, %v6153
        %v6464 = vmul.f32 %v6155, %v6155
        %v6465 = vmul.f32 %v6158, %v6158
        %v6466 = vmul.f32 %v6160, %v6160
        %v6467 = vmul.f32 %v6163, %v6163
        %v6468 = vmul.f32 %v6165, %v6165
        %v6469 = vmul.f32 %v6168, %v6168
        %v6470 = vmul.f32 %v6170, %v6170
        %v6471 = vmul.f32 %v6173, %v6173
        %v6472 = vmul.f32 %v6175, %v6175
        %v6473 = vmul.f32 %v6178, %v6178
        %v6474 = vmul.f32 %v6180, %v6180
        %v6475 = vmul.f32 %v6183, %v6183
        %v6476 = vmul.f32 %v6185, %v6185
        %v6477 = vmul.f32 %v6188, %v6188
        %v6478 = vmul.f32 %v6190, %v6190
        %v6479 = vmul.f32 %v6193, %v6193
        %v6480 = vmul.f32 %v6195, %v6195
        %v6481 = vmul.f32 %v6198, %v6198
        %v6482 = vmul.f32 %v6200, %v6200
        %v6483 = vmul.f32 %v6203, %v6203
        %v6484 = vmul.f32 %v6205, %v6205
        %v6485 = vmul.f32 %v6208, %v6208
        %v6486 = vmul.f32 %v6210, %v6210
        %v6487 = vmul.f32 %v6213, %v6213
        %v6488 = vmul.f32 %v6215, %v6215
        %v6489 = vmul.f32 %v6218, %v6218
        %v6490 = vmul.f32 %v6220, %v6220
        %v6491 = vmul.f32 %v6223, %v6223
        %v6492 = vmul.f32 %v6225, %v6225
        %v6493 = vmul.f32 %v6228, %v6228
        %v6494 = vmul.f32 %v6230, %v6230
        %v6495 = vmul.f32 %v6233, %v6233
        %v6496 = vmul.f32 %v6235, %v6235
        %v6497 = vmul.f32 %v6238, %v6238
        %v6498 = vmul.f32 %v6240, %v6240
        %v6499 = vmul.f32 %v6243, %v6243
        %v6500 = vmul.f32 %v6245, %v6245
        %v6501 = vmul.f32 %v6248, %v6248
        %v6502 = vmul.f32 %v6250, %v6250
        %v6503 = vmul.f32 %v6253, %v6253
        %v6504 = vmul.f32 %v6255, %v6255
        %v6505 = vmul.f32 %v6258, %v6258
        %v6506 = vmul.f32 %v6260, %v6260
        %v6507 = vmul.f32 %v6263, %v6263
        %v6508 = vmul.f32 %v6265, %v6265
        %v6509 = vmul.f32 %v6268, %v6268
        %v6510 = vmul.f32 %v6270, %v6270
        %v6511 = vmul.f32 %v6273, %v6273
        %v6512 = vmul.f32 %v6275, %v6275
        %v6513 = vmul.f32 %v6278, %v6278
        %v6514 = vmul.f32 %v6280, %v6280
        %v6515 = vmul.f32 %v6283, %v6283
        %v6516 = vmul.f32 %v6285, %v6285
        %v6517 = vmul.f32 %v6288, %v6288
        %v6518 = vmul.f32 %v6290, %v6290
        %v6519 = vmul.f32 %v6293, %v6293
        %v6520 = vmul.f32 %v6295, %v6295
        %v6521 = vmul.f32 %v6298, %v6298
        %v6522 = vmul.f32 %v6300, %v6300
        %v6523 = vmul.f32 %v6303, %v6303
        %v6524 = vmul.f32 %v6305, %v6305
        %v6525 = vmul.f32 %v6308, %v6308
        %v6526 = vmul.f32 %v6310, %v6310
        %v6527 = vmul.f32 %v6313, %v6313
        %v6528 = vmul.f32 %v6315, %v6315
        %v6529 = vmul.f32 %v6318, %v6318
        %v6530 = vmul.f32 %v6320, %v6320
        %v6531 = vmul.f32 %v6323, %v6323
        %v6532 = vmul.f32 %v6325, %v6325
        %v6533 = vmul.f32 %v6328, %v6328
        %v6534 = vmul.f32 %v6330, %v6330
        %v6535 = vmul.f32 %v6333, %v6333
        %v6536 = vmul.f32 %v6335, %v6335
        %v6537 = vmul.f32 %v6338, %v6338
        %v6538 = vmul.f32 %v6340, %v6340
        %v6539 = vmul.f32 %v6343, %v6343
        %v6540 = vmul.f32 %v6345, %v6345
        %v6541 = vmul.f32 %v6348, %v6348
        %v6542 = vmul.f32 %v6350, %v6350
        %v6543 = vmul.f32 %v6353, %v6353
        %v6544 = vmul.f32 %v6355, %v6355
        %v6545 = vmul.f32 %v6358, %v6358
        %v6546 = vmul.f32 %v6360, %v6360
        %v6547 = vmul.f32 %v6363, %v6363
        %v6548 = vmul.f32 %v6365, %v6365
        %v6549 = vmul.f32 %v6368, %v6368
        %v6550 = vmul.f32 %v6370, %v6370
        %v6551 = vmul.f32 %v6373, %v6373
        %v6552 = vmul.f32 %v6375, %v6375
        %v6553 = vmul.f32 %v6378, %v6378
        %v6554 = vmul.f32 %v6380, %v6380
        %v6555 = vmul.f32 %v6383, %v6383
        %v6556 = vmul.f32 %v6385, %v6385
        %v6557 = vmul.f32 %v6388, %v6388
        %v6558 = vmul.f32 %v6390, %v6390
        %v6559 = vmul.f32 %v6393, %v6393
        %v6560 = vmul.f32 %v6395, %v6395
        %v6561 = vmul.f32 %v6398, %v6398
        %v6562 = vmul.f32 %v6400, %v6400
        %v6563 = vmul.f32 %v6403, %v6403
        %v6564 = vmul.f32 %v6405, %v6405
        %v6565 = vmul.f32 %v6408, %v6408
        %v6566 = vmul.f32 %v6410, %v6410
        %v6567 = vmul.f32 %v6413, %v6413
        %v6568 = vmul.f32 %v6415, %v6415
        %v6569 = vmul.f32 %v6418, %v6418
        %v6570 = vmul.f32 %v6420, %v6420
        %v6571 = vmul.f32 %v6423, %v6423
        %v6572 = vmul.f32 %v6425, %v6425
        %v6573 = vmul.f32 %v6428, %v6428
        %v6574 = vmul.f32 %v6430, %v6430
        %v6575 = vmul.f32 %v6433, %v6433
        %v6576 = vmul.f32 %v6435, %v6435
        %v6577 = vmul.f32 %v6438, %v6438
        %v6578 = vmul.f32 %v6440, %v6440
        %v6579 = vmul.f32 %v6443, %v6443
        %v6580 = vmul.f32 %v6445, %v6445
        %v6581 = vmul.f32 %v6448, %v6448
        %v6582 = vmul.f32 %v6450, %v6450
        %v6583 = vmul.f32 %v6453, %v6453
        %v6584 = vmul.f32 %v6455, %v6455
        %v6585 = vadd.f32 %v6457, %v6521
        %v6586 = vadd.f32 %v6458, %v6522
        %v6587 = vadd.f32 %v6459, %v6523
        %v6588 = vadd.f32 %v6460, %v6524
        %v6589 = vadd.f32 %v6461, %v6525
        %v6590 = vadd.f32 %v6462, %v6526
        %v6591 = vadd.f32 %v6463, %v6527
        %v6592 = vadd.f32 %v6464, %v6528
        %v6593 = vadd.f32 %v6465, %v6529
        %v6594 = vadd.f32 %v6466, %v6530
        %v6595 = vadd.f32 %v6467, %v6531
        %v6596 = vadd.f32 %v6468, %v6532
        %v6597 = vadd.f32 %v6469, %v6533
        %v6598 = vadd.f32 %v6470, %v6534
        %v6599 = vadd.f32 %v6471, %v6535
        %v6600 = vadd.f32 %v6472, %v6536
        %v6601 = vadd.f32 %v6473, %v6537
        %v6602 = vadd.f32 %v6474, %v6538
        %v6603 = vadd.f32 %v6475, %v6539
        %v6604 = vadd.f32 %v6476, %v6540
        %v6605 = vadd.f32 %v6477, %v6541
        %v6606 = vadd.f32 %v6478, %v6542
        %v6607 = vadd.f32 %v6479, %v6543
        %v6608 = vadd.f32 %v6480, %v6544
        %v6609 = vadd.f32 %v6481, %v6545
        %v6610 = vadd.f32 %v6482, %v6546
        %v6611 = vadd.f32 %v6483, %v6547
        %v6612 = vadd.f32 %v6484, %v6548
        %v6613 = vadd.f32 %v6485, %v6549
        %v6614 = vadd.f32 %v6486, %v6550
        %v6615 = vadd.f32 %v6487, %v6551
        %v6616 = vadd.f32 %v6488, %v6552
        %v6617 = vadd.f32 %v6489, %v6553
        %v6618 = vadd.f32 %v6490, %v6554
        %v6619 = vadd.f32 %v6491, %v6555
        %v6620 = vadd.f32 %v6492, %v6556
        %v6621 = vadd.f32 %v6493, %v6557
        %v6622 = vadd.f32 %v6494, %v6558
        %v6623 = vadd.f32 %v6495, %v6559
        %v6624 = vadd.f32 %v6496, %v6560
        %v6625 = vadd.f32 %v6497, %v6561
        %v6626 = vadd.f32 %v6498, %v6562
        %v6627 = vadd.f32 %v6499, %v6563
        %v6628 = vadd.f32 %v6500, %v6564
        %v6629 = vadd.f32 %v6501, %v6565
        %v6630 = vadd.f32 %v6502, %v6566
        %v6631 = vadd.f32 %v6503, %v6567
        %v6632 = vadd.f32 %v6504, %v6568
        %v6633 = vadd.f32 %v6505, %v6569
        %v6634 = vadd.f32 %v6506, %v6570
        %v6635 = vadd.f32 %v6507, %v6571
        %v6636 = vadd.f32 %v6508, %v6572
        %v6637 = vadd.f32 %v6509, %v6573
        %v6638 = vadd.f32 %v6510, %v6574
        %v6639 = vadd.f32 %v6511, %v6575
        %v6640 = vadd.f32 %v6512, %v6576
        %v6641 = vadd.f32 %v6513, %v6577
        %v6642 = vadd.f32 %v6514, %v6578
        %v6643 = vadd.f32 %v6515, %v6579
        %v6644 = vadd.f32 %v6516, %v6580
        %v6645 = vadd.f32 %v6517, %v6581
        %v6646 = vadd.f32 %v6518, %v6582
        %v6647 = vadd.f32 %v6519, %v6583
        %v6648 = vadd.f32 %v6520, %v6584
        %v6649 = vld [vmem:[#allocation7] sm:$0xff]
        %v6650 = vld [vmem:[#allocation7 + $0x8] sm:$0xff]
        %v6651 = vld [vmem:[#allocation7 + $0x10] sm:$0xff]
        %v6652 = vld [vmem:[#allocation7 + $0x18] sm:$0xff]
        %v6653 = vld [vmem:[#allocation7 + $0x20] sm:$0xff]
        %v6654 = vld [vmem:[#allocation7 + $0x28] sm:$0xff]
        %v6655 = vld [vmem:[#allocation7 + $0x30] sm:$0xff]
        %v6656 = vld [vmem:[#allocation7 + $0x38] sm:$0xff]
        %v6657 = vld [vmem:[#allocation7 + $0x40] sm:$0xff]
        %v6658 = vld [vmem:[#allocation7 + $0x48] sm:$0xff]
        %v6659 = vld [vmem:[#allocation7 + $0x50] sm:$0xff]
        %v6660 = vld [vmem:[#allocation7 + $0x58] sm:$0xff]
        %v6661 = vld [vmem:[#allocation7 + $0x60] sm:$0xff]
        %v6662 = vld [vmem:[#allocation7 + $0x68] sm:$0xff]
        %v6663 = vld [vmem:[#allocation7 + $0x70] sm:$0xff]
        %v6664 = vld [vmem:[#allocation7 + $0x78] sm:$0xff]
        %v6665 = vld [vmem:[#allocation7 + $0x80] sm:$0xff]
        %v6666 = vld [vmem:[#allocation7 + $0x88] sm:$0xff]
        %v6667 = vld [vmem:[#allocation7 + $0x90] sm:$0xff]
        %v6668 = vld [vmem:[#allocation7 + $0x98] sm:$0xff]
        %v6669 = vld [vmem:[#allocation7 + $0xa0] sm:$0xff]
        %v6670 = vld [vmem:[#allocation7 + $0xa8] sm:$0xff]
        %v6671 = vld [vmem:[#allocation7 + $0xb0] sm:$0xff]
        %v6672 = vld [vmem:[#allocation7 + $0xb8] sm:$0xff]
        %v6673 = vld [vmem:[#allocation7 + $0xc0] sm:$0xff]
        %v6674 = vld [vmem:[#allocation7 + $0xc8] sm:$0xff]
        %v6675 = vld [vmem:[#allocation7 + $0xd0] sm:$0xff]
        %v6676 = vld [vmem:[#allocation7 + $0xd8] sm:$0xff]
        %v6677 = vld [vmem:[#allocation7 + $0xe0] sm:$0xff]
        %v6678 = vld [vmem:[#allocation7 + $0xe8] sm:$0xff]
        %v6679 = vld [vmem:[#allocation7 + $0xf0] sm:$0xff]
        %v6680 = vld [vmem:[#allocation7 + $0xf8] sm:$0xff]
        %v6681 = vpack.c.bf16 %v6586, %v6585
        %v6682 = vpack.c.bf16 %v6588, %v6587
        %v6683 = vpack.c.bf16 %v6590, %v6589
        %v6684 = vpack.c.bf16 %v6592, %v6591
        %v6685 = vpack.c.bf16 %v6594, %v6593
        %v6686 = vpack.c.bf16 %v6596, %v6595
        %v6687 = vpack.c.bf16 %v6598, %v6597
        %v6688 = vpack.c.bf16 %v6600, %v6599
        %v6689 = vpack.c.bf16 %v6602, %v6601
        %v6690 = vpack.c.bf16 %v6604, %v6603
        %v6691 = vpack.c.bf16 %v6606, %v6605
        %v6692 = vpack.c.bf16 %v6608, %v6607
        %v6693 = vpack.c.bf16 %v6610, %v6609
        %v6694 = vpack.c.bf16 %v6612, %v6611
        %v6695 = vpack.c.bf16 %v6614, %v6613
        %v6696 = vpack.c.bf16 %v6616, %v6615
        %v6697 = vpack.c.bf16 %v6618, %v6617
        %v6698 = vpack.c.bf16 %v6620, %v6619
        %v6699 = vpack.c.bf16 %v6622, %v6621
        %v6700 = vpack.c.bf16 %v6624, %v6623
        %v6701 = vpack.c.bf16 %v6626, %v6625
        %v6702 = vpack.c.bf16 %v6628, %v6627
        %v6703 = vpack.c.bf16 %v6630, %v6629
        %v6704 = vpack.c.bf16 %v6632, %v6631
        %v6705 = vpack.c.bf16 %v6634, %v6633
        %v6706 = vpack.c.bf16 %v6636, %v6635
        %v6707 = vpack.c.bf16 %v6638, %v6637
        %v6708 = vpack.c.bf16 %v6640, %v6639
        %v6709 = vpack.c.bf16 %v6642, %v6641
        %v6710 = vpack.c.bf16 %v6644, %v6643
        %v6711 = vpack.c.bf16 %v6646, %v6645
        %v6712 = vpack.c.bf16 %v6648, %v6647
        %v6745 = vunpack.c.l.b16 %v6649
        %v6746 = vunpack.c.h.b16 %v6649
        %v6747 = vunpack.c.l.b16 %v6650
        %v6748 = vunpack.c.h.b16 %v6650
        %v6749 = vunpack.c.l.b16 %v6651
        %v6750 = vunpack.c.h.b16 %v6651
        %v6751 = vunpack.c.l.b16 %v6652
        %v6752 = vunpack.c.h.b16 %v6652
        %v6753 = vunpack.c.l.b16 %v6653
        %v6754 = vunpack.c.h.b16 %v6653
        %v6755 = vunpack.c.l.b16 %v6654
        %v6756 = vunpack.c.h.b16 %v6654
        %v6757 = vunpack.c.l.b16 %v6655
        %v6758 = vunpack.c.h.b16 %v6655
        %v6759 = vunpack.c.l.b16 %v6656
        %v6760 = vunpack.c.h.b16 %v6656
        %v6761 = vunpack.c.l.b16 %v6657
        %v6762 = vunpack.c.h.b16 %v6657
        %v6763 = vunpack.c.l.b16 %v6658
        %v6764 = vunpack.c.h.b16 %v6658
        %v6765 = vunpack.c.l.b16 %v6659
        %v6766 = vunpack.c.h.b16 %v6659
        %v6767 = vunpack.c.l.b16 %v6660
        %v6768 = vunpack.c.h.b16 %v6660
        %v6769 = vunpack.c.l.b16 %v6661
        %v6770 = vunpack.c.h.b16 %v6661
        %v6771 = vunpack.c.l.b16 %v6662
        %v6772 = vunpack.c.h.b16 %v6662
        %v6773 = vunpack.c.l.b16 %v6663
        %v6774 = vunpack.c.h.b16 %v6663
        %v6775 = vunpack.c.l.b16 %v6664
        %v6776 = vunpack.c.h.b16 %v6664
        %v6777 = vunpack.c.l.b16 %v6665
        %v6778 = vunpack.c.h.b16 %v6665
        %v6779 = vunpack.c.l.b16 %v6666
        %v6780 = vunpack.c.h.b16 %v6666
        %v6781 = vunpack.c.l.b16 %v6667
        %v6782 = vunpack.c.h.b16 %v6667
        %v6783 = vunpack.c.l.b16 %v6668
        %v6784 = vunpack.c.h.b16 %v6668
        %v6785 = vunpack.c.l.b16 %v6669
        %v6786 = vunpack.c.h.b16 %v6669
        %v6787 = vunpack.c.l.b16 %v6670
        %v6788 = vunpack.c.h.b16 %v6670
        %v6789 = vunpack.c.l.b16 %v6671
        %v6790 = vunpack.c.h.b16 %v6671
        %v6791 = vunpack.c.l.b16 %v6672
        %v6792 = vunpack.c.h.b16 %v6672
        %v6793 = vunpack.c.l.b16 %v6673
        %v6794 = vunpack.c.h.b16 %v6673
        %v6795 = vunpack.c.l.b16 %v6674
        %v6796 = vunpack.c.h.b16 %v6674
        %v6797 = vunpack.c.l.b16 %v6675
        %v6798 = vunpack.c.h.b16 %v6675
        %v6799 = vunpack.c.l.b16 %v6676
        %v6800 = vunpack.c.h.b16 %v6676
        %v6801 = vunpack.c.l.b16 %v6677
        %v6802 = vunpack.c.h.b16 %v6677
        %v6803 = vunpack.c.l.b16 %v6678
        %v6804 = vunpack.c.h.b16 %v6678
        %v6805 = vunpack.c.l.b16 %v6679
        %v6806 = vunpack.c.h.b16 %v6679
        %v6807 = vunpack.c.l.b16 %v6680
        %v6808 = vunpack.c.h.b16 %v6680
        %v6809 = vpack.c.b16 %v6749, %v6745
        %v6810 = vpack.c.b16 %v6750, %v6746
        %v6811 = vpack.c.b16 %v6751, %v6747
        %v6812 = vpack.c.b16 %v6752, %v6748
        %v6813 = vpack.c.b16 %v6757, %v6753
        %v6814 = vpack.c.b16 %v6758, %v6754
        %v6815 = vpack.c.b16 %v6759, %v6755
        %v6816 = vpack.c.b16 %v6760, %v6756
        %v6817 = vpack.c.b16 %v6765, %v6761
        %v6818 = vpack.c.b16 %v6766, %v6762
        %v6819 = vpack.c.b16 %v6767, %v6763
        %v6820 = vpack.c.b16 %v6768, %v6764
        %v6821 = vpack.c.b16 %v6773, %v6769
        %v6822 = vpack.c.b16 %v6774, %v6770
        %v6823 = vpack.c.b16 %v6775, %v6771
        %v6824 = vpack.c.b16 %v6776, %v6772
        %v6825 = vpack.c.b16 %v6781, %v6777
        %v6826 = vpack.c.b16 %v6782, %v6778
        %v6827 = vpack.c.b16 %v6783, %v6779
        %v6828 = vpack.c.b16 %v6784, %v6780
        %v6829 = vpack.c.b16 %v6789, %v6785
        %v6830 = vpack.c.b16 %v6790, %v6786
        %v6831 = vpack.c.b16 %v6791, %v6787
        %v6832 = vpack.c.b16 %v6792, %v6788
        %v6833 = vpack.c.b16 %v6797, %v6793
        %v6834 = vpack.c.b16 %v6798, %v6794
        %v6835 = vpack.c.b16 %v6799, %v6795
        %v6836 = vpack.c.b16 %v6800, %v6796
        %v6837 = vpack.c.b16 %v6805, %v6801
        %v6838 = vpack.c.b16 %v6806, %v6802
        %v6839 = vpack.c.b16 %v6807, %v6803
        %v6840 = vpack.c.b16 %v6808, %v6804
        %6873 = vmatpush.bf16.msra.mxu0 %v6688
        %6874 = vmatpush.bf16.msra.mxu0 %v6687
        %6875 = vmatpush.bf16.msra.mxu0 %v6686
        %6876 = vmatpush.bf16.msra.mxu0 %v6685
        %6877 = vmatpush.bf16.msra.mxu0 %v6684
        %6878 = vmatpush.bf16.msra.mxu0 %v6683
        %6879 = vmatpush.bf16.msra.mxu0 %v6682
        %6880 = vmatpush.bf16.msra.mxu0 %v6681
        %6881 = vmatmul.bf16.gmra.mxu0 %v6809
        %v6882 = vpop.f32.mrf.mxu0
        %v6883 = vadd.f32 1e-14, %v6882
        %v6884 = vpop.f32.mrf.mxu0
        %v6885 = vadd.f32 1e-14, %v6884
        %6886 = vmatmul.bf16.gmra.mxu0 %v6813
        %v6887 = vpop.f32.mrf.mxu0
        %v6888 = vadd.f32 1e-14, %v6887
        %v6889 = vpop.f32.mrf.mxu0
        %v6890 = vadd.f32 1e-14, %v6889
        %6891 = vmatmul.bf16.gmra.mxu0 %v6817
        %v6892 = vpop.f32.mrf.mxu0
        %v6893 = vadd.f32 1e-14, %v6892
        %v6894 = vpop.f32.mrf.mxu0
        %v6895 = vadd.f32 1e-14, %v6894
        %6896 = vmatmul.bf16.gmra.mxu0 %v6821
        %v6897 = vpop.f32.mrf.mxu0
        %v6898 = vadd.f32 1e-14, %v6897
        %v6899 = vpop.f32.mrf.mxu0
        %v6900 = vadd.f32 1e-14, %v6899
        %6901 = vmatmul.bf16.gmra.mxu0 %v6825
        %v6902 = vpop.f32.mrf.mxu0
        %v6903 = vadd.f32 1e-14, %v6902
        %v6904 = vpop.f32.mrf.mxu0
        %v6905 = vadd.f32 1e-14, %v6904
        %6906 = vmatmul.bf16.gmra.mxu0 %v6829
        %v6907 = vpop.f32.mrf.mxu0
        %v6908 = vadd.f32 1e-14, %v6907
        %v6909 = vpop.f32.mrf.mxu0
        %v6910 = vadd.f32 1e-14, %v6909
        %6911 = vmatmul.bf16.gmra.mxu0 %v6833
        %v6912 = vpop.f32.mrf.mxu0
        %v6913 = vadd.f32 1e-14, %v6912
        %v6914 = vpop.f32.mrf.mxu0
        %v6915 = vadd.f32 1e-14, %v6914
        %6916 = vmatmul.bf16.gmra.mxu0 %v6837
        %v6917 = vpop.f32.mrf.mxu0
        %v6918 = vadd.f32 1e-14, %v6917
        %v6919 = vpop.f32.mrf.mxu0
        %v6920 = vadd.f32 1e-14, %v6919
        %6921 = vdwg.mxu0
        %6922 = vmatpush.bf16.msra.mxu0 %v6696
        %6923 = vmatpush.bf16.msra.mxu0 %v6695
        %6924 = vmatpush.bf16.msra.mxu0 %v6694
        %6925 = vmatpush.bf16.msra.mxu0 %v6693
        %6926 = vmatpush.bf16.msra.mxu0 %v6692
        %6927 = vmatpush.bf16.msra.mxu0 %v6691
        %6928 = vmatpush.bf16.msra.mxu0 %v6690
        %6929 = vmatpush.bf16.msra.mxu0 %v6689
        %6930 = vmatmul.bf16.gmra.mxu0 %v6810
        %v6931 = vpop.f32.mrf.mxu0
        %v6932 = vadd.f32 %v6883, %v6931
        %v6933 = vpop.f32.mrf.mxu0
        %v6934 = vadd.f32 %v6885, %v6933
        %6935 = vmatmul.bf16.gmra.mxu0 %v6814
        %v6936 = vpop.f32.mrf.mxu0
        %v6937 = vadd.f32 %v6888, %v6936
        %v6938 = vpop.f32.mrf.mxu0
        %v6939 = vadd.f32 %v6890, %v6938
        %6940 = vmatmul.bf16.gmra.mxu0 %v6818
        %v6941 = vpop.f32.mrf.mxu0
        %v6942 = vadd.f32 %v6893, %v6941
        %v6943 = vpop.f32.mrf.mxu0
        %v6944 = vadd.f32 %v6895, %v6943
        %6945 = vmatmul.bf16.gmra.mxu0 %v6822
        %v6946 = vpop.f32.mrf.mxu0
        %v6947 = vadd.f32 %v6898, %v6946
        %v6948 = vpop.f32.mrf.mxu0
        %v6949 = vadd.f32 %v6900, %v6948
        %6950 = vmatmul.bf16.gmra.mxu0 %v6826
        %v6951 = vpop.f32.mrf.mxu0
        %v6952 = vadd.f32 %v6903, %v6951
        %v6953 = vpop.f32.mrf.mxu0
        %v6954 = vadd.f32 %v6905, %v6953
        %6955 = vmatmul.bf16.gmra.mxu0 %v6830
        %v6956 = vpop.f32.mrf.mxu0
        %v6957 = vadd.f32 %v6908, %v6956
        %v6958 = vpop.f32.mrf.mxu0
        %v6959 = vadd.f32 %v6910, %v6958
        %6960 = vmatmul.bf16.gmra.mxu0 %v6834
        %v6961 = vpop.f32.mrf.mxu0
        %v6962 = vadd.f32 %v6913, %v6961
        %v6963 = vpop.f32.mrf.mxu0
        %v6964 = vadd.f32 %v6915, %v6963
        %6965 = vmatmul.bf16.gmra.mxu0 %v6838
        %v6966 = vpop.f32.mrf.mxu0
        %v6967 = vadd.f32 %v6918, %v6966
        %v6968 = vpop.f32.mrf.mxu0
        %v6969 = vadd.f32 %v6920, %v6968
        %6970 = vdwg.mxu0
        %6971 = vmatpush.bf16.msra.mxu0 %v6704
        %6972 = vmatpush.bf16.msra.mxu0 %v6703
        %6973 = vmatpush.bf16.msra.mxu0 %v6702
        %6974 = vmatpush.bf16.msra.mxu0 %v6701
        %6975 = vmatpush.bf16.msra.mxu0 %v6700
        %6976 = vmatpush.bf16.msra.mxu0 %v6699
        %6977 = vmatpush.bf16.msra.mxu0 %v6698
        %6978 = vmatpush.bf16.msra.mxu0 %v6697
        %6979 = vmatmul.bf16.gmra.mxu0 %v6811
        %v6980 = vpop.f32.mrf.mxu0
        %v6981 = vadd.f32 %v6932, %v6980
        %v6982 = vpop.f32.mrf.mxu0
        %v6983 = vadd.f32 %v6934, %v6982
        %6984 = vmatmul.bf16.gmra.mxu0 %v6815
        %v6985 = vpop.f32.mrf.mxu0
        %v6986 = vadd.f32 %v6937, %v6985
        %v6987 = vpop.f32.mrf.mxu0
        %v6988 = vadd.f32 %v6939, %v6987
        %6989 = vmatmul.bf16.gmra.mxu0 %v6819
        %v6990 = vpop.f32.mrf.mxu0
        %v6991 = vadd.f32 %v6942, %v6990
        %v6992 = vpop.f32.mrf.mxu0
        %v6993 = vadd.f32 %v6944, %v6992
        %6994 = vmatmul.bf16.gmra.mxu0 %v6823
        %v6995 = vpop.f32.mrf.mxu0
        %v6996 = vadd.f32 %v6947, %v6995
        %v6997 = vpop.f32.mrf.mxu0
        %v6998 = vadd.f32 %v6949, %v6997
        %6999 = vmatmul.bf16.gmra.mxu0 %v6827
        %v7000 = vpop.f32.mrf.mxu0
        %v7001 = vadd.f32 %v6952, %v7000
        %v7002 = vpop.f32.mrf.mxu0
        %v7003 = vadd.f32 %v6954, %v7002
        %7004 = vmatmul.bf16.gmra.mxu0 %v6831
        %v7005 = vpop.f32.mrf.mxu0
        %v7006 = vadd.f32 %v6957, %v7005
        %v7007 = vpop.f32.mrf.mxu0
        %v7008 = vadd.f32 %v6959, %v7007
        %7009 = vmatmul.bf16.gmra.mxu0 %v6835
        %v7010 = vpop.f32.mrf.mxu0
        %v7011 = vadd.f32 %v6962, %v7010
        %v7012 = vpop.f32.mrf.mxu0
        %v7013 = vadd.f32 %v6964, %v7012
        %7014 = vmatmul.bf16.gmra.mxu0 %v6839
        %v7015 = vpop.f32.mrf.mxu0
        %v7016 = vadd.f32 %v6967, %v7015
        %v7017 = vpop.f32.mrf.mxu0
        %v7018 = vadd.f32 %v6969, %v7017
        %7019 = vdwg.mxu0
        %7020 = vmatpush.bf16.msra.mxu0 %v6712
        %7021 = vmatpush.bf16.msra.mxu0 %v6711
        %7022 = vmatpush.bf16.msra.mxu0 %v6710
        %7023 = vmatpush.bf16.msra.mxu0 %v6709
        %7024 = vmatpush.bf16.msra.mxu0 %v6708
        %7025 = vmatpush.bf16.msra.mxu0 %v6707
        %7026 = vmatpush.bf16.msra.mxu0 %v6706
        %7027 = vmatpush.bf16.msra.mxu0 %v6705
        %7028 = vmatmul.bf16.gmra.mxu0 %v6812
        %v7029 = vpop.f32.mrf.mxu0
        %v7030 = vadd.f32 %v6981, %v7029
        %v7031 = vpop.f32.mrf.mxu0
        %v7032 = vadd.f32 %v6983, %v7031
        %7033 = vmatmul.bf16.gmra.mxu0 %v6816
        %v7034 = vpop.f32.mrf.mxu0
        %v7035 = vadd.f32 %v6986, %v7034
        %v7036 = vpop.f32.mrf.mxu0
        %v7037 = vadd.f32 %v6988, %v7036
        %7038 = vmatmul.bf16.gmra.mxu0 %v6820
        %v7039 = vpop.f32.mrf.mxu0
        %v7040 = vadd.f32 %v6991, %v7039
        %v7041 = vpop.f32.mrf.mxu0
        %v7042 = vadd.f32 %v6993, %v7041
        %7043 = vmatmul.bf16.gmra.mxu0 %v6824
        %v7044 = vpop.f32.mrf.mxu0
        %v7045 = vadd.f32 %v6996, %v7044
        %v7046 = vpop.f32.mrf.mxu0
        %v7047 = vadd.f32 %v6998, %v7046
        %7048 = vmatmul.bf16.gmra.mxu0 %v6828
        %v7049 = vpop.f32.mrf.mxu0
        %v7050 = vadd.f32 %v7001, %v7049
        %v7051 = vpop.f32.mrf.mxu0
        %v7052 = vadd.f32 %v7003, %v7051
        %7053 = vmatmul.bf16.gmra.mxu0 %v6832
        %v7054 = vpop.f32.mrf.mxu0
        %v7055 = vadd.f32 %v7006, %v7054
        %v7056 = vpop.f32.mrf.mxu0
        %v7057 = vadd.f32 %v7008, %v7056
        %7058 = vmatmul.bf16.gmra.mxu0 %v6836
        %v7059 = vpop.f32.mrf.mxu0
        %v7060 = vadd.f32 %v7011, %v7059
        %v7061 = vpop.f32.mrf.mxu0
        %v7062 = vadd.f32 %v7013, %v7061
        %7063 = vmatmul.bf16.gmra.mxu0 %v6840
        %v7064 = vpop.f32.mrf.mxu0
        %v7065 = vadd.f32 %v7016, %v7064
        %v7066 = vpop.f32.mrf.mxu0
        %v7067 = vadd.f32 %v7018, %v7066
        %7068 = vdwg.mxu0
        %v7069 = vlog2.pop %v7030
        %v7070 = vmul.f32 %v7069, 0.6931472
        %v7071 = vlog2.pop %v7032
        %v7072 = vmul.f32 %v7071, 0.6931472
        %v7073 = vlog2.pop %v7035
        %v7074 = vmul.f32 %v7073, 0.6931472
        %v7075 = vlog2.pop %v7037
        %v7076 = vmul.f32 %v7075, 0.6931472
        %v7077 = vlog2.pop %v7040
        %v7078 = vmul.f32 %v7077, 0.6931472
        %v7079 = vlog2.pop %v7042
        %v7080 = vmul.f32 %v7079, 0.6931472
        %v7081 = vlog2.pop %v7045
        %v7082 = vmul.f32 %v7081, 0.6931472
        %v7083 = vlog2.pop %v7047
        %v7084 = vmul.f32 %v7083, 0.6931472
        %v7085 = vlog2.pop %v7050
        %v7086 = vmul.f32 %v7085, 0.6931472
        %v7087 = vlog2.pop %v7052
        %v7088 = vmul.f32 %v7087, 0.6931472
        %v7089 = vlog2.pop %v7055
        %v7090 = vmul.f32 %v7089, 0.6931472
        %v7091 = vlog2.pop %v7057
        %v7092 = vmul.f32 %v7091, 0.6931472
        %v7093 = vlog2.pop %v7060
        %v7094 = vmul.f32 %v7093, 0.6931472
        %v7095 = vlog2.pop %v7062
        %v7096 = vmul.f32 %v7095, 0.6931472
        %v7097 = vlog2.pop %v7065
        %v7098 = vmul.f32 %v7097, 0.6931472
        %v7099 = vlog2.pop %v7067
        %v7100 = vmul.f32 %v7099, 0.6931472
        %7101 = vst [vmem:[%s240] sm:$0xff] %v7070
        %7102 = vst [vmem:[%s240 + $0x8] sm:$0xff] %v7072
        %7103 = vst [vmem:[%s240 + $0x10] sm:$0xff] %v7074
        %7104 = vst [vmem:[%s240 + $0x18] sm:$0xff] %v7076
        %7105 = vst [vmem:[%s240 + $0x20] sm:$0xff] %v7078
        %7106 = vst [vmem:[%s240 + $0x28] sm:$0xff] %v7080
        %7107 = vst [vmem:[%s240 + $0x30] sm:$0xff] %v7082
        %7108 = vst [vmem:[%s240 + $0x38] sm:$0xff] %v7084
        %7109 = vst [vmem:[%s240 + $0x40] sm:$0xff] %v7086
        %7110 = vst [vmem:[%s240 + $0x48] sm:$0xff] %v7088
        %7111 = vst [vmem:[%s240 + $0x50] sm:$0xff] %v7090
        %7112 = vst [vmem:[%s240 + $0x58] sm:$0xff] %v7092
        %7113 = vst [vmem:[%s240 + $0x60] sm:$0xff] %v7094
        %7114 = vst [vmem:[%s240 + $0x68] sm:$0xff] %v7096
        %7115 = vst [vmem:[%s240 + $0x70] sm:$0xff] %v7098
        %7116 = vst [vmem:[%s240 + $0x78] sm:$0xff] %v7100
        %s7117 = sand.u32 %s113, 1
        %s7118 = scalar_lea.sflag [#allocation4], %s7117
        %s7119 = sand.u32 %s113, 1
        %s7120 = smul.addr %s7119, 128
        %s7121 = scalar_lea.vmem [#allocation8], %s7120
        // Predicated region
        $region45: #{tpu_custom_call.1} parent=31 // pred_check
          %p7122 = pneg %p123
        $region46: #{tpu_custom_call.1} parent=31 // pred_check_branch
          %7124 = sbr.rel (%p7122) target = $region48
        $region47: #{tpu_custom_call.1} parent=31 // pred_region
          %7126 = vsyncadd %s7118, 0
          %s7127 = smul.addr %s25, 16
          %s7128 = sadd.s32 %s26, %s7127
          %s7129 = smul.addr %s7128, 8
          %s7130 = scalar_lea.hbm %s3, %s7129
          %s7131 = sshll.u32 %s7121, 4
          %s7132 = int_to_ptr.vmem [resolvable:$true] %s7131
          %s7133 = sshll.u32 %s7130, 4
          %s7134 = int_to_ptr.hbm [resolvable:$true] %s7133
          %7139 = dma.vmem_to_hbm [thread:$0]  %s7132, 2048, %s7134, %s7118, 128, 128, 8
        $region48: #{tpu_custom_call.1} parent=31 // pred_fallthru
          _
      $region32: #{tpu_custom_call.1} parent=5 // pred_fallthru
        _
      %p7140 = scmp.le.s32.totalorder 2, %s16
      // Predicated region
      $region49: #{tpu_custom_call.1} parent=5 // pred_check
        %p7141 = pneg %p7140
      $region50: #{tpu_custom_call.1} parent=5 // pred_check_branch
        %7143 = sbr.rel (%p7141) target = $region52
      $region51: #{tpu_custom_call.1} parent=5 // pred_region
        %s7144 = ssub.s32 %s16, 2
        // Predicated region
        $region53: #{tpu_custom_call.1} parent=51 // pred_check
          %p7145 = pneg %p129
        $region54: #{tpu_custom_call.1} parent=51 // pred_check_branch
          %7147 = sbr.rel (%p7145) target = $region56
        $region55: #{tpu_custom_call.1} parent=51 // pred_region
          %s7148 = sand.u32 %s114, 1
          %s7149 = scalar_lea.sflag [#allocation4], %s7148
          %s7150 = sand.u32 %s114, 1
          %s7151 = smul.addr %s7150, 128
          %s7152 = scalar_lea.vmem [#allocation8], %s7151
          %7154 = dma.done %s7149, 2048
        $region56: #{tpu_custom_call.1} parent=51 // pred_fallthru
          _
      $region52: #{tpu_custom_call.1} parent=5 // pred_fallthru
        _
    $region6: #{tpu_custom_call.1} parent=1 // loop_footer
      %s20 = sadd.s32 1, %s16
    $region7: #{tpu_custom_call.1} parent=1 // loop_footer_branch
      %15 = sbr.rel target = $region3
    $region8: #{tpu_custom_call.1} parent=1 // loop_exit
      _
    %7155 = vsyncpa [#allocation3], 1
    %s7156 = scalar_lea.sflag [#allocation3], 1
    %7157 = vsyncpa %s7156, 1
    %7158 = vsyncpa [#allocation6], 1
    %7159 = vsyncpa [#allocation4], 1
    %s7160 = scalar_lea.sflag [#allocation4], 1
    %7161 = vsyncpa %s7160, 1

</llo_original>
